<compile_context>
chip_gen: v6e
topology: v6e:2x2x1
jax: 0.10.0
libtpu: 0.0.40
codegen_flags: <defaults>
</compile_context>

<pallas_src>
import functools

import jax
import jax.numpy as jnp
from jax.experimental import pallas as pl
from jax.experimental.pallas import tpu as pltpu

BN_EPS = 1e-5


def adda_classifier_kernel(
    # inputs
    x_ref,                       # (tb, 3200) bf16 tile of the flattened image
    w1_ref,                      # (3200, 256) bf16, weight-resident
    g1_ref, be1_ref,             # (1, 256) f32 BN1 gamma / beta
    w2_ref,                      # (256, 128) bf16
    g2_ref, be2_ref,             # (1, 128) f32 BN2 gamma / beta
    w3_ref,                      # (128, 128) bf16 (zero-padded cols 10..127)
    b3_ref,                      # (1, 128) f32  (zero-padded cols 10..127)
    # outputs
    o_ref,                       # (B, 128) f32, resident across the grid
    # scratch
    h1_ref,                      # (B, 256) bf16 pre-BN layer-1 activations
    s1_ref, ss1_ref,             # (1, 256) f32 running sum / sum-of-squares
    *, tb, num_blocks,
):
    i = pl.program_id(0)

    @pl.when(i == 0)
    def _init():
        s1_ref[...] = jnp.zeros_like(s1_ref)
        ss1_ref[...] = jnp.zeros_like(ss1_ref)

    # ---- Layer 1: Linear(3200, 256), bf16 operands, f32 MXU accumulate.
    # (bias b1 cancels exactly against the train-mode BN batch-mean subtraction)
    h = jnp.dot(x_ref[...], w1_ref[...], preferred_element_type=jnp.float32)  # (tb, 256)

    # BN1 statistics accumulate in f32 (independent of the bf16 storage below).
    s1_ref[...] += jnp.sum(h, axis=0, keepdims=True)
    ss1_ref[...] += jnp.sum(h * h, axis=0, keepdims=True)

    if num_blocks == 1:
        h1_ref[...] = h.astype(h1_ref.dtype)
    else:
        # tb is a multiple of 16 here -> bf16 sublane-aligned stores.
        row0 = pl.multiple_of(i * tb, tb)
        h1_ref[pl.ds(row0, tb), :] = h.astype(h1_ref.dtype)

    @pl.when(i == num_blocks - 1)
    def _finalize():
        B = h1_ref.shape[0]
        inv_b = 1.0 / B

        # ---- BN1 (training-mode batch stats, biased var) + ReLU in scale/shift form.
        mean1 = s1_ref[...] * inv_b
        var1 = jnp.maximum(ss1_ref[...] * inv_b - mean1 * mean1, 0.0)
        scale1 = g1_ref[...] * jax.lax.rsqrt(var1 + BN_EPS)
        shift1 = be1_ref[...] - mean1 * scale1
        h1 = jnp.maximum(h1_ref[...].astype(jnp.float32) * scale1 + shift1, 0.0)  # (B, 256)

        # ---- Layer 2: Linear(256, 128) (bias cancelled by BN), bf16 operands.
        h2 = jnp.dot(h1.astype(jnp.bfloat16), w2_ref[...],
                     preferred_element_type=jnp.float32)                 # (B, 128)

        # ---- BN2 + ReLU, two-pass variance (matches reference formulation).
        mean2 = jnp.mean(h2, axis=0, keepdims=True)
        c2 = h2 - mean2
        var2 = jnp.mean(c2 * c2, axis=0, keepdims=True)
        scale2 = g2_ref[...] * jax.lax.rsqrt(var2 + BN_EPS)
        h2n = jnp.maximum(c2 * scale2 + be2_ref[...], 0.0)               # (B, 128)

        # ---- Layer 3: Linear(128, 10), padded to a lane-dense 128-wide output.
        o_ref[...] = (
            jnp.dot(h2n.astype(jnp.bfloat16), w3_ref[...],
                    preferred_element_type=jnp.float32) + b3_ref[...]
        ).astype(o_ref.dtype)                                            # (B, 128)


def _pick_row_tile(B):
    """Largest bf16-friendly row tile (multiple of 16, <= 512) dividing B; else full block."""
    for tb in (512, 256, 128, 64, 32, 16):
        if B % tb == 0:
            return tb
    return B  # small / odd batch: single full-extent block (always a legal block shape)


def _vmem_limit_bytes(requested):
    """Generation-aware VMEM budget: never ask for more than the chip has."""
    try:
        cap = pltpu.get_tpu_info().vmem_capacity_bytes
    except Exception:
        cap = 64 * 1024 * 1024          # conservative: v7x physical VMEM
    headroom = 8 * 1024 * 1024
    return int(max(16 * 1024 * 1024, min(cap - headroom, requested)))


def prepare_params(params):
    """One-time weight preprocessing (hoisted out of the per-call hot path).

    Cache and reuse the result across forward calls; re-run only after a
    weight update.  b1 / b2 are dropped: the train-mode BatchNorm batch-mean
    subtraction cancels them exactly.
    """
    (w1, b1, g1, be1, w2, b2, g2, be2, w3, b3) = params
    del b1, b2

    w1b = w1.astype(jnp.bfloat16)                       # bf16 weight for the big matmul
    w2b = w2.astype(jnp.bfloat16)
    # Zero-pad the final linear to 128 output lanes (lane-dense stores); slice after.
    w3p = jnp.zeros((128, 128), jnp.bfloat16).at[:, :10].set(w3.astype(jnp.bfloat16))
    b3p = jnp.zeros((1, 128), jnp.float32).at[:, :10].set(b3.astype(jnp.float32))
    return (w1b, g1, be1, w2b, g2, be2, w3p, b3p)


def adda_classifier_forward(img, prepared):
    """img: (B, C, H, W) with C*H*W == 3200.  Returns logits (B, 10) float32.

    `prepared` is the output of prepare_params() (weights pre-cast / pre-padded).
    """
    B = img.shape[0]
    x = img.reshape(B, -1)
    assert x.shape[1] == 3200, f"expected 3200 flattened features, got {x.shape[1]}"
    x = x.astype(jnp.bfloat16)                          # activation cast only (per-call)

    (w1b, g1, be1, w2b, g2, be2, w3p, b3p) = prepared

    tb = _pick_row_tile(B)
    num_blocks = B // tb

    vmem_bytes = (
        2 * tb * 3200 * 2                               # double-buffered bf16 x tiles
        + 3200 * 256 * 2                                # w1 bf16 (single-buffered)
        + (256 * 128 + 128 * 128) * 2                   # w2, w3p bf16 (single-buffered)
        + (2 * 256 + 2 * 128 + 128) * 4                 # BN params + b3p (f32)
        + B * 256 * 2                                   # h1 scratch (bf16)
        + B * 128 * 4                                   # resident padded-logits output block
        + 2 * 256 * 4                                   # sum / sum-of-squares
    )
    vmem_limit = _vmem_limit_bytes(max(32 * 1024 * 1024, (vmem_bytes * 3) // 2))

    cost = pl.CostEstimate(
        flops=2 * B * (3200 * 256 + 256 * 128 + 128 * 128),
        transcendentals=256 + 128,
        bytes_accessed=(x.size * 2 + w1b.size * 2 + (w2b.size + w3p.size) * 2
                        + (b3p.size + g1.size + be1.size + g2.size + be2.size) * 4
                        + B * 128 * 4),
    )

    const = lambda i: (0, 0)  # weight-resident / full-array blocks
    one_buf = pl.Buffered(1)  # constant index_map -> a second pipeline buffer is never used

    kernel = functools.partial(adda_classifier_kernel, tb=tb, num_blocks=num_blocks)

    out = pl.pallas_call(
        kernel,
        out_shape=jax.ShapeDtypeStruct((B, 128), jnp.float32),
        grid_spec=pltpu.PrefetchScalarGridSpec(
            num_scalar_prefetch=0,
            grid=(num_blocks,),
            in_specs=[
                pl.BlockSpec((tb, 3200), lambda i: (i, 0)),                 # x tiles (pipelined)
                pl.BlockSpec((3200, 256), const, pipeline_mode=one_buf),    # w1 (resident)
                pl.BlockSpec((1, 256), const, pipeline_mode=one_buf),       # gamma1
                pl.BlockSpec((1, 256), const, pipeline_mode=one_buf),       # beta1
                pl.BlockSpec((256, 128), const, pipeline_mode=one_buf),     # w2
                pl.BlockSpec((1, 128), const, pipeline_mode=one_buf),       # gamma2
                pl.BlockSpec((1, 128), const, pipeline_mode=one_buf),       # beta2
                pl.BlockSpec((128, 128), const, pipeline_mode=one_buf),     # w3 (padded)
                pl.BlockSpec((1, 128), const, pipeline_mode=one_buf),       # b3 (padded)
            ],
            out_specs=pl.BlockSpec((B, 128), const),          # resident, written at finalize
            scratch_shapes=[
                pltpu.VMEM((B, 256), jnp.bfloat16),           # h1 (pre-BN layer-1 acts)
                pltpu.VMEM((1, 256), jnp.float32),            # sum
                pltpu.VMEM((1, 256), jnp.float32),            # sum of squares
            ],
        ),
        compiler_params=pltpu.CompilerParams(
            dimension_semantics=("arbitrary",),               # axis carries BN stats + output
            vmem_limit_bytes=vmem_limit,
        ),
        cost_estimate=cost,
    )(x, w1b, g1, be1, w2b, g2, be2, w3p, b3p)

    return out[:, :10]


def init_params(key):
    """PyTorch-style init: uniform(-1/sqrt(fan_in), +1/sqrt(fan_in)); BN gamma=1, beta=0."""
    ks = jax.random.split(key, 6)

    def linear(kw, kb, fan_in, fan_out):
        bound = 1.0 / jnp.sqrt(fan_in)
        w = jax.random.uniform(kw, (fan_in, fan_out), jnp.float32, -bound, bound)
        b = jax.random.uniform(kb, (1, fan_out), jnp.float32, -bound, bound)
        return w, b

    w1, b1 = linear(ks[0], ks[1], 3200, 256)
    w2, b2 = linear(ks[2], ks[3], 256, 128)
    w3, b3 = linear(ks[4], ks[5], 128, 10)

    g1, be1 = jnp.ones((1, 256), jnp.float32), jnp.zeros((1, 256), jnp.float32)
    g2, be2 = jnp.ones((1, 128), jnp.float32), jnp.zeros((1, 128), jnp.float32)

    return (w1, b1, g1, be1, w2, b2, g2, be2, w3, b3)


def reference_forward(img, params):
    """Plain-JAX reference (PyTorch train-mode semantics, biases included).

    The matmuls use the same bf16 operand casts as the kernel so the comparison
    is apples-to-apples; BN math stays in f32 and b1/b2 are kept to verify that
    the kernel's bias elision is exact (BN cancels them).
    """
    (w1, b1, g1, be1, w2, b2, g2, be2, w3, b3) = params
    x = img.reshape(img.shape[0], -1)

    def bn_relu(h, g, be):
        m = jnp.mean(h, axis=0, keepdims=True)
        v = jnp.mean((h - m) ** 2, axis=0, keepdims=True)
        return jnp.maximum((h - m) / jnp.sqrt(v + BN_EPS) * g + be, 0.0)

    h = jnp.dot(x.astype(jnp.bfloat16), w1.astype(jnp.bfloat16),
                preferred_element_type=jnp.float32) + b1
    h = bn_relu(h, g1, be1)
    h = jnp.dot(h.astype(jnp.bfloat16), w2.astype(jnp.bfloat16),
                preferred_element_type=jnp.float32) + b2
    h = bn_relu(h, g2, be2)
    return jnp.dot(h.astype(jnp.bfloat16), w3.astype(jnp.bfloat16),
                   preferred_element_type=jnp.float32) + b3


if __name__ == "__main__":
    key = jax.random.PRNGKey(0)
    k_img, k_par = jax.random.split(key)

    # Flattened features must be 3200 = 128 channels * 5 * 5 spatial (fixed by the module).
    B, C, H, W = 8, 128, 5, 5
    img = jax.random.normal(k_img, (B, C, H, W), jnp.float32)

    params = init_params(k_par)
    prepared = prepare_params(params)   # hoisted: done once, reused across forward calls

    out = adda_classifier_forward(img, prepared)
    out = jax.block_until_ready(out)

    ref = reference_forward(img, params)
    assert out.shape == (B, 10)
    max_err = float(jnp.max(jnp.abs(out - ref)))
    assert jnp.allclose(out, ref, atol=2e-2, rtol=2e-2), (
        f"mismatch vs reference (max abs err {max_err})")

    # TODO(synk): BatchNorm1d running_mean/running_var buffer updates (a training-time
    # side effect) are not produced; this kernel implements the train-mode forward only.
    print("KERNEL_OK")
</pallas_src>

<mosaic_0001>
module attributes {stable_mosaic.version = 11 : i64} {
  func.func @adda_classifier_kernel(%arg0: i32, %arg1: memref<8x3200xbf16, #tpu.memory_space<vmem>>, %arg2: memref<3200x256xbf16, #tpu.memory_space<vmem>>, %arg3: memref<1x256xf32, #tpu.memory_space<vmem>>, %arg4: memref<1x256xf32, #tpu.memory_space<vmem>>, %arg5: memref<256x128xbf16, #tpu.memory_space<vmem>>, %arg6: memref<1x128xf32, #tpu.memory_space<vmem>>, %arg7: memref<1x128xf32, #tpu.memory_space<vmem>>, %arg8: memref<128x128xbf16, #tpu.memory_space<vmem>>, %arg9: memref<1x128xf32, #tpu.memory_space<vmem>>, %arg10: memref<8x128xf32, #tpu.memory_space<vmem>>, %arg11: memref<8x256xbf16, #tpu.memory_space<vmem>>, %arg12: memref<1x256xf32, #tpu.memory_space<vmem>>, %arg13: memref<1x256xf32, #tpu.memory_space<vmem>>) attributes {dimension_semantics = [#tpu.dimension_semantics<arbitrary>], iteration_bounds = array<i64: 1>, scalar_prefetch = 0 : i64, scratch_operands = 3 : i64, tpu.core_type = #tpu.core_type<tc>, window_params = [{transform_indices = @transform_0, window_bounds = array<i64: 8, 3200>}, {pipeline_mode = #tpu.pipeline_mode<synchronous>, transform_indices = @transform_1, window_bounds = array<i64: 3200, 256>}, {pipeline_mode = #tpu.pipeline_mode<synchronous>, transform_indices = @transform_2, window_bounds = array<i64: 1, 256>}, {pipeline_mode = #tpu.pipeline_mode<synchronous>, transform_indices = @transform_3, window_bounds = array<i64: 1, 256>}, {pipeline_mode = #tpu.pipeline_mode<synchronous>, transform_indices = @transform_4, window_bounds = array<i64: 256, 128>}, {pipeline_mode = #tpu.pipeline_mode<synchronous>, transform_indices = @transform_5, window_bounds = array<i64: 1, 128>}, {pipeline_mode = #tpu.pipeline_mode<synchronous>, transform_indices = @transform_6, window_bounds = array<i64: 1, 128>}, {pipeline_mode = #tpu.pipeline_mode<synchronous>, transform_indices = @transform_7, window_bounds = array<i64: 128, 128>}, {pipeline_mode = #tpu.pipeline_mode<synchronous>, transform_indices = @transform_8, window_bounds = array<i64: 1, 128>}, {pipeline_mode = #tpu.pipeline_mode<synchronous>, transform_indices = @transform_9, window_bounds = array<i64: 8, 128>}]} {
    %c0_i32 = arith.constant 0 : i32
    %0 = arith.cmpi eq, %arg0, %c0_i32 : i32
    %1 = arith.extui %0 : i1 to i32
    %c0_i32_0 = arith.constant 0 : i32
    %2 = arith.cmpi ne, %1, %c0_i32_0 : i32
    scf.if %2 {
      %cst_18 = arith.constant 0.000000e+00 : f32
      %22 = vector.broadcast %cst_18 : f32 to vector<1x256xf32>
      %c0_19 = arith.constant 0 : index
      %c0_20 = arith.constant 0 : index
      %23 = vector.load %arg12[%c0_19, %c0_20] : memref<1x256xf32, #tpu.memory_space<vmem>>, vector<1x256xf32>
      tpu.vector_store %arg12[%c0_19, %c0_20], %22 {strides = array<i32>} : memref<1x256xf32, #tpu.memory_space<vmem>>, vector<1x256xf32>,
      %cst_21 = arith.constant 0.000000e+00 : f32
      %24 = vector.broadcast %cst_21 : f32 to vector<1x256xf32>
      %c0_22 = arith.constant 0 : index
      %c0_23 = arith.constant 0 : index
      %25 = vector.load %arg13[%c0_22, %c0_23] : memref<1x256xf32, #tpu.memory_space<vmem>>, vector<1x256xf32>
      tpu.vector_store %arg13[%c0_22, %c0_23], %24 {strides = array<i32>} : memref<1x256xf32, #tpu.memory_space<vmem>>, vector<1x256xf32>,
    } else {
    }
    %c0 = arith.constant 0 : index
    %c0_1 = arith.constant 0 : index
    %3 = vector.load %arg1[%c0, %c0_1] : memref<8x3200xbf16, #tpu.memory_space<vmem>>, vector<8x3200xbf16>
    %c0_2 = arith.constant 0 : index
    %c0_3 = arith.constant 0 : index
    %4 = vector.load %arg2[%c0_2, %c0_3] : memref<3200x256xbf16, #tpu.memory_space<vmem>>, vector<3200x256xbf16>
    %cst = arith.constant dense<0.000000e+00> : vector<8x256xf32>
    %5 = tpu.matmul %3, %4, %cst {dimension_numbers = #tpu.dot_dimension_numbers<[1], [0], [0], [1], [0, 0, 1, 1], [], []>} : vector<8x3200xbf16>, vector<3200x256xbf16>, vector<8x256xf32> -> vector<8x256xf32>
    %c0_4 = arith.constant 0 : index
    %c0_5 = arith.constant 0 : index
    %6 = vector.load %arg12[%c0_4, %c0_5] : memref<1x256xf32, #tpu.memory_space<vmem>>, vector<1x256xf32>
    %cst_6 = arith.constant dense<0.000000e+00> : vector<256xf32>
    %7 = vector.multi_reduction <add>, %5, %cst_6 [0] : vector<8x256xf32> to vector<256xf32>
    %8 = vector.shape_cast %7 : vector<256xf32> to vector<1x256xf32>
    %9 = arith.addf %6, %8 : vector<1x256xf32>
    %c0_7 = arith.constant 0 : index
    %c0_8 = arith.constant 0 : index
    %10 = vector.load %arg12[%c0_7, %c0_8] : memref<1x256xf32, #tpu.memory_space<vmem>>, vector<1x256xf32>
    tpu.vector_store %arg12[%c0_7, %c0_8], %9 {strides = array<i32>} : memref<1x256xf32, #tpu.memory_space<vmem>>, vector<1x256xf32>,
    %c0_9 = arith.constant 0 : index
    %c0_10 = arith.constant 0 : index
    %11 = vector.load %arg13[%c0_9, %c0_10] : memref<1x256xf32, #tpu.memory_space<vmem>>, vector<1x256xf32>
    %12 = arith.mulf %5, %5 : vector<8x256xf32>
    %cst_11 = arith.constant dense<0.000000e+00> : vector<256xf32>
    %13 = vector.multi_reduction <add>, %12, %cst_11 [0] : vector<8x256xf32> to vector<256xf32>
    %14 = vector.shape_cast %13 : vector<256xf32> to vector<1x256xf32>
    %15 = arith.addf %11, %14 : vector<1x256xf32>
    %c0_12 = arith.constant 0 : index
    %c0_13 = arith.constant 0 : index
    %16 = vector.load %arg13[%c0_12, %c0_13] : memref<1x256xf32, #tpu.memory_space<vmem>>, vector<1x256xf32>
    tpu.vector_store %arg13[%c0_12, %c0_13], %15 {strides = array<i32>} : memref<1x256xf32, #tpu.memory_space<vmem>>, vector<1x256xf32>,
    %17 = arith.truncf %5 : vector<8x256xf32> to vector<8x256xbf16>
    %c0_14 = arith.constant 0 : index
    %c0_15 = arith.constant 0 : index
    %18 = vector.load %arg11[%c0_14, %c0_15] : memref<8x256xbf16, #tpu.memory_space<vmem>>, vector<8x256xbf16>
    tpu.vector_store %arg11[%c0_14, %c0_15], %17 {strides = array<i32>} : memref<8x256xbf16, #tpu.memory_space<vmem>>, vector<8x256xbf16>,
    %c0_i32_16 = arith.constant 0 : i32
    %19 = arith.cmpi eq, %arg0, %c0_i32_16 : i32
    %20 = arith.extui %19 : i1 to i32
    %c0_i32_17 = arith.constant 0 : i32
    %21 = arith.cmpi ne, %20, %c0_i32_17 : i32
    scf.if %21 {
      %c0_18 = arith.constant 0 : index
      %c0_19 = arith.constant 0 : index
      %22 = vector.load %arg12[%c0_18, %c0_19] : memref<1x256xf32, #tpu.memory_space<vmem>>, vector<1x256xf32>
      %cst_20 = arith.constant 1.250000e-01 : f32
      %23 = vector.broadcast %cst_20 : f32 to vector<1x256xf32>
      %24 = arith.mulf %22, %23 : vector<1x256xf32>
      %c0_21 = arith.constant 0 : index
      %c0_22 = arith.constant 0 : index
      %25 = vector.load %arg13[%c0_21, %c0_22] : memref<1x256xf32, #tpu.memory_space<vmem>>, vector<1x256xf32>
      %cst_23 = arith.constant 1.250000e-01 : f32
      %26 = vector.broadcast %cst_23 : f32 to vector<1x256xf32>
      %27 = arith.mulf %25, %26 : vector<1x256xf32>
      %28 = arith.mulf %24, %24 : vector<1x256xf32>
      %29 = arith.subf %27, %28 : vector<1x256xf32>
      %cst_24 = arith.constant 0.000000e+00 : f32
      %30 = vector.broadcast %cst_24 : f32 to vector<1x256xf32>
      %31 = arith.maximumf %29, %30 : vector<1x256xf32>
      %c0_25 = arith.constant 0 : index
      %c0_26 = arith.constant 0 : index
      %32 = vector.load %arg3[%c0_25, %c0_26] : memref<1x256xf32, #tpu.memory_space<vmem>>, vector<1x256xf32>
      %cst_27 = arith.constant 9.99999974E-6 : f32
      %33 = vector.broadcast %cst_27 : f32 to vector<1x256xf32>
      %34 = arith.addf %31, %33 : vector<1x256xf32>
      %35 = math.rsqrt %34 : vector<1x256xf32>
      %36 = arith.mulf %32, %35 : vector<1x256xf32>
      %c0_28 = arith.constant 0 : index
      %c0_29 = arith.constant 0 : index
      %37 = vector.load %arg4[%c0_28, %c0_29] : memref<1x256xf32, #tpu.memory_space<vmem>>, vector<1x256xf32>
      %38 = arith.mulf %24, %36 : vector<1x256xf32>
      %39 = arith.subf %37, %38 : vector<1x256xf32>
      %c0_30 = arith.constant 0 : index
      %c0_31 = arith.constant 0 : index
      %40 = vector.load %arg11[%c0_30, %c0_31] : memref<8x256xbf16, #tpu.memory_space<vmem>>, vector<8x256xbf16>
      %41 = arith.extf %40 : vector<8x256xbf16> to vector<8x256xf32>
      %42 = vector.broadcast %36 : vector<1x256xf32> to vector<8x256xf32>
      %43 = arith.mulf %41, %42 : vector<8x256xf32>
      %44 = vector.broadcast %39 : vector<1x256xf32> to vector<8x256xf32>
      %45 = arith.addf %43, %44 : vector<8x256xf32>
      %cst_32 = arith.constant 0.000000e+00 : f32
      %46 = vector.broadcast %cst_32 : f32 to vector<8x256xf32>
      %47 = arith.maximumf %45, %46 : vector<8x256xf32>
      %48 = arith.truncf %47 : vector<8x256xf32> to vector<8x256xbf16>
      %c0_33 = arith.constant 0 : index
      %c0_34 = arith.constant 0 : index
      %49 = vector.load %arg5[%c0_33, %c0_34] : memref<256x128xbf16, #tpu.memory_space<vmem>>, vector<256x128xbf16>
      %cst_35 = arith.constant dense<0.000000e+00> : vector<8x128xf32>
      %50 = tpu.matmul %48, %49, %cst_35 {dimension_numbers = #tpu.dot_dimension_numbers<[1], [0], [0], [1], [0, 0, 1, 1], [], []>} : vector<8x256xbf16>, vector<256x128xbf16>, vector<8x128xf32> -> vector<8x128xf32>
      %cst_36 = arith.constant dense<0.000000e+00> : vector<128xf32>
      %51 = vector.multi_reduction <add>, %50, %cst_36 [0] : vector<8x128xf32> to vector<128xf32>
      %52 = vector.shape_cast %51 : vector<128xf32> to vector<1x128xf32>
      %cst_37 = arith.constant 8.000000e+00 : f32
      %53 = vector.broadcast %cst_37 : f32 to vector<1x128xf32>
      %54 = arith.divf %52, %53 : vector<1x128xf32>
      %55 = vector.broadcast %54 : vector<1x128xf32> to vector<8x128xf32>
      %56 = arith.subf %50, %55 : vector<8x128xf32>
      %57 = arith.mulf %56, %56 : vector<8x128xf32>
      %cst_38 = arith.constant dense<0.000000e+00> : vector<128xf32>
      %58 = vector.multi_reduction <add>, %57, %cst_38 [0] : vector<8x128xf32> to vector<128xf32>
      %59 = vector.shape_cast %58 : vector<128xf32> to vector<1x128xf32>
      %cst_39 = arith.constant 8.000000e+00 : f32
      %60 = vector.broadcast %cst_39 : f32 to vector<1x128xf32>
      %61 = arith.divf %59, %60 : vector<1x128xf32>
      %c0_40 = arith.constant 0 : index
      %c0_41 = arith.constant 0 : index
      %62 = vector.load %arg6[%c0_40, %c0_41] : memref<1x128xf32, #tpu.memory_space<vmem>>, vector<1x128xf32>
      %cst_42 = arith.constant 9.99999974E-6 : f32
      %63 = vector.broadcast %cst_42 : f32 to vector<1x128xf32>
      %64 = arith.addf %61, %63 : vector<1x128xf32>
      %65 = math.rsqrt %64 : vector<1x128xf32>
      %66 = arith.mulf %62, %65 : vector<1x128xf32>
      %67 = vector.broadcast %66 : vector<1x128xf32> to vector<8x128xf32>
      %68 = arith.mulf %56, %67 : vector<8x128xf32>
      %c0_43 = arith.constant 0 : index
      %c0_44 = arith.constant 0 : index
      %69 = vector.load %arg7[%c0_43, %c0_44] : memref<1x128xf32, #tpu.memory_space<vmem>>, vector<1x128xf32>
      %70 = vector.broadcast %69 : vector<1x128xf32> to vector<8x128xf32>
      %71 = arith.addf %68, %70 : vector<8x128xf32>
      %cst_45 = arith.constant 0.000000e+00 : f32
      %72 = vector.broadcast %cst_45 : f32 to vector<8x128xf32>
      %73 = arith.maximumf %71, %72 : vector<8x128xf32>
      %74 = arith.truncf %73 : vector<8x128xf32> to vector<8x128xbf16>
      %c0_46 = arith.constant 0 : index
      %c0_47 = arith.constant 0 : index
      %75 = vector.load %arg8[%c0_46, %c0_47] : memref<128x128xbf16, #tpu.memory_space<vmem>>, vector<128x128xbf16>
      %cst_48 = arith.constant dense<0.000000e+00> : vector<8x128xf32>
      %76 = tpu.matmul %74, %75, %cst_48 {dimension_numbers = #tpu.dot_dimension_numbers<[1], [0], [0], [1], [0, 0, 1, 1], [], []>} : vector<8x128xbf16>, vector<128x128xbf16>, vector<8x128xf32> -> vector<8x128xf32>
      %c0_49 = arith.constant 0 : index
      %c0_50 = arith.constant 0 : index
      %77 = vector.load %arg9[%c0_49, %c0_50] : memref<1x128xf32, #tpu.memory_space<vmem>>, vector<1x128xf32>
      %78 = vector.broadcast %77 : vector<1x128xf32> to vector<8x128xf32>
      %79 = arith.addf %76, %78 : vector<8x128xf32>
      %c0_51 = arith.constant 0 : index
      %c0_52 = arith.constant 0 : index
      %80 = vector.load %arg10[%c0_51, %c0_52] : memref<8x128xf32, #tpu.memory_space<vmem>>, vector<8x128xf32>
      tpu.vector_store %arg10[%c0_51, %c0_52], %79 {strides = array<i32>} : memref<8x128xf32, #tpu.memory_space<vmem>>, vector<8x128xf32>,
    } else {
    }
    return
  }
  func.func @transform_0(%arg0: i32) -> (i32, i32) {
    %c0_i32 = arith.constant 0 : i32
    %c0_i32_0 = arith.constant 0 : i32
    return %arg0, %c0_i32 : i32, i32
  }
  func.func @transform_1(%arg0: i32) -> (i32, i32) {
    %c0_i32 = arith.constant 0 : i32
    %c0_i32_0 = arith.constant 0 : i32
    %c0_i32_1 = arith.constant 0 : i32
    return %c0_i32, %c0_i32_0 : i32, i32
  }
  func.func @transform_2(%arg0: i32) -> (i32, i32) {
    %c0_i32 = arith.constant 0 : i32
    %c0_i32_0 = arith.constant 0 : i32
    %c0_i32_1 = arith.constant 0 : i32
    return %c0_i32, %c0_i32_0 : i32, i32
  }
  func.func @transform_3(%arg0: i32) -> (i32, i32) {
    %c0_i32 = arith.constant 0 : i32
    %c0_i32_0 = arith.constant 0 : i32
    %c0_i32_1 = arith.constant 0 : i32
    return %c0_i32, %c0_i32_0 : i32, i32
  }
  func.func @transform_4(%arg0: i32) -> (i32, i32) {
    %c0_i32 = arith.constant 0 : i32
    %c0_i32_0 = arith.constant 0 : i32
    %c0_i32_1 = arith.constant 0 : i32
    return %c0_i32, %c0_i32_0 : i32, i32
  }
  func.func @transform_5(%arg0: i32) -> (i32, i32) {
    %c0_i32 = arith.constant 0 : i32
    %c0_i32_0 = arith.constant 0 : i32
    %c0_i32_1 = arith.constant 0 : i32
    return %c0_i32, %c0_i32_0 : i32, i32
  }
  func.func @transform_6(%arg0: i32) -> (i32, i32) {
    %c0_i32 = arith.constant 0 : i32
    %c0_i32_0 = arith.constant 0 : i32
    %c0_i32_1 = arith.constant 0 : i32
    return %c0_i32, %c0_i32_0 : i32, i32
  }
  func.func @transform_7(%arg0: i32) -> (i32, i32) {
    %c0_i32 = arith.constant 0 : i32
    %c0_i32_0 = arith.constant 0 : i32
    %c0_i32_1 = arith.constant 0 : i32
    return %c0_i32, %c0_i32_0 : i32, i32
  }
  func.func @transform_8(%arg0: i32) -> (i32, i32) {
    %c0_i32 = arith.constant 0 : i32
    %c0_i32_0 = arith.constant 0 : i32
    %c0_i32_1 = arith.constant 0 : i32
    return %c0_i32, %c0_i32_0 : i32, i32
  }
  func.func @transform_9(%arg0: i32) -> (i32, i32) {
    %c0_i32 = arith.constant 0 : i32
    %c0_i32_0 = arith.constant 0 : i32
    %c0_i32_1 = arith.constant 0 : i32
    return %c0_i32, %c0_i32_0 : i32, i32
  }
}

</mosaic_0001>

<llo_original>
// kernel: tpu_custom_call.1
$region0: #{tpu_custom_call.1}
  #allocation0 [shape = 'u32[]', space=smem, size = 0x4, offset = 0x4, fixed_abs, tag = 'smem constant byte address 0x4 - core index']
  #allocation1 [shape = 'u32[144,128]{1,0:T(1,128)}', space=vmem, size = 0x12000, scoped, tag = 'internal scratch']
  #allocation2 [shape = 'bf16[8,256]{1,0:T(8,128)(2,1)}', space=vmem, size = 0x1000, scoped, tag = 'scratch operand']
  #allocation3 [shape = 'f32[1,256]{1,0:T(1,128)}', space=vmem, size = 0x400, scoped, tag = 'scratch operand']
  #allocation4 [shape = 'f32[1,256]{1,0:T(1,128)}', space=vmem, size = 0x400, scoped, tag = 'scratch operand']
  %s0 = inlined_call_operand.hbm [shape: bf16[8,3200], index: 0, kind: input, shape index: {}]
  %s1 = inlined_call_operand.hbm [shape: bf16[3200,256], index: 1, kind: input, shape index: {}]
  %s2 = inlined_call_operand.hbm [shape: f32[1,256], index: 2, kind: input, shape index: {}]
  %s3 = inlined_call_operand.hbm [shape: f32[1,256], index: 3, kind: input, shape index: {}]
  %s4 = inlined_call_operand.hbm [shape: bf16[256,128], index: 4, kind: input, shape index: {}]
  %s5 = inlined_call_operand.hbm [shape: f32[1,128], index: 5, kind: input, shape index: {}]
  %s6 = inlined_call_operand.hbm [shape: f32[1,128], index: 6, kind: input, shape index: {}]
  %s7 = inlined_call_operand.hbm [shape: bf16[128,128], index: 7, kind: input, shape index: {}]
  %s8 = inlined_call_operand.hbm [shape: f32[1,128], index: 8, kind: input, shape index: {}]
  %s9 = inlined_call_operand.hbm [shape: f32[8,128], index: 9, kind: output, shape index: {}]
  %s10 = sld [smem:[#allocation0]]
  $region90: #{tpu_custom_call.1} parent=0
    _
  %s12 = ssub.s32 1, %s10
  %s13 = scalar_select 0, %s12, %s10
  $region1: #{tpu_custom_call.1} parent=0
    #allocation5 [shape = 'u8[51200]{0}', space=vmem, size = 0xc800, scoped, tag = 'input window, operand 0, single buffered']
    #allocation6 [shape = 's32[1]{0}', space=sflag, size = 0x4, scoped, tag = 'scoped memory for tpu_custom_call.1']
    #allocation7 [shape = 's32[1]{0}', space=sflag, size = 0x4, scoped, tag = 'scoped memory for tpu_custom_call.1']
    #allocation8 [shape = 'u8[1638400]{0}', space=vmem, size = 0x190000, scoped, tag = 'input window, operand 1, single buffered']
    #allocation9 [shape = 's32[1]{0}', space=sflag, size = 0x4, scoped, tag = 'scoped memory for tpu_custom_call.1']
    #allocation10 [shape = 'u8[1024]{0}', space=vmem, size = 0x400, scoped, tag = 'input window, operand 2, single buffered']
    #allocation11 [shape = 'u8[1024]{0}', space=vmem, size = 0x400, scoped, tag = 'input window, operand 3, single buffered']
    #allocation12 [shape = 's32[1]{0}', space=sflag, size = 0x4, scoped, tag = 'scoped memory for tpu_custom_call.1']
    #allocation13 [shape = 'u8[65536]{0}', space=vmem, size = 0x10000, scoped, tag = 'input window, operand 4, single buffered']
    #allocation14 [shape = 'u8[512]{0}', space=vmem, size = 0x400, scoped, tag = 'input window, operand 5, single buffered']
    #allocation15 [shape = 's32[1]{0}', space=sflag, size = 0x4, scoped, tag = 'scoped memory for tpu_custom_call.1']
    #allocation16 [shape = 'u8[512]{0}', space=vmem, size = 0x400, scoped, tag = 'input window, operand 6, single buffered']
    #allocation17 [shape = 'u8[32768]{0}', space=vmem, size = 0x8000, scoped, tag = 'input window, operand 7, single buffered']
    #allocation18 [shape = 's32[1]{0}', space=sflag, size = 0x4, scoped, tag = 'scoped memory for tpu_custom_call.1']
    #allocation19 [shape = 'u8[512]{0}', space=vmem, size = 0x400, scoped, tag = 'input window, operand 8, single buffered']
    #allocation20 [shape = 'u8[4096]{0}', space=vmem, size = 0x1000, scoped, tag = 'output window, operand 0, single buffered']
    %14 = vsyncpa [#allocation6], 0
    %15 = vsyncpa [#allocation9], 0
    %16 = vsyncpa [#allocation12], 0
    %17 = vsyncpa [#allocation15], 0
    %18 = vsyncpa [#allocation18], 0
    %19 = vsyncpa [#allocation7], 0
    // Predicated region
    $region2: #{tpu_custom_call.1} parent=1 // pred_check
      _
    $region3: #{tpu_custom_call.1} parent=1 // pred_check_branch
      %21 = sbr.rel (0) target = $region5
    $region4: #{tpu_custom_call.1} parent=1 // pred_region
      %s23 = ssub.s32 1600, 1600
      %24 = vsyncadd [#allocation6], %s23
      %s26 = sshll.u32 [#allocation5], 4
      %s27 = int_to_ptr.vmem [resolvable:$true] %s26
      %29 = dma.hbm_to_vmem [thread:$0]  %s0, 1600, %s27, [#allocation6]
    $region5: #{tpu_custom_call.1} parent=1 // pred_fallthru
      _
    // Predicated region
    $region6: #{tpu_custom_call.1} parent=1 // pred_check
      _
    $region7: #{tpu_custom_call.1} parent=1 // pred_check_branch
      %31 = sbr.rel (0) target = $region9
    $region8: #{tpu_custom_call.1} parent=1 // pred_region
      %s33 = ssub.s32 51200, 51200
      %34 = vsyncadd [#allocation9], %s33
      %s35 = sshll.u32 [#allocation8], 4
      %s36 = int_to_ptr.vmem [resolvable:$true] %s35
      %41 = dma.hbm_to_vmem [thread:$0]  %s1, 51200, %s36, [#allocation9], 128, 128, 8
    $region9: #{tpu_custom_call.1} parent=1 // pred_fallthru
      _
    // Predicated region
    $region10: #{tpu_custom_call.1} parent=1 // pred_check
      _
    $region11: #{tpu_custom_call.1} parent=1 // pred_check_branch
      %43 = sbr.rel (0) target = $region13
    $region12: #{tpu_custom_call.1} parent=1 // pred_region
      %s45 = ssub.s32 32, 32
      %46 = vsyncadd [#allocation9], %s45
      %s48 = sshll.u32 [#allocation10], 4
      %s49 = int_to_ptr.vmem [resolvable:$true] %s48
      %51 = dma.hbm_to_vmem [thread:$0]  %s2, 32, %s49, [#allocation9]
    $region13: #{tpu_custom_call.1} parent=1 // pred_fallthru
      _
    // Predicated region
    $region14: #{tpu_custom_call.1} parent=1 // pred_check
      _
    $region15: #{tpu_custom_call.1} parent=1 // pred_check_branch
      %53 = sbr.rel (0) target = $region17
    $region16: #{tpu_custom_call.1} parent=1 // pred_region
      %s55 = ssub.s32 32, 32
      %56 = vsyncadd [#allocation12], %s55
      %s58 = sshll.u32 [#allocation11], 4
      %s59 = int_to_ptr.vmem [resolvable:$true] %s58
      %61 = dma.hbm_to_vmem [thread:$0]  %s3, 32, %s59, [#allocation12]
    $region17: #{tpu_custom_call.1} parent=1 // pred_fallthru
      _
    // Predicated region
    $region18: #{tpu_custom_call.1} parent=1 // pred_check
      _
    $region19: #{tpu_custom_call.1} parent=1 // pred_check_branch
      %63 = sbr.rel (0) target = $region21
    $region20: #{tpu_custom_call.1} parent=1 // pred_region
      %s65 = ssub.s32 2048, 2048
      %66 = vsyncadd [#allocation12], %s65
      %s67 = sshll.u32 [#allocation13], 4
      %s68 = int_to_ptr.vmem [resolvable:$true] %s67
      %73 = dma.hbm_to_vmem [thread:$0]  %s4, 2048, %s68, [#allocation12], 64, 64, 4
    $region21: #{tpu_custom_call.1} parent=1 // pred_fallthru
      _
    // Predicated region
    $region22: #{tpu_custom_call.1} parent=1 // pred_check
      _
    $region23: #{tpu_custom_call.1} parent=1 // pred_check_branch
      %75 = sbr.rel (0) target = $region25
    $region24: #{tpu_custom_call.1} parent=1 // pred_region
      %s77 = ssub.s32 16, 16
      %78 = vsyncadd [#allocation15], %s77
      %s80 = sshll.u32 [#allocation14], 4
      %s81 = int_to_ptr.vmem [resolvable:$true] %s80
      %83 = dma.hbm_to_vmem [thread:$0]  %s5, 16, %s81, [#allocation15]
    $region25: #{tpu_custom_call.1} parent=1 // pred_fallthru
      _
    // Predicated region
    $region26: #{tpu_custom_call.1} parent=1 // pred_check
      _
    $region27: #{tpu_custom_call.1} parent=1 // pred_check_branch
      %85 = sbr.rel (0) target = $region29
    $region28: #{tpu_custom_call.1} parent=1 // pred_region
      %s87 = ssub.s32 16, 16
      %88 = vsyncadd [#allocation15], %s87
      %s90 = sshll.u32 [#allocation16], 4
      %s91 = int_to_ptr.vmem [resolvable:$true] %s90
      %93 = dma.hbm_to_vmem [thread:$0]  %s6, 16, %s91, [#allocation15]
    $region29: #{tpu_custom_call.1} parent=1 // pred_fallthru
      _
    // Predicated region
    $region30: #{tpu_custom_call.1} parent=1 // pred_check
      _
    $region31: #{tpu_custom_call.1} parent=1 // pred_check_branch
      %95 = sbr.rel (0) target = $region33
    $region32: #{tpu_custom_call.1} parent=1 // pred_region
      %s97 = ssub.s32 1024, 1024
      %98 = vsyncadd [#allocation18], %s97
      %s99 = sshll.u32 [#allocation17], 4
      %s100 = int_to_ptr.vmem [resolvable:$true] %s99
      %105 = dma.hbm_to_vmem [thread:$0]  %s7, 1024, %s100, [#allocation18], 64, 64, 4
    $region33: #{tpu_custom_call.1} parent=1 // pred_fallthru
      _
    // Predicated region
    $region34: #{tpu_custom_call.1} parent=1 // pred_check
      _
    $region35: #{tpu_custom_call.1} parent=1 // pred_check_branch
      %107 = sbr.rel (0) target = $region37
    $region36: #{tpu_custom_call.1} parent=1 // pred_region
      %s109 = ssub.s32 16, 16
      %110 = vsyncadd [#allocation18], %s109
      %s112 = sshll.u32 [#allocation19], 4
      %s113 = int_to_ptr.vmem [resolvable:$true] %s112
      %115 = dma.hbm_to_vmem [thread:$0]  %s8, 16, %s113, [#allocation18]
    $region37: #{tpu_custom_call.1} parent=1 // pred_fallthru
      _
    // Predicated region
    $region38: #{tpu_custom_call.1} parent=1 // pred_check
      _
    $region39: #{tpu_custom_call.1} parent=1 // pred_check_branch
      %117 = sbr.rel (0) target = $region41
    $region40: #{tpu_custom_call.1} parent=1 // pred_region
      %118 = dma.done [#allocation6], 1600
    $region41: #{tpu_custom_call.1} parent=1 // pred_fallthru
      _
    // Predicated region
    $region42: #{tpu_custom_call.1} parent=1 // pred_check
      _
    $region43: #{tpu_custom_call.1} parent=1 // pred_check_branch
      %120 = sbr.rel (0) target = $region45
    $region44: #{tpu_custom_call.1} parent=1 // pred_region
      %121 = dma.done [#allocation9], 51200
    $region45: #{tpu_custom_call.1} parent=1 // pred_fallthru
      _
    // Predicated region
    $region46: #{tpu_custom_call.1} parent=1 // pred_check
      _
    $region47: #{tpu_custom_call.1} parent=1 // pred_check_branch
      %123 = sbr.rel (0) target = $region49
    $region48: #{tpu_custom_call.1} parent=1 // pred_region
      %124 = dma.done [#allocation9], 32
    $region49: #{tpu_custom_call.1} parent=1 // pred_fallthru
      _
    // Predicated region
    $region50: #{tpu_custom_call.1} parent=1 // pred_check
      _
    $region51: #{tpu_custom_call.1} parent=1 // pred_check_branch
      %126 = sbr.rel (0) target = $region53
    $region52: #{tpu_custom_call.1} parent=1 // pred_region
      %127 = dma.done [#allocation12], 32
    $region53: #{tpu_custom_call.1} parent=1 // pred_fallthru
      _
    // Predicated region
    $region54: #{tpu_custom_call.1} parent=1 // pred_check
      _
    $region55: #{tpu_custom_call.1} parent=1 // pred_check_branch
      %129 = sbr.rel (0) target = $region57
    $region56: #{tpu_custom_call.1} parent=1 // pred_region
      %130 = dma.done [#allocation12], 2048
    $region57: #{tpu_custom_call.1} parent=1 // pred_fallthru
      _
    // Predicated region
    $region58: #{tpu_custom_call.1} parent=1 // pred_check
      _
    $region59: #{tpu_custom_call.1} parent=1 // pred_check_branch
      %132 = sbr.rel (0) target = $region61
    $region60: #{tpu_custom_call.1} parent=1 // pred_region
      %133 = dma.done [#allocation15], 16
    $region61: #{tpu_custom_call.1} parent=1 // pred_fallthru
      _
    // Predicated region
    $region62: #{tpu_custom_call.1} parent=1 // pred_check
      _
    $region63: #{tpu_custom_call.1} parent=1 // pred_check_branch
      %135 = sbr.rel (0) target = $region65
    $region64: #{tpu_custom_call.1} parent=1 // pred_region
      %136 = dma.done [#allocation15], 16
    $region65: #{tpu_custom_call.1} parent=1 // pred_fallthru
      _
    // Predicated region
    $region66: #{tpu_custom_call.1} parent=1 // pred_check
      _
    $region67: #{tpu_custom_call.1} parent=1 // pred_check_branch
      %138 = sbr.rel (0) target = $region69
    $region68: #{tpu_custom_call.1} parent=1 // pred_region
      %139 = dma.done [#allocation18], 1024
    $region69: #{tpu_custom_call.1} parent=1 // pred_fallthru
      _
    // Predicated region
    $region70: #{tpu_custom_call.1} parent=1 // pred_check
      _
    $region71: #{tpu_custom_call.1} parent=1 // pred_check_branch
      %141 = sbr.rel (0) target = $region73
    $region72: #{tpu_custom_call.1} parent=1 // pred_region
      %142 = dma.done [#allocation18], 16
    $region73: #{tpu_custom_call.1} parent=1 // pred_fallthru
      _
    %p144 = scmp.eq.s32.totalorder 0, 0
    // Predicated region
    $region74: #{tpu_custom_call.1} parent=1 // pred_check
      %p145 = pneg %p144
    $region75: #{tpu_custom_call.1} parent=1 // pred_check_branch
      %147 = sbr.rel (%p145) target = $region77
    $region76: #{tpu_custom_call.1} parent=1 // pred_region
      %v148 = vlaneseq
      %vm149 = vcmp.ge.s32.totalorder %v148, 0
      %vm150 = vcmp.lt.s32.totalorder %v148, 256
      %vm151 = vmand %vm149, %vm150
      %152 = vst.msk [vmem:[#allocation3] sm:$0x3] %vm151, 0.0
      %153 = vst.msk [vmem:[#allocation4] sm:$0x3] %vm151, 0.0
    $region77: #{tpu_custom_call.1} parent=1 // pred_fallthru
      _
    %v154 = vld [vmem:[#allocation5] sm:$0xff]
    %v155 = vld [vmem:[#allocation5 + $0x8] sm:$0xff]
    %v156 = vld [vmem:[#allocation5 + $0x10] sm:$0xff]
    %v157 = vld [vmem:[#allocation5 + $0x18] sm:$0xff]
    %v158 = vld [vmem:[#allocation5 + $0x20] sm:$0xff]
    %v159 = vld [vmem:[#allocation5 + $0x28] sm:$0xff]
    %v160 = vld [vmem:[#allocation5 + $0x30] sm:$0xff]
    %v161 = vld [vmem:[#allocation5 + $0x38] sm:$0xff]
    %v162 = vld [vmem:[#allocation5 + $0x40] sm:$0xff]
    %v163 = vld [vmem:[#allocation5 + $0x48] sm:$0xff]
    %v164 = vld [vmem:[#allocation5 + $0x50] sm:$0xff]
    %v165 = vld [vmem:[#allocation5 + $0x58] sm:$0xff]
    %v166 = vld [vmem:[#allocation5 + $0x60] sm:$0xf]
    %v167 = vld [vmem:[#allocation8] sm:$0xff]
    %v168 = vld [vmem:[#allocation8 + $0x8] sm:$0xff]
    %v169 = vld [vmem:[#allocation8 + $0x10] sm:$0xff]
    %v170 = vld [vmem:[#allocation8 + $0x18] sm:$0xff]
    %v171 = vld [vmem:[#allocation8 + $0x20] sm:$0xff]
    %v172 = vld [vmem:[#allocation8 + $0x28] sm:$0xff]
    %v173 = vld [vmem:[#allocation8 + $0x30] sm:$0xff]
    %v174 = vld [vmem:[#allocation8 + $0x38] sm:$0xff]
    %v175 = vld [vmem:[#allocation8 + $0x40] sm:$0xff]
    %v176 = vld [vmem:[#allocation8 + $0x48] sm:$0xff]
    %v177 = vld [vmem:[#allocation8 + $0x50] sm:$0xff]
    %v178 = vld [vmem:[#allocation8 + $0x58] sm:$0xff]
    %v179 = vld [vmem:[#allocation8 + $0x60] sm:$0xff]
    %v180 = vld [vmem:[#allocation8 + $0x68] sm:$0xff]
    %v181 = vld [vmem:[#allocation8 + $0x70] sm:$0xff]
    %v182 = vld [vmem:[#allocation8 + $0x78] sm:$0xff]
    %v183 = vld [vmem:[#allocation8 + $0x80] sm:$0xff]
    %v184 = vld [vmem:[#allocation8 + $0x88] sm:$0xff]
    %v185 = vld [vmem:[#allocation8 + $0x90] sm:$0xff]
    %v186 = vld [vmem:[#allocation8 + $0x98] sm:$0xff]
    %v187 = vld [vmem:[#allocation8 + $0xa0] sm:$0xff]
    %v188 = vld [vmem:[#allocation8 + $0xa8] sm:$0xff]
    %v189 = vld [vmem:[#allocation8 + $0xb0] sm:$0xff]
    %v190 = vld [vmem:[#allocation8 + $0xb8] sm:$0xff]
    %v191 = vld [vmem:[#allocation8 + $0xc0] sm:$0xff]
    %v192 = vld [vmem:[#allocation8 + $0xc8] sm:$0xff]
    %v193 = vld [vmem:[#allocation8 + $0xd0] sm:$0xff]
    %v194 = vld [vmem:[#allocation8 + $0xd8] sm:$0xff]
    %v195 = vld [vmem:[#allocation8 + $0xe0] sm:$0xff]
    %v196 = vld [vmem:[#allocation8 + $0xe8] sm:$0xff]
    %v197 = vld [vmem:[#allocation8 + $0xf0] sm:$0xff]
    %v198 = vld [vmem:[#allocation8 + $0xf8] sm:$0xff]
    %v199 = vld [vmem:[#allocation8 + $0x100] sm:$0xff]
    %v200 = vld [vmem:[#allocation8 + $0x108] sm:$0xff]
    %v201 = vld [vmem:[#allocation8 + $0x110] sm:$0xff]
    %v202 = vld [vmem:[#allocation8 + $0x118] sm:$0xff]
    %v203 = vld [vmem:[#allocation8 + $0x120] sm:$0xff]
    %v204 = vld [vmem:[#allocation8 + $0x128] sm:$0xff]
    %v205 = vld [vmem:[#allocation8 + $0x130] sm:$0xff]
    %v206 = vld [vmem:[#allocation8 + $0x138] sm:$0xff]
    %v207 = vld [vmem:[#allocation8 + $0x140] sm:$0xff]
    %v208 = vld [vmem:[#allocation8 + $0x148] sm:$0xff]
    %v209 = vld [vmem:[#allocation8 + $0x150] sm:$0xff]
    %v210 = vld [vmem:[#allocation8 + $0x158] sm:$0xff]
    %v211 = vld [vmem:[#allocation8 + $0x160] sm:$0xff]
    %v212 = vld [vmem:[#allocation8 + $0x168] sm:$0xff]
    %v213 = vld [vmem:[#allocation8 + $0x170] sm:$0xff]
    %v214 = vld [vmem:[#allocation8 + $0x178] sm:$0xff]
    %v215 = vld [vmem:[#allocation8 + $0x180] sm:$0xff]
    %v216 = vld [vmem:[#allocation8 + $0x188] sm:$0xff]
    %v217 = vld [vmem:[#allocation8 + $0x190] sm:$0xff]
    %v218 = vld [vmem:[#allocation8 + $0x198] sm:$0xff]
    %v219 = vld [vmem:[#allocation8 + $0x1a0] sm:$0xff]
    %v220 = vld [vmem:[#allocation8 + $0x1a8] sm:$0xff]
    %v221 = vld [vmem:[#allocation8 + $0x1b0] sm:$0xff]
    %v222 = vld [vmem:[#allocation8 + $0x1b8] sm:$0xff]
    %v223 = vld [vmem:[#allocation8 + $0x1c0] sm:$0xff]
    %v224 = vld [vmem:[#allocation8 + $0x1c8] sm:$0xff]
    %v225 = vld [vmem:[#allocation8 + $0x1d0] sm:$0xff]
    %v226 = vld [vmem:[#allocation8 + $0x1d8] sm:$0xff]
    %v227 = vld [vmem:[#allocation8 + $0x1e0] sm:$0xff]
    %v228 = vld [vmem:[#allocation8 + $0x1e8] sm:$0xff]
    %v229 = vld [vmem:[#allocation8 + $0x1f0] sm:$0xff]
    %v230 = vld [vmem:[#allocation8 + $0x1f8] sm:$0xff]
    %v231 = vld [vmem:[#allocation8 + $0x200] sm:$0xff]
    %v232 = vld [vmem:[#allocation8 + $0x208] sm:$0xff]
    %v233 = vld [vmem:[#allocation8 + $0x210] sm:$0xff]
    %v234 = vld [vmem:[#allocation8 + $0x218] sm:$0xff]
    %v235 = vld [vmem:[#allocation8 + $0x220] sm:$0xff]
    %v236 = vld [vmem:[#allocation8 + $0x228] sm:$0xff]
    %v237 = vld [vmem:[#allocation8 + $0x230] sm:$0xff]
    %v238 = vld [vmem:[#allocation8 + $0x238] sm:$0xff]
    %v239 = vld [vmem:[#allocation8 + $0x240] sm:$0xff]
    %v240 = vld [vmem:[#allocation8 + $0x248] sm:$0xff]
    %v241 = vld [vmem:[#allocation8 + $0x250] sm:$0xff]
    %v242 = vld [vmem:[#allocation8 + $0x258] sm:$0xff]
    %v243 = vld [vmem:[#allocation8 + $0x260] sm:$0xff]
    %v244 = vld [vmem:[#allocation8 + $0x268] sm:$0xff]
    %v245 = vld [vmem:[#allocation8 + $0x270] sm:$0xff]
    %v246 = vld [vmem:[#allocation8 + $0x278] sm:$0xff]
    %v247 = vld [vmem:[#allocation8 + $0x280] sm:$0xff]
    %v248 = vld [vmem:[#allocation8 + $0x288] sm:$0xff]
    %v249 = vld [vmem:[#allocation8 + $0x290] sm:$0xff]
    %v250 = vld [vmem:[#allocation8 + $0x298] sm:$0xff]
    %v251 = vld [vmem:[#allocation8 + $0x2a0] sm:$0xff]
    %v252 = vld [vmem:[#allocation8 + $0x2a8] sm:$0xff]
    %v253 = vld [vmem:[#allocation8 + $0x2b0] sm:$0xff]
    %v254 = vld [vmem:[#allocation8 + $0x2b8] sm:$0xff]
    %v255 = vld [vmem:[#allocation8 + $0x2c0] sm:$0xff]
    %v256 = vld [vmem:[#allocation8 + $0x2c8] sm:$0xff]
    %v257 = vld [vmem:[#allocation8 + $0x2d0] sm:$0xff]
    %v258 = vld [vmem:[#allocation8 + $0x2d8] sm:$0xff]
    %v259 = vld [vmem:[#allocation8 + $0x2e0] sm:$0xff]
    %v260 = vld [vmem:[#allocation8 + $0x2e8] sm:$0xff]
    %v261 = vld [vmem:[#allocation8 + $0x2f0] sm:$0xff]
    %v262 = vld [vmem:[#allocation8 + $0x2f8] sm:$0xff]
    %v263 = vld [vmem:[#allocation8 + $0x300] sm:$0xff]
    %v264 = vld [vmem:[#allocation8 + $0x308] sm:$0xff]
    %v265 = vld [vmem:[#allocation8 + $0x310] sm:$0xff]
    %v266 = vld [vmem:[#allocation8 + $0x318] sm:$0xff]
    %v267 = vld [vmem:[#allocation8 + $0x320] sm:$0xff]
    %v268 = vld [vmem:[#allocation8 + $0x328] sm:$0xff]
    %v269 = vld [vmem:[#allocation8 + $0x330] sm:$0xff]
    %v270 = vld [vmem:[#allocation8 + $0x338] sm:$0xff]
    %v271 = vld [vmem:[#allocation8 + $0x340] sm:$0xff]
    %v272 = vld [vmem:[#allocation8 + $0x348] sm:$0xff]
    %v273 = vld [vmem:[#allocation8 + $0x350] sm:$0xff]
    %v274 = vld [vmem:[#allocation8 + $0x358] sm:$0xff]
    %v275 = vld [vmem:[#allocation8 + $0x360] sm:$0xff]
    %v276 = vld [vmem:[#allocation8 + $0x368] sm:$0xff]
    %v277 = vld [vmem:[#allocation8 + $0x370] sm:$0xff]
    %v278 = vld [vmem:[#allocation8 + $0x378] sm:$0xff]
    %v279 = vld [vmem:[#allocation8 + $0x380] sm:$0xff]
    %v280 = vld [vmem:[#allocation8 + $0x388] sm:$0xff]
    %v281 = vld [vmem:[#allocation8 + $0x390] sm:$0xff]
    %v282 = vld [vmem:[#allocation8 + $0x398] sm:$0xff]
    %v283 = vld [vmem:[#allocation8 + $0x3a0] sm:$0xff]
    %v284 = vld [vmem:[#allocation8 + $0x3a8] sm:$0xff]
    %v285 = vld [vmem:[#allocation8 + $0x3b0] sm:$0xff]
    %v286 = vld [vmem:[#allocation8 + $0x3b8] sm:$0xff]
    %v287 = vld [vmem:[#allocation8 + $0x3c0] sm:$0xff]
    %v288 = vld [vmem:[#allocation8 + $0x3c8] sm:$0xff]
    %v289 = vld [vmem:[#allocation8 + $0x3d0] sm:$0xff]
    %v290 = vld [vmem:[#allocation8 + $0x3d8] sm:$0xff]
    %v291 = vld [vmem:[#allocation8 + $0x3e0] sm:$0xff]
    %v292 = vld [vmem:[#allocation8 + $0x3e8] sm:$0xff]
    %v293 = vld [vmem:[#allocation8 + $0x3f0] sm:$0xff]
    %v294 = vld [vmem:[#allocation8 + $0x3f8] sm:$0xff]
    %v295 = vld [vmem:[#allocation8 + $0x400] sm:$0xff]
    %v296 = vld [vmem:[#allocation8 + $0x408] sm:$0xff]
    %v297 = vld [vmem:[#allocation8 + $0x410] sm:$0xff]
    %v298 = vld [vmem:[#allocation8 + $0x418] sm:$0xff]
    %v299 = vld [vmem:[#allocation8 + $0x420] sm:$0xff]
    %v300 = vld [vmem:[#allocation8 + $0x428] sm:$0xff]
    %v301 = vld [vmem:[#allocation8 + $0x430] sm:$0xff]
    %v302 = vld [vmem:[#allocation8 + $0x438] sm:$0xff]
    %v303 = vld [vmem:[#allocation8 + $0x440] sm:$0xff]
    %v304 = vld [vmem:[#allocation8 + $0x448] sm:$0xff]
    %v305 = vld [vmem:[#allocation8 + $0x450] sm:$0xff]
    %v306 = vld [vmem:[#allocation8 + $0x458] sm:$0xff]
    %v307 = vld [vmem:[#allocation8 + $0x460] sm:$0xff]
    %v308 = vld [vmem:[#allocation8 + $0x468] sm:$0xff]
    %v309 = vld [vmem:[#allocation8 + $0x470] sm:$0xff]
    %v310 = vld [vmem:[#allocation8 + $0x478] sm:$0xff]
    %v311 = vld [vmem:[#allocation8 + $0x480] sm:$0xff]
    %v312 = vld [vmem:[#allocation8 + $0x488] sm:$0xff]
    %v313 = vld [vmem:[#allocation8 + $0x490] sm:$0xff]
    %v314 = vld [vmem:[#allocation8 + $0x498] sm:$0xff]
    %v315 = vld [vmem:[#allocation8 + $0x4a0] sm:$0xff]
    %v316 = vld [vmem:[#allocation8 + $0x4a8] sm:$0xff]
    %v317 = vld [vmem:[#allocation8 + $0x4b0] sm:$0xff]
    %v318 = vld [vmem:[#allocation8 + $0x4b8] sm:$0xff]
    %v319 = vld [vmem:[#allocation8 + $0x4c0] sm:$0xff]
    %v320 = vld [vmem:[#allocation8 + $0x4c8] sm:$0xff]
    %v321 = vld [vmem:[#allocation8 + $0x4d0] sm:$0xff]
    %v322 = vld [vmem:[#allocation8 + $0x4d8] sm:$0xff]
    %v323 = vld [vmem:[#allocation8 + $0x4e0] sm:$0xff]
    %v324 = vld [vmem:[#allocation8 + $0x4e8] sm:$0xff]
    %v325 = vld [vmem:[#allocation8 + $0x4f0] sm:$0xff]
    %v326 = vld [vmem:[#allocation8 + $0x4f8] sm:$0xff]
    %v327 = vld [vmem:[#allocation8 + $0x500] sm:$0xff]
    %v328 = vld [vmem:[#allocation8 + $0x508] sm:$0xff]
    %v329 = vld [vmem:[#allocation8 + $0x510] sm:$0xff]
    %v330 = vld [vmem:[#allocation8 + $0x518] sm:$0xff]
    %v331 = vld [vmem:[#allocation8 + $0x520] sm:$0xff]
    %v332 = vld [vmem:[#allocation8 + $0x528] sm:$0xff]
    %v333 = vld [vmem:[#allocation8 + $0x530] sm:$0xff]
    %v334 = vld [vmem:[#allocation8 + $0x538] sm:$0xff]
    %v335 = vld [vmem:[#allocation8 + $0x540] sm:$0xff]
    %v336 = vld [vmem:[#allocation8 + $0x548] sm:$0xff]
    %v337 = vld [vmem:[#allocation8 + $0x550] sm:$0xff]
    %v338 = vld [vmem:[#allocation8 + $0x558] sm:$0xff]
    %v339 = vld [vmem:[#allocation8 + $0x560] sm:$0xff]
    %v340 = vld [vmem:[#allocation8 + $0x568] sm:$0xff]
    %v341 = vld [vmem:[#allocation8 + $0x570] sm:$0xff]
    %v342 = vld [vmem:[#allocation8 + $0x578] sm:$0xff]
    %v343 = vld [vmem:[#allocation8 + $0x580] sm:$0xff]
    %v344 = vld [vmem:[#allocation8 + $0x588] sm:$0xff]
    %v345 = vld [vmem:[#allocation8 + $0x590] sm:$0xff]
    %v346 = vld [vmem:[#allocation8 + $0x598] sm:$0xff]
    %v347 = vld [vmem:[#allocation8 + $0x5a0] sm:$0xff]
    %v348 = vld [vmem:[#allocation8 + $0x5a8] sm:$0xff]
    %v349 = vld [vmem:[#allocation8 + $0x5b0] sm:$0xff]
    %v350 = vld [vmem:[#allocation8 + $0x5b8] sm:$0xff]
    %v351 = vld [vmem:[#allocation8 + $0x5c0] sm:$0xff]
    %v352 = vld [vmem:[#allocation8 + $0x5c8] sm:$0xff]
    %v353 = vld [vmem:[#allocation8 + $0x5d0] sm:$0xff]
    %v354 = vld [vmem:[#allocation8 + $0x5d8] sm:$0xff]
    %v355 = vld [vmem:[#allocation8 + $0x5e0] sm:$0xff]
    %v356 = vld [vmem:[#allocation8 + $0x5e8] sm:$0xff]
    %v357 = vld [vmem:[#allocation8 + $0x5f0] sm:$0xff]
    %v358 = vld [vmem:[#allocation8 + $0x5f8] sm:$0xff]
    %v359 = vld [vmem:[#allocation8 + $0x600] sm:$0xff]
    %v360 = vld [vmem:[#allocation8 + $0x608] sm:$0xff]
    %v361 = vld [vmem:[#allocation8 + $0x610] sm:$0xff]
    %v362 = vld [vmem:[#allocation8 + $0x618] sm:$0xff]
    %v363 = vld [vmem:[#allocation8 + $0x620] sm:$0xff]
    %v364 = vld [vmem:[#allocation8 + $0x628] sm:$0xff]
    %v365 = vld [vmem:[#allocation8 + $0x630] sm:$0xff]
    %v366 = vld [vmem:[#allocation8 + $0x638] sm:$0xff]
    %v367 = vld [vmem:[#allocation8 + $0x640] sm:$0xff]
    %v368 = vld [vmem:[#allocation8 + $0x648] sm:$0xff]
    %v369 = vld [vmem:[#allocation8 + $0x650] sm:$0xff]
    %v370 = vld [vmem:[#allocation8 + $0x658] sm:$0xff]
    %v371 = vld [vmem:[#allocation8 + $0x660] sm:$0xff]
    %v372 = vld [vmem:[#allocation8 + $0x668] sm:$0xff]
    %v373 = vld [vmem:[#allocation8 + $0x670] sm:$0xff]
    %v374 = vld [vmem:[#allocation8 + $0x678] sm:$0xff]
    %v375 = vld [vmem:[#allocation8 + $0x680] sm:$0xff]
    %v376 = vld [vmem:[#allocation8 + $0x688] sm:$0xff]
    %v377 = vld [vmem:[#allocation8 + $0x690] sm:$0xff]
    %v378 = vld [vmem:[#allocation8 + $0x698] sm:$0xff]
    %v379 = vld [vmem:[#allocation8 + $0x6a0] sm:$0xff]
    %v380 = vld [vmem:[#allocation8 + $0x6a8] sm:$0xff]
    %v381 = vld [vmem:[#allocation8 + $0x6b0] sm:$0xff]
    %v382 = vld [vmem:[#allocation8 + $0x6b8] sm:$0xff]
    %v383 = vld [vmem:[#allocation8 + $0x6c0] sm:$0xff]
    %v384 = vld [vmem:[#allocation8 + $0x6c8] sm:$0xff]
    %v385 = vld [vmem:[#allocation8 + $0x6d0] sm:$0xff]
    %v386 = vld [vmem:[#allocation8 + $0x6d8] sm:$0xff]
    %v387 = vld [vmem:[#allocation8 + $0x6e0] sm:$0xff]
    %v388 = vld [vmem:[#allocation8 + $0x6e8] sm:$0xff]
    %v389 = vld [vmem:[#allocation8 + $0x6f0] sm:$0xff]
    %v390 = vld [vmem:[#allocation8 + $0x6f8] sm:$0xff]
    %v391 = vld [vmem:[#allocation8 + $0x700] sm:$0xff]
    %v392 = vld [vmem:[#allocation8 + $0x708] sm:$0xff]
    %v393 = vld [vmem:[#allocation8 + $0x710] sm:$0xff]
    %v394 = vld [vmem:[#allocation8 + $0x718] sm:$0xff]
    %v395 = vld [vmem:[#allocation8 + $0x720] sm:$0xff]
    %v396 = vld [vmem:[#allocation8 + $0x728] sm:$0xff]
    %v397 = vld [vmem:[#allocation8 + $0x730] sm:$0xff]
    %v398 = vld [vmem:[#allocation8 + $0x738] sm:$0xff]
    %v399 = vld [vmem:[#allocation8 + $0x740] sm:$0xff]
    %v400 = vld [vmem:[#allocation8 + $0x748] sm:$0xff]
    %v401 = vld [vmem:[#allocation8 + $0x750] sm:$0xff]
    %v402 = vld [vmem:[#allocation8 + $0x758] sm:$0xff]
    %v403 = vld [vmem:[#allocation8 + $0x760] sm:$0xff]
    %v404 = vld [vmem:[#allocation8 + $0x768] sm:$0xff]
    %v405 = vld [vmem:[#allocation8 + $0x770] sm:$0xff]
    %v406 = vld [vmem:[#allocation8 + $0x778] sm:$0xff]
    %v407 = vld [vmem:[#allocation8 + $0x780] sm:$0xff]
    %v408 = vld [vmem:[#allocation8 + $0x788] sm:$0xff]
    %v409 = vld [vmem:[#allocation8 + $0x790] sm:$0xff]
    %v410 = vld [vmem:[#allocation8 + $0x798] sm:$0xff]
    %v411 = vld [vmem:[#allocation8 + $0x7a0] sm:$0xff]
    %v412 = vld [vmem:[#allocation8 + $0x7a8] sm:$0xff]
    %v413 = vld [vmem:[#allocation8 + $0x7b0] sm:$0xff]
    %v414 = vld [vmem:[#allocation8 + $0x7b8] sm:$0xff]
    %v415 = vld [vmem:[#allocation8 + $0x7c0] sm:$0xff]
    %v416 = vld [vmem:[#allocation8 + $0x7c8] sm:$0xff]
    %v417 = vld [vmem:[#allocation8 + $0x7d0] sm:$0xff]
    %v418 = vld [vmem:[#allocation8 + $0x7d8] sm:$0xff]
    %v419 = vld [vmem:[#allocation8 + $0x7e0] sm:$0xff]
    %v420 = vld [vmem:[#allocation8 + $0x7e8] sm:$0xff]
    %v421 = vld [vmem:[#allocation8 + $0x7f0] sm:$0xff]
    %v422 = vld [vmem:[#allocation8 + $0x7f8] sm:$0xff]
    %v423 = vld [vmem:[#allocation8 + $0x800] sm:$0xff]
    %v424 = vld [vmem:[#allocation8 + $0x808] sm:$0xff]
    %v425 = vld [vmem:[#allocation8 + $0x810] sm:$0xff]
    %v426 = vld [vmem:[#allocation8 + $0x818] sm:$0xff]
    %v427 = vld [vmem:[#allocation8 + $0x820] sm:$0xff]
    %v428 = vld [vmem:[#allocation8 + $0x828] sm:$0xff]
    %v429 = vld [vmem:[#allocation8 + $0x830] sm:$0xff]
    %v430 = vld [vmem:[#allocation8 + $0x838] sm:$0xff]
    %v431 = vld [vmem:[#allocation8 + $0x840] sm:$0xff]
    %v432 = vld [vmem:[#allocation8 + $0x848] sm:$0xff]
    %v433 = vld [vmem:[#allocation8 + $0x850] sm:$0xff]
    %v434 = vld [vmem:[#allocation8 + $0x858] sm:$0xff]
    %v435 = vld [vmem:[#allocation8 + $0x860] sm:$0xff]
    %v436 = vld [vmem:[#allocation8 + $0x868] sm:$0xff]
    %v437 = vld [vmem:[#allocation8 + $0x870] sm:$0xff]
    %v438 = vld [vmem:[#allocation8 + $0x878] sm:$0xff]
    %v439 = vld [vmem:[#allocation8 + $0x880] sm:$0xff]
    %v440 = vld [vmem:[#allocation8 + $0x888] sm:$0xff]
    %v441 = vld [vmem:[#allocation8 + $0x890] sm:$0xff]
    %v442 = vld [vmem:[#allocation8 + $0x898] sm:$0xff]
    %v443 = vld [vmem:[#allocation8 + $0x8a0] sm:$0xff]
    %v444 = vld [vmem:[#allocation8 + $0x8a8] sm:$0xff]
    %v445 = vld [vmem:[#allocation8 + $0x8b0] sm:$0xff]
    %v446 = vld [vmem:[#allocation8 + $0x8b8] sm:$0xff]
    %v447 = vld [vmem:[#allocation8 + $0x8c0] sm:$0xff]
    %v448 = vld [vmem:[#allocation8 + $0x8c8] sm:$0xff]
    %v449 = vld [vmem:[#allocation8 + $0x8d0] sm:$0xff]
    %v450 = vld [vmem:[#allocation8 + $0x8d8] sm:$0xff]
    %v451 = vld [vmem:[#allocation8 + $0x8e0] sm:$0xff]
    %v452 = vld [vmem:[#allocation8 + $0x8e8] sm:$0xff]
    %v453 = vld [vmem:[#allocation8 + $0x8f0] sm:$0xff]
    %v454 = vld [vmem:[#allocation8 + $0x8f8] sm:$0xff]
    %v455 = vld [vmem:[#allocation8 + $0x900] sm:$0xff]
    %v456 = vld [vmem:[#allocation8 + $0x908] sm:$0xff]
    %v457 = vld [vmem:[#allocation8 + $0x910] sm:$0xff]
    %v458 = vld [vmem:[#allocation8 + $0x918] sm:$0xff]
    %v459 = vld [vmem:[#allocation8 + $0x920] sm:$0xff]
    %v460 = vld [vmem:[#allocation8 + $0x928] sm:$0xff]
    %v461 = vld [vmem:[#allocation8 + $0x930] sm:$0xff]
    %v462 = vld [vmem:[#allocation8 + $0x938] sm:$0xff]
    %v463 = vld [vmem:[#allocation8 + $0x940] sm:$0xff]
    %v464 = vld [vmem:[#allocation8 + $0x948] sm:$0xff]
    %v465 = vld [vmem:[#allocation8 + $0x950] sm:$0xff]
    %v466 = vld [vmem:[#allocation8 + $0x958] sm:$0xff]
    %v467 = vld [vmem:[#allocation8 + $0x960] sm:$0xff]
    %v468 = vld [vmem:[#allocation8 + $0x968] sm:$0xff]
    %v469 = vld [vmem:[#allocation8 + $0x970] sm:$0xff]
    %v470 = vld [vmem:[#allocation8 + $0x978] sm:$0xff]
    %v471 = vld [vmem:[#allocation8 + $0x980] sm:$0xff]
    %v472 = vld [vmem:[#allocation8 + $0x988] sm:$0xff]
    %v473 = vld [vmem:[#allocation8 + $0x990] sm:$0xff]
    %v474 = vld [vmem:[#allocation8 + $0x998] sm:$0xff]
    %v475 = vld [vmem:[#allocation8 + $0x9a0] sm:$0xff]
    %v476 = vld [vmem:[#allocation8 + $0x9a8] sm:$0xff]
    %v477 = vld [vmem:[#allocation8 + $0x9b0] sm:$0xff]
    %v478 = vld [vmem:[#allocation8 + $0x9b8] sm:$0xff]
    %v479 = vld [vmem:[#allocation8 + $0x9c0] sm:$0xff]
    %v480 = vld [vmem:[#allocation8 + $0x9c8] sm:$0xff]
    %v481 = vld [vmem:[#allocation8 + $0x9d0] sm:$0xff]
    %v482 = vld [vmem:[#allocation8 + $0x9d8] sm:$0xff]
    %v483 = vld [vmem:[#allocation8 + $0x9e0] sm:$0xff]
    %v484 = vld [vmem:[#allocation8 + $0x9e8] sm:$0xff]
    %v485 = vld [vmem:[#allocation8 + $0x9f0] sm:$0xff]
    %v486 = vld [vmem:[#allocation8 + $0x9f8] sm:$0xff]
    %v487 = vld [vmem:[#allocation8 + $0xa00] sm:$0xff]
    %v488 = vld [vmem:[#allocation8 + $0xa08] sm:$0xff]
    %v489 = vld [vmem:[#allocation8 + $0xa10] sm:$0xff]
    %v490 = vld [vmem:[#allocation8 + $0xa18] sm:$0xff]
    %v491 = vld [vmem:[#allocation8 + $0xa20] sm:$0xff]
    %v492 = vld [vmem:[#allocation8 + $0xa28] sm:$0xff]
    %v493 = vld [vmem:[#allocation8 + $0xa30] sm:$0xff]
    %v494 = vld [vmem:[#allocation8 + $0xa38] sm:$0xff]
    %v495 = vld [vmem:[#allocation8 + $0xa40] sm:$0xff]
    %v496 = vld [vmem:[#allocation8 + $0xa48] sm:$0xff]
    %v497 = vld [vmem:[#allocation8 + $0xa50] sm:$0xff]
    %v498 = vld [vmem:[#allocation8 + $0xa58] sm:$0xff]
    %v499 = vld [vmem:[#allocation8 + $0xa60] sm:$0xff]
    %v500 = vld [vmem:[#allocation8 + $0xa68] sm:$0xff]
    %v501 = vld [vmem:[#allocation8 + $0xa70] sm:$0xff]
    %v502 = vld [vmem:[#allocation8 + $0xa78] sm:$0xff]
    %v503 = vld [vmem:[#allocation8 + $0xa80] sm:$0xff]
    %v504 = vld [vmem:[#allocation8 + $0xa88] sm:$0xff]
    %v505 = vld [vmem:[#allocation8 + $0xa90] sm:$0xff]
    %v506 = vld [vmem:[#allocation8 + $0xa98] sm:$0xff]
    %v507 = vld [vmem:[#allocation8 + $0xaa0] sm:$0xff]
    %v508 = vld [vmem:[#allocation8 + $0xaa8] sm:$0xff]
    %v509 = vld [vmem:[#allocation8 + $0xab0] sm:$0xff]
    %v510 = vld [vmem:[#allocation8 + $0xab8] sm:$0xff]
    %v511 = vld [vmem:[#allocation8 + $0xac0] sm:$0xff]
    %v512 = vld [vmem:[#allocation8 + $0xac8] sm:$0xff]
    %v513 = vld [vmem:[#allocation8 + $0xad0] sm:$0xff]
    %v514 = vld [vmem:[#allocation8 + $0xad8] sm:$0xff]
    %v515 = vld [vmem:[#allocation8 + $0xae0] sm:$0xff]
    %v516 = vld [vmem:[#allocation8 + $0xae8] sm:$0xff]
    %v517 = vld [vmem:[#allocation8 + $0xaf0] sm:$0xff]
    %v518 = vld [vmem:[#allocation8 + $0xaf8] sm:$0xff]
    %v519 = vld [vmem:[#allocation8 + $0xb00] sm:$0xff]
    %v520 = vld [vmem:[#allocation8 + $0xb08] sm:$0xff]
    %v521 = vld [vmem:[#allocation8 + $0xb10] sm:$0xff]
    %v522 = vld [vmem:[#allocation8 + $0xb18] sm:$0xff]
    %v523 = vld [vmem:[#allocation8 + $0xb20] sm:$0xff]
    %v524 = vld [vmem:[#allocation8 + $0xb28] sm:$0xff]
    %v525 = vld [vmem:[#allocation8 + $0xb30] sm:$0xff]
    %v526 = vld [vmem:[#allocation8 + $0xb38] sm:$0xff]
    %v527 = vld [vmem:[#allocation8 + $0xb40] sm:$0xff]
    %v528 = vld [vmem:[#allocation8 + $0xb48] sm:$0xff]
    %v529 = vld [vmem:[#allocation8 + $0xb50] sm:$0xff]
    %v530 = vld [vmem:[#allocation8 + $0xb58] sm:$0xff]
    %v531 = vld [vmem:[#allocation8 + $0xb60] sm:$0xff]
    %v532 = vld [vmem:[#allocation8 + $0xb68] sm:$0xff]
    %v533 = vld [vmem:[#allocation8 + $0xb70] sm:$0xff]
    %v534 = vld [vmem:[#allocation8 + $0xb78] sm:$0xff]
    %v535 = vld [vmem:[#allocation8 + $0xb80] sm:$0xff]
    %v536 = vld [vmem:[#allocation8 + $0xb88] sm:$0xff]
    %v537 = vld [vmem:[#allocation8 + $0xb90] sm:$0xff]
    %v538 = vld [vmem:[#allocation8 + $0xb98] sm:$0xff]
    %v539 = vld [vmem:[#allocation8 + $0xba0] sm:$0xff]
    %v540 = vld [vmem:[#allocation8 + $0xba8] sm:$0xff]
    %v541 = vld [vmem:[#allocation8 + $0xbb0] sm:$0xff]
    %v542 = vld [vmem:[#allocation8 + $0xbb8] sm:$0xff]
    %v543 = vld [vmem:[#allocation8 + $0xbc0] sm:$0xff]
    %v544 = vld [vmem:[#allocation8 + $0xbc8] sm:$0xff]
    %v545 = vld [vmem:[#allocation8 + $0xbd0] sm:$0xff]
    %v546 = vld [vmem:[#allocation8 + $0xbd8] sm:$0xff]
    %v547 = vld [vmem:[#allocation8 + $0xbe0] sm:$0xff]
    %v548 = vld [vmem:[#allocation8 + $0xbe8] sm:$0xff]
    %v549 = vld [vmem:[#allocation8 + $0xbf0] sm:$0xff]
    %v550 = vld [vmem:[#allocation8 + $0xbf8] sm:$0xff]
    %v551 = vld [vmem:[#allocation8 + $0xc00] sm:$0xff]
    %v552 = vld [vmem:[#allocation8 + $0xc08] sm:$0xff]
    %v553 = vld [vmem:[#allocation8 + $0xc10] sm:$0xff]
    %v554 = vld [vmem:[#allocation8 + $0xc18] sm:$0xff]
    %v555 = vld [vmem:[#allocation8 + $0xc20] sm:$0xff]
    %v556 = vld [vmem:[#allocation8 + $0xc28] sm:$0xff]
    %v557 = vld [vmem:[#allocation8 + $0xc30] sm:$0xff]
    %v558 = vld [vmem:[#allocation8 + $0xc38] sm:$0xff]
    %v559 = vld [vmem:[#allocation8 + $0xc40] sm:$0xff]
    %v560 = vld [vmem:[#allocation8 + $0xc48] sm:$0xff]
    %v561 = vld [vmem:[#allocation8 + $0xc50] sm:$0xff]
    %v562 = vld [vmem:[#allocation8 + $0xc58] sm:$0xff]
    %v563 = vld [vmem:[#allocation8 + $0xc60] sm:$0xff]
    %v564 = vld [vmem:[#allocation8 + $0xc68] sm:$0xff]
    %v565 = vld [vmem:[#allocation8 + $0xc70] sm:$0xff]
    %v566 = vld [vmem:[#allocation8 + $0xc78] sm:$0xff]
    %v580 = vunpack.c.l.b16 %v154
    %v581 = vunpack.c.h.b16 %v154
    %v582 = vunpack.c.l.b16 %v155
    %v583 = vunpack.c.h.b16 %v155
    %v584 = vunpack.c.l.b16 %v156
    %v585 = vunpack.c.h.b16 %v156
    %v586 = vunpack.c.l.b16 %v157
    %v587 = vunpack.c.h.b16 %v157
    %v588 = vunpack.c.l.b16 %v158
    %v589 = vunpack.c.h.b16 %v158
    %v590 = vunpack.c.l.b16 %v159
    %v591 = vunpack.c.h.b16 %v159
    %v592 = vunpack.c.l.b16 %v160
    %v593 = vunpack.c.h.b16 %v160
    %v594 = vunpack.c.l.b16 %v161
    %v595 = vunpack.c.h.b16 %v161
    %v596 = vunpack.c.l.b16 %v162
    %v597 = vunpack.c.h.b16 %v162
    %v598 = vunpack.c.l.b16 %v163
    %v599 = vunpack.c.h.b16 %v163
    %v600 = vunpack.c.l.b16 %v164
    %v601 = vunpack.c.h.b16 %v164
    %v602 = vunpack.c.l.b16 %v165
    %v603 = vunpack.c.h.b16 %v165
    %v604 = vunpack.c.l.b16 %v166
    %v605 = vpack.c.b16 %v580, %v580
    %v606 = vpack.c.b16 %v581, %v581
    %v607 = vpack.c.b16 %v582, %v582
    %v608 = vpack.c.b16 %v583, %v583
    %v609 = vpack.c.b16 %v584, %v584
    %v610 = vpack.c.b16 %v585, %v585
    %v611 = vpack.c.b16 %v586, %v586
    %v612 = vpack.c.b16 %v587, %v587
    %v613 = vpack.c.b16 %v588, %v588
    %v614 = vpack.c.b16 %v589, %v589
    %v615 = vpack.c.b16 %v590, %v590
    %v616 = vpack.c.b16 %v591, %v591
    %v617 = vpack.c.b16 %v592, %v592
    %v618 = vpack.c.b16 %v593, %v593
    %v619 = vpack.c.b16 %v594, %v594
    %v620 = vpack.c.b16 %v595, %v595
    %v621 = vpack.c.b16 %v596, %v596
    %v622 = vpack.c.b16 %v597, %v597
    %v623 = vpack.c.b16 %v598, %v598
    %v624 = vpack.c.b16 %v599, %v599
    %v625 = vpack.c.b16 %v600, %v600
    %v626 = vpack.c.b16 %v601, %v601
    %v627 = vpack.c.b16 %v602, %v602
    %v628 = vpack.c.b16 %v603, %v603
    %v629 = vpack.c.b16 %v604, %v604
    %v1055 = vunpack.c.l.b16 %v167
    %v1056 = vunpack.c.h.b16 %v167
    %v1057 = vunpack.c.l.b16 %v168
    %v1058 = vunpack.c.h.b16 %v168
    %v1059 = vunpack.c.l.b16 %v169
    %v1060 = vunpack.c.h.b16 %v169
    %v1061 = vunpack.c.l.b16 %v170
    %v1062 = vunpack.c.h.b16 %v170
    %v1063 = vunpack.c.l.b16 %v171
    %v1064 = vunpack.c.h.b16 %v171
    %v1065 = vunpack.c.l.b16 %v172
    %v1066 = vunpack.c.h.b16 %v172
    %v1067 = vunpack.c.l.b16 %v173
    %v1068 = vunpack.c.h.b16 %v173
    %v1069 = vunpack.c.l.b16 %v174
    %v1070 = vunpack.c.h.b16 %v174
    %v1071 = vunpack.c.l.b16 %v175
    %v1072 = vunpack.c.h.b16 %v175
    %v1073 = vunpack.c.l.b16 %v176
    %v1074 = vunpack.c.h.b16 %v176
    %v1075 = vunpack.c.l.b16 %v177
    %v1076 = vunpack.c.h.b16 %v177
    %v1077 = vunpack.c.l.b16 %v178
    %v1078 = vunpack.c.h.b16 %v178
    %v1079 = vunpack.c.l.b16 %v179
    %v1080 = vunpack.c.h.b16 %v179
    %v1081 = vunpack.c.l.b16 %v180
    %v1082 = vunpack.c.h.b16 %v180
    %v1083 = vunpack.c.l.b16 %v181
    %v1084 = vunpack.c.h.b16 %v181
    %v1085 = vunpack.c.l.b16 %v182
    %v1086 = vunpack.c.h.b16 %v182
    %v1087 = vunpack.c.l.b16 %v183
    %v1088 = vunpack.c.h.b16 %v183
    %v1089 = vunpack.c.l.b16 %v184
    %v1090 = vunpack.c.h.b16 %v184
    %v1091 = vunpack.c.l.b16 %v185
    %v1092 = vunpack.c.h.b16 %v185
    %v1093 = vunpack.c.l.b16 %v186
    %v1094 = vunpack.c.h.b16 %v186
    %v1095 = vunpack.c.l.b16 %v187
    %v1096 = vunpack.c.h.b16 %v187
    %v1097 = vunpack.c.l.b16 %v188
    %v1098 = vunpack.c.h.b16 %v188
    %v1099 = vunpack.c.l.b16 %v189
    %v1100 = vunpack.c.h.b16 %v189
    %v1101 = vunpack.c.l.b16 %v190
    %v1102 = vunpack.c.h.b16 %v190
    %v1103 = vunpack.c.l.b16 %v191
    %v1104 = vunpack.c.h.b16 %v191
    %v1105 = vunpack.c.l.b16 %v192
    %v1106 = vunpack.c.h.b16 %v192
    %v1107 = vunpack.c.l.b16 %v193
    %v1108 = vunpack.c.h.b16 %v193
    %v1109 = vunpack.c.l.b16 %v194
    %v1110 = vunpack.c.h.b16 %v194
    %v1111 = vunpack.c.l.b16 %v195
    %v1112 = vunpack.c.h.b16 %v195
    %v1113 = vunpack.c.l.b16 %v196
    %v1114 = vunpack.c.h.b16 %v196
    %v1115 = vunpack.c.l.b16 %v197
    %v1116 = vunpack.c.h.b16 %v197
    %v1117 = vunpack.c.l.b16 %v198
    %v1118 = vunpack.c.h.b16 %v198
    %v1119 = vunpack.c.l.b16 %v199
    %v1120 = vunpack.c.h.b16 %v199
    %v1121 = vunpack.c.l.b16 %v200
    %v1122 = vunpack.c.h.b16 %v200
    %v1123 = vunpack.c.l.b16 %v201
    %v1124 = vunpack.c.h.b16 %v201
    %v1125 = vunpack.c.l.b16 %v202
    %v1126 = vunpack.c.h.b16 %v202
    %v1127 = vunpack.c.l.b16 %v203
    %v1128 = vunpack.c.h.b16 %v203
    %v1129 = vunpack.c.l.b16 %v204
    %v1130 = vunpack.c.h.b16 %v204
    %v1131 = vunpack.c.l.b16 %v205
    %v1132 = vunpack.c.h.b16 %v205
    %v1133 = vunpack.c.l.b16 %v206
    %v1134 = vunpack.c.h.b16 %v206
    %v1135 = vunpack.c.l.b16 %v207
    %v1136 = vunpack.c.h.b16 %v207
    %v1137 = vunpack.c.l.b16 %v208
    %v1138 = vunpack.c.h.b16 %v208
    %v1139 = vunpack.c.l.b16 %v209
    %v1140 = vunpack.c.h.b16 %v209
    %v1141 = vunpack.c.l.b16 %v210
    %v1142 = vunpack.c.h.b16 %v210
    %v1143 = vunpack.c.l.b16 %v211
    %v1144 = vunpack.c.h.b16 %v211
    %v1145 = vunpack.c.l.b16 %v212
    %v1146 = vunpack.c.h.b16 %v212
    %v1147 = vunpack.c.l.b16 %v213
    %v1148 = vunpack.c.h.b16 %v213
    %v1149 = vunpack.c.l.b16 %v214
    %v1150 = vunpack.c.h.b16 %v214
    %v1151 = vunpack.c.l.b16 %v215
    %v1152 = vunpack.c.h.b16 %v215
    %v1153 = vunpack.c.l.b16 %v216
    %v1154 = vunpack.c.h.b16 %v216
    %v1155 = vunpack.c.l.b16 %v217
    %v1156 = vunpack.c.h.b16 %v217
    %v1157 = vunpack.c.l.b16 %v218
    %v1158 = vunpack.c.h.b16 %v218
    %v1159 = vunpack.c.l.b16 %v219
    %v1160 = vunpack.c.h.b16 %v219
    %v1161 = vunpack.c.l.b16 %v220
    %v1162 = vunpack.c.h.b16 %v220
    %v1163 = vunpack.c.l.b16 %v221
    %v1164 = vunpack.c.h.b16 %v221
    %v1165 = vunpack.c.l.b16 %v222
    %v1166 = vunpack.c.h.b16 %v222
    %v1167 = vunpack.c.l.b16 %v223
    %v1168 = vunpack.c.h.b16 %v223
    %v1169 = vunpack.c.l.b16 %v224
    %v1170 = vunpack.c.h.b16 %v224
    %v1171 = vunpack.c.l.b16 %v225
    %v1172 = vunpack.c.h.b16 %v225
    %v1173 = vunpack.c.l.b16 %v226
    %v1174 = vunpack.c.h.b16 %v226
    %v1175 = vunpack.c.l.b16 %v227
    %v1176 = vunpack.c.h.b16 %v227
    %v1177 = vunpack.c.l.b16 %v228
    %v1178 = vunpack.c.h.b16 %v228
    %v1179 = vunpack.c.l.b16 %v229
    %v1180 = vunpack.c.h.b16 %v229
    %v1181 = vunpack.c.l.b16 %v230
    %v1182 = vunpack.c.h.b16 %v230
    %v1183 = vunpack.c.l.b16 %v231
    %v1184 = vunpack.c.h.b16 %v231
    %v1185 = vunpack.c.l.b16 %v232
    %v1186 = vunpack.c.h.b16 %v232
    %v1187 = vunpack.c.l.b16 %v233
    %v1188 = vunpack.c.h.b16 %v233
    %v1189 = vunpack.c.l.b16 %v234
    %v1190 = vunpack.c.h.b16 %v234
    %v1191 = vunpack.c.l.b16 %v235
    %v1192 = vunpack.c.h.b16 %v235
    %v1193 = vunpack.c.l.b16 %v236
    %v1194 = vunpack.c.h.b16 %v236
    %v1195 = vunpack.c.l.b16 %v237
    %v1196 = vunpack.c.h.b16 %v237
    %v1197 = vunpack.c.l.b16 %v238
    %v1198 = vunpack.c.h.b16 %v238
    %v1199 = vunpack.c.l.b16 %v239
    %v1200 = vunpack.c.h.b16 %v239
    %v1201 = vunpack.c.l.b16 %v240
    %v1202 = vunpack.c.h.b16 %v240
    %v1203 = vunpack.c.l.b16 %v241
    %v1204 = vunpack.c.h.b16 %v241
    %v1205 = vunpack.c.l.b16 %v242
    %v1206 = vunpack.c.h.b16 %v242
    %v1207 = vunpack.c.l.b16 %v243
    %v1208 = vunpack.c.h.b16 %v243
    %v1209 = vunpack.c.l.b16 %v244
    %v1210 = vunpack.c.h.b16 %v244
    %v1211 = vunpack.c.l.b16 %v245
    %v1212 = vunpack.c.h.b16 %v245
    %v1213 = vunpack.c.l.b16 %v246
    %v1214 = vunpack.c.h.b16 %v246
    %v1215 = vunpack.c.l.b16 %v247
    %v1216 = vunpack.c.h.b16 %v247
    %v1217 = vunpack.c.l.b16 %v248
    %v1218 = vunpack.c.h.b16 %v248
    %v1219 = vunpack.c.l.b16 %v249
    %v1220 = vunpack.c.h.b16 %v249
    %v1221 = vunpack.c.l.b16 %v250
    %v1222 = vunpack.c.h.b16 %v250
    %v1223 = vunpack.c.l.b16 %v251
    %v1224 = vunpack.c.h.b16 %v251
    %v1225 = vunpack.c.l.b16 %v252
    %v1226 = vunpack.c.h.b16 %v252
    %v1227 = vunpack.c.l.b16 %v253
    %v1228 = vunpack.c.h.b16 %v253
    %v1229 = vunpack.c.l.b16 %v254
    %v1230 = vunpack.c.h.b16 %v254
    %v1231 = vunpack.c.l.b16 %v255
    %v1232 = vunpack.c.h.b16 %v255
    %v1233 = vunpack.c.l.b16 %v256
    %v1234 = vunpack.c.h.b16 %v256
    %v1235 = vunpack.c.l.b16 %v257
    %v1236 = vunpack.c.h.b16 %v257
    %v1237 = vunpack.c.l.b16 %v258
    %v1238 = vunpack.c.h.b16 %v258
    %v1239 = vunpack.c.l.b16 %v259
    %v1240 = vunpack.c.h.b16 %v259
    %v1241 = vunpack.c.l.b16 %v260
    %v1242 = vunpack.c.h.b16 %v260
    %v1243 = vunpack.c.l.b16 %v261
    %v1244 = vunpack.c.h.b16 %v261
    %v1245 = vunpack.c.l.b16 %v262
    %v1246 = vunpack.c.h.b16 %v262
    %v1247 = vunpack.c.l.b16 %v263
    %v1248 = vunpack.c.h.b16 %v263
    %v1249 = vunpack.c.l.b16 %v264
    %v1250 = vunpack.c.h.b16 %v264
    %v1251 = vunpack.c.l.b16 %v265
    %v1252 = vunpack.c.h.b16 %v265
    %v1253 = vunpack.c.l.b16 %v266
    %v1254 = vunpack.c.h.b16 %v266
    %v1255 = vunpack.c.l.b16 %v267
    %v1256 = vunpack.c.h.b16 %v267
    %v1257 = vunpack.c.l.b16 %v268
    %v1258 = vunpack.c.h.b16 %v268
    %v1259 = vunpack.c.l.b16 %v269
    %v1260 = vunpack.c.h.b16 %v269
    %v1261 = vunpack.c.l.b16 %v270
    %v1262 = vunpack.c.h.b16 %v270
    %v1263 = vunpack.c.l.b16 %v271
    %v1264 = vunpack.c.h.b16 %v271
    %v1265 = vunpack.c.l.b16 %v272
    %v1266 = vunpack.c.h.b16 %v272
    %v1267 = vunpack.c.l.b16 %v273
    %v1268 = vunpack.c.h.b16 %v273
    %v1269 = vunpack.c.l.b16 %v274
    %v1270 = vunpack.c.h.b16 %v274
    %v1271 = vunpack.c.l.b16 %v275
    %v1272 = vunpack.c.h.b16 %v275
    %v1273 = vunpack.c.l.b16 %v276
    %v1274 = vunpack.c.h.b16 %v276
    %v1275 = vunpack.c.l.b16 %v277
    %v1276 = vunpack.c.h.b16 %v277
    %v1277 = vunpack.c.l.b16 %v278
    %v1278 = vunpack.c.h.b16 %v278
    %v1279 = vunpack.c.l.b16 %v279
    %v1280 = vunpack.c.h.b16 %v279
    %v1281 = vunpack.c.l.b16 %v280
    %v1282 = vunpack.c.h.b16 %v280
    %v1283 = vunpack.c.l.b16 %v281
    %v1284 = vunpack.c.h.b16 %v281
    %v1285 = vunpack.c.l.b16 %v282
    %v1286 = vunpack.c.h.b16 %v282
    %v1287 = vunpack.c.l.b16 %v283
    %v1288 = vunpack.c.h.b16 %v283
    %v1289 = vunpack.c.l.b16 %v284
    %v1290 = vunpack.c.h.b16 %v284
    %v1291 = vunpack.c.l.b16 %v285
    %v1292 = vunpack.c.h.b16 %v285
    %v1293 = vunpack.c.l.b16 %v286
    %v1294 = vunpack.c.h.b16 %v286
    %v1295 = vunpack.c.l.b16 %v287
    %v1296 = vunpack.c.h.b16 %v287
    %v1297 = vunpack.c.l.b16 %v288
    %v1298 = vunpack.c.h.b16 %v288
    %v1299 = vunpack.c.l.b16 %v289
    %v1300 = vunpack.c.h.b16 %v289
    %v1301 = vunpack.c.l.b16 %v290
    %v1302 = vunpack.c.h.b16 %v290
    %v1303 = vunpack.c.l.b16 %v291
    %v1304 = vunpack.c.h.b16 %v291
    %v1305 = vunpack.c.l.b16 %v292
    %v1306 = vunpack.c.h.b16 %v292
    %v1307 = vunpack.c.l.b16 %v293
    %v1308 = vunpack.c.h.b16 %v293
    %v1309 = vunpack.c.l.b16 %v294
    %v1310 = vunpack.c.h.b16 %v294
    %v1311 = vunpack.c.l.b16 %v295
    %v1312 = vunpack.c.h.b16 %v295
    %v1313 = vunpack.c.l.b16 %v296
    %v1314 = vunpack.c.h.b16 %v296
    %v1315 = vunpack.c.l.b16 %v297
    %v1316 = vunpack.c.h.b16 %v297
    %v1317 = vunpack.c.l.b16 %v298
    %v1318 = vunpack.c.h.b16 %v298
    %v1319 = vunpack.c.l.b16 %v299
    %v1320 = vunpack.c.h.b16 %v299
    %v1321 = vunpack.c.l.b16 %v300
    %v1322 = vunpack.c.h.b16 %v300
    %v1323 = vunpack.c.l.b16 %v301
    %v1324 = vunpack.c.h.b16 %v301
    %v1325 = vunpack.c.l.b16 %v302
    %v1326 = vunpack.c.h.b16 %v302
    %v1327 = vunpack.c.l.b16 %v303
    %v1328 = vunpack.c.h.b16 %v303
    %v1329 = vunpack.c.l.b16 %v304
    %v1330 = vunpack.c.h.b16 %v304
    %v1331 = vunpack.c.l.b16 %v305
    %v1332 = vunpack.c.h.b16 %v305
    %v1333 = vunpack.c.l.b16 %v306
    %v1334 = vunpack.c.h.b16 %v306
    %v1335 = vunpack.c.l.b16 %v307
    %v1336 = vunpack.c.h.b16 %v307
    %v1337 = vunpack.c.l.b16 %v308
    %v1338 = vunpack.c.h.b16 %v308
    %v1339 = vunpack.c.l.b16 %v309
    %v1340 = vunpack.c.h.b16 %v309
    %v1341 = vunpack.c.l.b16 %v310
    %v1342 = vunpack.c.h.b16 %v310
    %v1343 = vunpack.c.l.b16 %v311
    %v1344 = vunpack.c.h.b16 %v311
    %v1345 = vunpack.c.l.b16 %v312
    %v1346 = vunpack.c.h.b16 %v312
    %v1347 = vunpack.c.l.b16 %v313
    %v1348 = vunpack.c.h.b16 %v313
    %v1349 = vunpack.c.l.b16 %v314
    %v1350 = vunpack.c.h.b16 %v314
    %v1351 = vunpack.c.l.b16 %v315
    %v1352 = vunpack.c.h.b16 %v315
    %v1353 = vunpack.c.l.b16 %v316
    %v1354 = vunpack.c.h.b16 %v316
    %v1355 = vunpack.c.l.b16 %v317
    %v1356 = vunpack.c.h.b16 %v317
    %v1357 = vunpack.c.l.b16 %v318
    %v1358 = vunpack.c.h.b16 %v318
    %v1359 = vunpack.c.l.b16 %v319
    %v1360 = vunpack.c.h.b16 %v319
    %v1361 = vunpack.c.l.b16 %v320
    %v1362 = vunpack.c.h.b16 %v320
    %v1363 = vunpack.c.l.b16 %v321
    %v1364 = vunpack.c.h.b16 %v321
    %v1365 = vunpack.c.l.b16 %v322
    %v1366 = vunpack.c.h.b16 %v322
    %v1367 = vunpack.c.l.b16 %v323
    %v1368 = vunpack.c.h.b16 %v323
    %v1369 = vunpack.c.l.b16 %v324
    %v1370 = vunpack.c.h.b16 %v324
    %v1371 = vunpack.c.l.b16 %v325
    %v1372 = vunpack.c.h.b16 %v325
    %v1373 = vunpack.c.l.b16 %v326
    %v1374 = vunpack.c.h.b16 %v326
    %v1375 = vunpack.c.l.b16 %v327
    %v1376 = vunpack.c.h.b16 %v327
    %v1377 = vunpack.c.l.b16 %v328
    %v1378 = vunpack.c.h.b16 %v328
    %v1379 = vunpack.c.l.b16 %v329
    %v1380 = vunpack.c.h.b16 %v329
    %v1381 = vunpack.c.l.b16 %v330
    %v1382 = vunpack.c.h.b16 %v330
    %v1383 = vunpack.c.l.b16 %v331
    %v1384 = vunpack.c.h.b16 %v331
    %v1385 = vunpack.c.l.b16 %v332
    %v1386 = vunpack.c.h.b16 %v332
    %v1387 = vunpack.c.l.b16 %v333
    %v1388 = vunpack.c.h.b16 %v333
    %v1389 = vunpack.c.l.b16 %v334
    %v1390 = vunpack.c.h.b16 %v334
    %v1391 = vunpack.c.l.b16 %v335
    %v1392 = vunpack.c.h.b16 %v335
    %v1393 = vunpack.c.l.b16 %v336
    %v1394 = vunpack.c.h.b16 %v336
    %v1395 = vunpack.c.l.b16 %v337
    %v1396 = vunpack.c.h.b16 %v337
    %v1397 = vunpack.c.l.b16 %v338
    %v1398 = vunpack.c.h.b16 %v338
    %v1399 = vunpack.c.l.b16 %v339
    %v1400 = vunpack.c.h.b16 %v339
    %v1401 = vunpack.c.l.b16 %v340
    %v1402 = vunpack.c.h.b16 %v340
    %v1403 = vunpack.c.l.b16 %v341
    %v1404 = vunpack.c.h.b16 %v341
    %v1405 = vunpack.c.l.b16 %v342
    %v1406 = vunpack.c.h.b16 %v342
    %v1407 = vunpack.c.l.b16 %v343
    %v1408 = vunpack.c.h.b16 %v343
    %v1409 = vunpack.c.l.b16 %v344
    %v1410 = vunpack.c.h.b16 %v344
    %v1411 = vunpack.c.l.b16 %v345
    %v1412 = vunpack.c.h.b16 %v345
    %v1413 = vunpack.c.l.b16 %v346
    %v1414 = vunpack.c.h.b16 %v346
    %v1415 = vunpack.c.l.b16 %v347
    %v1416 = vunpack.c.h.b16 %v347
    %v1417 = vunpack.c.l.b16 %v348
    %v1418 = vunpack.c.h.b16 %v348
    %v1419 = vunpack.c.l.b16 %v349
    %v1420 = vunpack.c.h.b16 %v349
    %v1421 = vunpack.c.l.b16 %v350
    %v1422 = vunpack.c.h.b16 %v350
    %v1423 = vunpack.c.l.b16 %v351
    %v1424 = vunpack.c.h.b16 %v351
    %v1425 = vunpack.c.l.b16 %v352
    %v1426 = vunpack.c.h.b16 %v352
    %v1427 = vunpack.c.l.b16 %v353
    %v1428 = vunpack.c.h.b16 %v353
    %v1429 = vunpack.c.l.b16 %v354
    %v1430 = vunpack.c.h.b16 %v354
    %v1431 = vunpack.c.l.b16 %v355
    %v1432 = vunpack.c.h.b16 %v355
    %v1433 = vunpack.c.l.b16 %v356
    %v1434 = vunpack.c.h.b16 %v356
    %v1435 = vunpack.c.l.b16 %v357
    %v1436 = vunpack.c.h.b16 %v357
    %v1437 = vunpack.c.l.b16 %v358
    %v1438 = vunpack.c.h.b16 %v358
    %v1439 = vunpack.c.l.b16 %v359
    %v1440 = vunpack.c.h.b16 %v359
    %v1441 = vunpack.c.l.b16 %v360
    %v1442 = vunpack.c.h.b16 %v360
    %v1443 = vunpack.c.l.b16 %v361
    %v1444 = vunpack.c.h.b16 %v361
    %v1445 = vunpack.c.l.b16 %v362
    %v1446 = vunpack.c.h.b16 %v362
    %v1447 = vunpack.c.l.b16 %v363
    %v1448 = vunpack.c.h.b16 %v363
    %v1449 = vunpack.c.l.b16 %v364
    %v1450 = vunpack.c.h.b16 %v364
    %v1451 = vunpack.c.l.b16 %v365
    %v1452 = vunpack.c.h.b16 %v365
    %v1453 = vunpack.c.l.b16 %v366
    %v1454 = vunpack.c.h.b16 %v366
    %v1455 = vunpack.c.l.b16 %v367
    %v1456 = vunpack.c.h.b16 %v367
    %v1457 = vunpack.c.l.b16 %v368
    %v1458 = vunpack.c.h.b16 %v368
    %v1459 = vunpack.c.l.b16 %v369
    %v1460 = vunpack.c.h.b16 %v369
    %v1461 = vunpack.c.l.b16 %v370
    %v1462 = vunpack.c.h.b16 %v370
    %v1463 = vunpack.c.l.b16 %v371
    %v1464 = vunpack.c.h.b16 %v371
    %v1465 = vunpack.c.l.b16 %v372
    %v1466 = vunpack.c.h.b16 %v372
    %v1467 = vunpack.c.l.b16 %v373
    %v1468 = vunpack.c.h.b16 %v373
    %v1469 = vunpack.c.l.b16 %v374
    %v1470 = vunpack.c.h.b16 %v374
    %v1471 = vunpack.c.l.b16 %v375
    %v1472 = vunpack.c.h.b16 %v375
    %v1473 = vunpack.c.l.b16 %v376
    %v1474 = vunpack.c.h.b16 %v376
    %v1475 = vunpack.c.l.b16 %v377
    %v1476 = vunpack.c.h.b16 %v377
    %v1477 = vunpack.c.l.b16 %v378
    %v1478 = vunpack.c.h.b16 %v378
    %v1479 = vunpack.c.l.b16 %v379
    %v1480 = vunpack.c.h.b16 %v379
    %v1481 = vunpack.c.l.b16 %v380
    %v1482 = vunpack.c.h.b16 %v380
    %v1483 = vunpack.c.l.b16 %v381
    %v1484 = vunpack.c.h.b16 %v381
    %v1485 = vunpack.c.l.b16 %v382
    %v1486 = vunpack.c.h.b16 %v382
    %v1487 = vunpack.c.l.b16 %v383
    %v1488 = vunpack.c.h.b16 %v383
    %v1489 = vunpack.c.l.b16 %v384
    %v1490 = vunpack.c.h.b16 %v384
    %v1491 = vunpack.c.l.b16 %v385
    %v1492 = vunpack.c.h.b16 %v385
    %v1493 = vunpack.c.l.b16 %v386
    %v1494 = vunpack.c.h.b16 %v386
    %v1495 = vunpack.c.l.b16 %v387
    %v1496 = vunpack.c.h.b16 %v387
    %v1497 = vunpack.c.l.b16 %v388
    %v1498 = vunpack.c.h.b16 %v388
    %v1499 = vunpack.c.l.b16 %v389
    %v1500 = vunpack.c.h.b16 %v389
    %v1501 = vunpack.c.l.b16 %v390
    %v1502 = vunpack.c.h.b16 %v390
    %v1503 = vunpack.c.l.b16 %v391
    %v1504 = vunpack.c.h.b16 %v391
    %v1505 = vunpack.c.l.b16 %v392
    %v1506 = vunpack.c.h.b16 %v392
    %v1507 = vunpack.c.l.b16 %v393
    %v1508 = vunpack.c.h.b16 %v393
    %v1509 = vunpack.c.l.b16 %v394
    %v1510 = vunpack.c.h.b16 %v394
    %v1511 = vunpack.c.l.b16 %v395
    %v1512 = vunpack.c.h.b16 %v395
    %v1513 = vunpack.c.l.b16 %v396
    %v1514 = vunpack.c.h.b16 %v396
    %v1515 = vunpack.c.l.b16 %v397
    %v1516 = vunpack.c.h.b16 %v397
    %v1517 = vunpack.c.l.b16 %v398
    %v1518 = vunpack.c.h.b16 %v398
    %v1519 = vunpack.c.l.b16 %v399
    %v1520 = vunpack.c.h.b16 %v399
    %v1521 = vunpack.c.l.b16 %v400
    %v1522 = vunpack.c.h.b16 %v400
    %v1523 = vunpack.c.l.b16 %v401
    %v1524 = vunpack.c.h.b16 %v401
    %v1525 = vunpack.c.l.b16 %v402
    %v1526 = vunpack.c.h.b16 %v402
    %v1527 = vunpack.c.l.b16 %v403
    %v1528 = vunpack.c.h.b16 %v403
    %v1529 = vunpack.c.l.b16 %v404
    %v1530 = vunpack.c.h.b16 %v404
    %v1531 = vunpack.c.l.b16 %v405
    %v1532 = vunpack.c.h.b16 %v405
    %v1533 = vunpack.c.l.b16 %v406
    %v1534 = vunpack.c.h.b16 %v406
    %v1535 = vunpack.c.l.b16 %v407
    %v1536 = vunpack.c.h.b16 %v407
    %v1537 = vunpack.c.l.b16 %v408
    %v1538 = vunpack.c.h.b16 %v408
    %v1539 = vunpack.c.l.b16 %v409
    %v1540 = vunpack.c.h.b16 %v409
    %v1541 = vunpack.c.l.b16 %v410
    %v1542 = vunpack.c.h.b16 %v410
    %v1543 = vunpack.c.l.b16 %v411
    %v1544 = vunpack.c.h.b16 %v411
    %v1545 = vunpack.c.l.b16 %v412
    %v1546 = vunpack.c.h.b16 %v412
    %v1547 = vunpack.c.l.b16 %v413
    %v1548 = vunpack.c.h.b16 %v413
    %v1549 = vunpack.c.l.b16 %v414
    %v1550 = vunpack.c.h.b16 %v414
    %v1551 = vunpack.c.l.b16 %v415
    %v1552 = vunpack.c.h.b16 %v415
    %v1553 = vunpack.c.l.b16 %v416
    %v1554 = vunpack.c.h.b16 %v416
    %v1555 = vunpack.c.l.b16 %v417
    %v1556 = vunpack.c.h.b16 %v417
    %v1557 = vunpack.c.l.b16 %v418
    %v1558 = vunpack.c.h.b16 %v418
    %v1559 = vunpack.c.l.b16 %v419
    %v1560 = vunpack.c.h.b16 %v419
    %v1561 = vunpack.c.l.b16 %v420
    %v1562 = vunpack.c.h.b16 %v420
    %v1563 = vunpack.c.l.b16 %v421
    %v1564 = vunpack.c.h.b16 %v421
    %v1565 = vunpack.c.l.b16 %v422
    %v1566 = vunpack.c.h.b16 %v422
    %v1567 = vunpack.c.l.b16 %v423
    %v1568 = vunpack.c.h.b16 %v423
    %v1569 = vunpack.c.l.b16 %v424
    %v1570 = vunpack.c.h.b16 %v424
    %v1571 = vunpack.c.l.b16 %v425
    %v1572 = vunpack.c.h.b16 %v425
    %v1573 = vunpack.c.l.b16 %v426
    %v1574 = vunpack.c.h.b16 %v426
    %v1575 = vunpack.c.l.b16 %v427
    %v1576 = vunpack.c.h.b16 %v427
    %v1577 = vunpack.c.l.b16 %v428
    %v1578 = vunpack.c.h.b16 %v428
    %v1579 = vunpack.c.l.b16 %v429
    %v1580 = vunpack.c.h.b16 %v429
    %v1581 = vunpack.c.l.b16 %v430
    %v1582 = vunpack.c.h.b16 %v430
    %v1583 = vunpack.c.l.b16 %v431
    %v1584 = vunpack.c.h.b16 %v431
    %v1585 = vunpack.c.l.b16 %v432
    %v1586 = vunpack.c.h.b16 %v432
    %v1587 = vunpack.c.l.b16 %v433
    %v1588 = vunpack.c.h.b16 %v433
    %v1589 = vunpack.c.l.b16 %v434
    %v1590 = vunpack.c.h.b16 %v434
    %v1591 = vunpack.c.l.b16 %v435
    %v1592 = vunpack.c.h.b16 %v435
    %v1593 = vunpack.c.l.b16 %v436
    %v1594 = vunpack.c.h.b16 %v436
    %v1595 = vunpack.c.l.b16 %v437
    %v1596 = vunpack.c.h.b16 %v437
    %v1597 = vunpack.c.l.b16 %v438
    %v1598 = vunpack.c.h.b16 %v438
    %v1599 = vunpack.c.l.b16 %v439
    %v1600 = vunpack.c.h.b16 %v439
    %v1601 = vunpack.c.l.b16 %v440
    %v1602 = vunpack.c.h.b16 %v440
    %v1603 = vunpack.c.l.b16 %v441
    %v1604 = vunpack.c.h.b16 %v441
    %v1605 = vunpack.c.l.b16 %v442
    %v1606 = vunpack.c.h.b16 %v442
    %v1607 = vunpack.c.l.b16 %v443
    %v1608 = vunpack.c.h.b16 %v443
    %v1609 = vunpack.c.l.b16 %v444
    %v1610 = vunpack.c.h.b16 %v444
    %v1611 = vunpack.c.l.b16 %v445
    %v1612 = vunpack.c.h.b16 %v445
    %v1613 = vunpack.c.l.b16 %v446
    %v1614 = vunpack.c.h.b16 %v446
    %v1615 = vunpack.c.l.b16 %v447
    %v1616 = vunpack.c.h.b16 %v447
    %v1617 = vunpack.c.l.b16 %v448
    %v1618 = vunpack.c.h.b16 %v448
    %v1619 = vunpack.c.l.b16 %v449
    %v1620 = vunpack.c.h.b16 %v449
    %v1621 = vunpack.c.l.b16 %v450
    %v1622 = vunpack.c.h.b16 %v450
    %v1623 = vunpack.c.l.b16 %v451
    %v1624 = vunpack.c.h.b16 %v451
    %v1625 = vunpack.c.l.b16 %v452
    %v1626 = vunpack.c.h.b16 %v452
    %v1627 = vunpack.c.l.b16 %v453
    %v1628 = vunpack.c.h.b16 %v453
    %v1629 = vunpack.c.l.b16 %v454
    %v1630 = vunpack.c.h.b16 %v454
    %v1631 = vunpack.c.l.b16 %v455
    %v1632 = vunpack.c.h.b16 %v455
    %v1633 = vunpack.c.l.b16 %v456
    %v1634 = vunpack.c.h.b16 %v456
    %v1635 = vunpack.c.l.b16 %v457
    %v1636 = vunpack.c.h.b16 %v457
    %v1637 = vunpack.c.l.b16 %v458
    %v1638 = vunpack.c.h.b16 %v458
    %v1639 = vunpack.c.l.b16 %v459
    %v1640 = vunpack.c.h.b16 %v459
    %v1641 = vunpack.c.l.b16 %v460
    %v1642 = vunpack.c.h.b16 %v460
    %v1643 = vunpack.c.l.b16 %v461
    %v1644 = vunpack.c.h.b16 %v461
    %v1645 = vunpack.c.l.b16 %v462
    %v1646 = vunpack.c.h.b16 %v462
    %v1647 = vunpack.c.l.b16 %v463
    %v1648 = vunpack.c.h.b16 %v463
    %v1649 = vunpack.c.l.b16 %v464
    %v1650 = vunpack.c.h.b16 %v464
    %v1651 = vunpack.c.l.b16 %v465
    %v1652 = vunpack.c.h.b16 %v465
    %v1653 = vunpack.c.l.b16 %v466
    %v1654 = vunpack.c.h.b16 %v466
    %v1655 = vunpack.c.l.b16 %v467
    %v1656 = vunpack.c.h.b16 %v467
    %v1657 = vunpack.c.l.b16 %v468
    %v1658 = vunpack.c.h.b16 %v468
    %v1659 = vunpack.c.l.b16 %v469
    %v1660 = vunpack.c.h.b16 %v469
    %v1661 = vunpack.c.l.b16 %v470
    %v1662 = vunpack.c.h.b16 %v470
    %v1663 = vunpack.c.l.b16 %v471
    %v1664 = vunpack.c.h.b16 %v471
    %v1665 = vunpack.c.l.b16 %v472
    %v1666 = vunpack.c.h.b16 %v472
    %v1667 = vunpack.c.l.b16 %v473
    %v1668 = vunpack.c.h.b16 %v473
    %v1669 = vunpack.c.l.b16 %v474
    %v1670 = vunpack.c.h.b16 %v474
    %v1671 = vunpack.c.l.b16 %v475
    %v1672 = vunpack.c.h.b16 %v475
    %v1673 = vunpack.c.l.b16 %v476
    %v1674 = vunpack.c.h.b16 %v476
    %v1675 = vunpack.c.l.b16 %v477
    %v1676 = vunpack.c.h.b16 %v477
    %v1677 = vunpack.c.l.b16 %v478
    %v1678 = vunpack.c.h.b16 %v478
    %v1679 = vunpack.c.l.b16 %v479
    %v1680 = vunpack.c.h.b16 %v479
    %v1681 = vunpack.c.l.b16 %v480
    %v1682 = vunpack.c.h.b16 %v480
    %v1683 = vunpack.c.l.b16 %v481
    %v1684 = vunpack.c.h.b16 %v481
    %v1685 = vunpack.c.l.b16 %v482
    %v1686 = vunpack.c.h.b16 %v482
    %v1687 = vunpack.c.l.b16 %v483
    %v1688 = vunpack.c.h.b16 %v483
    %v1689 = vunpack.c.l.b16 %v484
    %v1690 = vunpack.c.h.b16 %v484
    %v1691 = vunpack.c.l.b16 %v485
    %v1692 = vunpack.c.h.b16 %v485
    %v1693 = vunpack.c.l.b16 %v486
    %v1694 = vunpack.c.h.b16 %v486
    %v1695 = vunpack.c.l.b16 %v487
    %v1696 = vunpack.c.h.b16 %v487
    %v1697 = vunpack.c.l.b16 %v488
    %v1698 = vunpack.c.h.b16 %v488
    %v1699 = vunpack.c.l.b16 %v489
    %v1700 = vunpack.c.h.b16 %v489
    %v1701 = vunpack.c.l.b16 %v490
    %v1702 = vunpack.c.h.b16 %v490
    %v1703 = vunpack.c.l.b16 %v491
    %v1704 = vunpack.c.h.b16 %v491
    %v1705 = vunpack.c.l.b16 %v492
    %v1706 = vunpack.c.h.b16 %v492
    %v1707 = vunpack.c.l.b16 %v493
    %v1708 = vunpack.c.h.b16 %v493
    %v1709 = vunpack.c.l.b16 %v494
    %v1710 = vunpack.c.h.b16 %v494
    %v1711 = vunpack.c.l.b16 %v495
    %v1712 = vunpack.c.h.b16 %v495
    %v1713 = vunpack.c.l.b16 %v496
    %v1714 = vunpack.c.h.b16 %v496
    %v1715 = vunpack.c.l.b16 %v497
    %v1716 = vunpack.c.h.b16 %v497
    %v1717 = vunpack.c.l.b16 %v498
    %v1718 = vunpack.c.h.b16 %v498
    %v1719 = vunpack.c.l.b16 %v499
    %v1720 = vunpack.c.h.b16 %v499
    %v1721 = vunpack.c.l.b16 %v500
    %v1722 = vunpack.c.h.b16 %v500
    %v1723 = vunpack.c.l.b16 %v501
    %v1724 = vunpack.c.h.b16 %v501
    %v1725 = vunpack.c.l.b16 %v502
    %v1726 = vunpack.c.h.b16 %v502
    %v1727 = vunpack.c.l.b16 %v503
    %v1728 = vunpack.c.h.b16 %v503
    %v1729 = vunpack.c.l.b16 %v504
    %v1730 = vunpack.c.h.b16 %v504
    %v1731 = vunpack.c.l.b16 %v505
    %v1732 = vunpack.c.h.b16 %v505
    %v1733 = vunpack.c.l.b16 %v506
    %v1734 = vunpack.c.h.b16 %v506
    %v1735 = vunpack.c.l.b16 %v507
    %v1736 = vunpack.c.h.b16 %v507
    %v1737 = vunpack.c.l.b16 %v508
    %v1738 = vunpack.c.h.b16 %v508
    %v1739 = vunpack.c.l.b16 %v509
    %v1740 = vunpack.c.h.b16 %v509
    %v1741 = vunpack.c.l.b16 %v510
    %v1742 = vunpack.c.h.b16 %v510
    %v1743 = vunpack.c.l.b16 %v511
    %v1744 = vunpack.c.h.b16 %v511
    %v1745 = vunpack.c.l.b16 %v512
    %v1746 = vunpack.c.h.b16 %v512
    %v1747 = vunpack.c.l.b16 %v513
    %v1748 = vunpack.c.h.b16 %v513
    %v1749 = vunpack.c.l.b16 %v514
    %v1750 = vunpack.c.h.b16 %v514
    %v1751 = vunpack.c.l.b16 %v515
    %v1752 = vunpack.c.h.b16 %v515
    %v1753 = vunpack.c.l.b16 %v516
    %v1754 = vunpack.c.h.b16 %v516
    %v1755 = vunpack.c.l.b16 %v517
    %v1756 = vunpack.c.h.b16 %v517
    %v1757 = vunpack.c.l.b16 %v518
    %v1758 = vunpack.c.h.b16 %v518
    %v1759 = vunpack.c.l.b16 %v519
    %v1760 = vunpack.c.h.b16 %v519
    %v1761 = vunpack.c.l.b16 %v520
    %v1762 = vunpack.c.h.b16 %v520
    %v1763 = vunpack.c.l.b16 %v521
    %v1764 = vunpack.c.h.b16 %v521
    %v1765 = vunpack.c.l.b16 %v522
    %v1766 = vunpack.c.h.b16 %v522
    %v1767 = vunpack.c.l.b16 %v523
    %v1768 = vunpack.c.h.b16 %v523
    %v1769 = vunpack.c.l.b16 %v524
    %v1770 = vunpack.c.h.b16 %v524
    %v1771 = vunpack.c.l.b16 %v525
    %v1772 = vunpack.c.h.b16 %v525
    %v1773 = vunpack.c.l.b16 %v526
    %v1774 = vunpack.c.h.b16 %v526
    %v1775 = vunpack.c.l.b16 %v527
    %v1776 = vunpack.c.h.b16 %v527
    %v1777 = vunpack.c.l.b16 %v528
    %v1778 = vunpack.c.h.b16 %v528
    %v1779 = vunpack.c.l.b16 %v529
    %v1780 = vunpack.c.h.b16 %v529
    %v1781 = vunpack.c.l.b16 %v530
    %v1782 = vunpack.c.h.b16 %v530
    %v1783 = vunpack.c.l.b16 %v531
    %v1784 = vunpack.c.h.b16 %v531
    %v1785 = vunpack.c.l.b16 %v532
    %v1786 = vunpack.c.h.b16 %v532
    %v1787 = vunpack.c.l.b16 %v533
    %v1788 = vunpack.c.h.b16 %v533
    %v1789 = vunpack.c.l.b16 %v534
    %v1790 = vunpack.c.h.b16 %v534
    %v1791 = vunpack.c.l.b16 %v535
    %v1792 = vunpack.c.h.b16 %v535
    %v1793 = vunpack.c.l.b16 %v536
    %v1794 = vunpack.c.h.b16 %v536
    %v1795 = vunpack.c.l.b16 %v537
    %v1796 = vunpack.c.h.b16 %v537
    %v1797 = vunpack.c.l.b16 %v538
    %v1798 = vunpack.c.h.b16 %v538
    %v1799 = vunpack.c.l.b16 %v539
    %v1800 = vunpack.c.h.b16 %v539
    %v1801 = vunpack.c.l.b16 %v540
    %v1802 = vunpack.c.h.b16 %v540
    %v1803 = vunpack.c.l.b16 %v541
    %v1804 = vunpack.c.h.b16 %v541
    %v1805 = vunpack.c.l.b16 %v542
    %v1806 = vunpack.c.h.b16 %v542
    %v1807 = vunpack.c.l.b16 %v543
    %v1808 = vunpack.c.h.b16 %v543
    %v1809 = vunpack.c.l.b16 %v544
    %v1810 = vunpack.c.h.b16 %v544
    %v1811 = vunpack.c.l.b16 %v545
    %v1812 = vunpack.c.h.b16 %v545
    %v1813 = vunpack.c.l.b16 %v546
    %v1814 = vunpack.c.h.b16 %v546
    %v1815 = vunpack.c.l.b16 %v547
    %v1816 = vunpack.c.h.b16 %v547
    %v1817 = vunpack.c.l.b16 %v548
    %v1818 = vunpack.c.h.b16 %v548
    %v1819 = vunpack.c.l.b16 %v549
    %v1820 = vunpack.c.h.b16 %v549
    %v1821 = vunpack.c.l.b16 %v550
    %v1822 = vunpack.c.h.b16 %v550
    %v1823 = vunpack.c.l.b16 %v551
    %v1824 = vunpack.c.h.b16 %v551
    %v1825 = vunpack.c.l.b16 %v552
    %v1826 = vunpack.c.h.b16 %v552
    %v1827 = vunpack.c.l.b16 %v553
    %v1828 = vunpack.c.h.b16 %v553
    %v1829 = vunpack.c.l.b16 %v554
    %v1830 = vunpack.c.h.b16 %v554
    %v1831 = vunpack.c.l.b16 %v555
    %v1832 = vunpack.c.h.b16 %v555
    %v1833 = vunpack.c.l.b16 %v556
    %v1834 = vunpack.c.h.b16 %v556
    %v1835 = vunpack.c.l.b16 %v557
    %v1836 = vunpack.c.h.b16 %v557
    %v1837 = vunpack.c.l.b16 %v558
    %v1838 = vunpack.c.h.b16 %v558
    %v1839 = vunpack.c.l.b16 %v559
    %v1840 = vunpack.c.h.b16 %v559
    %v1841 = vunpack.c.l.b16 %v560
    %v1842 = vunpack.c.h.b16 %v560
    %v1843 = vunpack.c.l.b16 %v561
    %v1844 = vunpack.c.h.b16 %v561
    %v1845 = vunpack.c.l.b16 %v562
    %v1846 = vunpack.c.h.b16 %v562
    %v1847 = vunpack.c.l.b16 %v563
    %v1848 = vunpack.c.h.b16 %v563
    %v1849 = vunpack.c.l.b16 %v564
    %v1850 = vunpack.c.h.b16 %v564
    %v1851 = vunpack.c.l.b16 %v565
    %v1852 = vunpack.c.h.b16 %v565
    %v1853 = vunpack.c.l.b16 %v566
    %v1854 = vunpack.c.h.b16 %v566
    %v1855 = vpack.c.b16 %v1057, %v1055
    %v1856 = vpack.c.b16 %v1058, %v1056
    %v1857 = vpack.c.b16 %v1061, %v1059
    %v1858 = vpack.c.b16 %v1062, %v1060
    %v1859 = vpack.c.b16 %v1065, %v1063
    %v1860 = vpack.c.b16 %v1066, %v1064
    %v1861 = vpack.c.b16 %v1069, %v1067
    %v1862 = vpack.c.b16 %v1070, %v1068
    %v1863 = vpack.c.b16 %v1073, %v1071
    %v1864 = vpack.c.b16 %v1074, %v1072
    %v1865 = vpack.c.b16 %v1077, %v1075
    %v1866 = vpack.c.b16 %v1078, %v1076
    %v1867 = vpack.c.b16 %v1081, %v1079
    %v1868 = vpack.c.b16 %v1082, %v1080
    %v1869 = vpack.c.b16 %v1085, %v1083
    %v1870 = vpack.c.b16 %v1086, %v1084
    %v1871 = vpack.c.b16 %v1089, %v1087
    %v1872 = vpack.c.b16 %v1090, %v1088
    %v1873 = vpack.c.b16 %v1093, %v1091
    %v1874 = vpack.c.b16 %v1094, %v1092
    %v1875 = vpack.c.b16 %v1097, %v1095
    %v1876 = vpack.c.b16 %v1098, %v1096
    %v1877 = vpack.c.b16 %v1101, %v1099
    %v1878 = vpack.c.b16 %v1102, %v1100
    %v1879 = vpack.c.b16 %v1105, %v1103
    %v1880 = vpack.c.b16 %v1106, %v1104
    %v1881 = vpack.c.b16 %v1109, %v1107
    %v1882 = vpack.c.b16 %v1110, %v1108
    %v1883 = vpack.c.b16 %v1113, %v1111
    %v1884 = vpack.c.b16 %v1114, %v1112
    %v1885 = vpack.c.b16 %v1117, %v1115
    %v1886 = vpack.c.b16 %v1118, %v1116
    %v1887 = vpack.c.b16 %v1121, %v1119
    %v1888 = vpack.c.b16 %v1122, %v1120
    %v1889 = vpack.c.b16 %v1125, %v1123
    %v1890 = vpack.c.b16 %v1126, %v1124
    %v1891 = vpack.c.b16 %v1129, %v1127
    %v1892 = vpack.c.b16 %v1130, %v1128
    %v1893 = vpack.c.b16 %v1133, %v1131
    %v1894 = vpack.c.b16 %v1134, %v1132
    %v1895 = vpack.c.b16 %v1137, %v1135
    %v1896 = vpack.c.b16 %v1138, %v1136
    %v1897 = vpack.c.b16 %v1141, %v1139
    %v1898 = vpack.c.b16 %v1142, %v1140
    %v1899 = vpack.c.b16 %v1145, %v1143
    %v1900 = vpack.c.b16 %v1146, %v1144
    %v1901 = vpack.c.b16 %v1149, %v1147
    %v1902 = vpack.c.b16 %v1150, %v1148
    %v1903 = vpack.c.b16 %v1153, %v1151
    %v1904 = vpack.c.b16 %v1154, %v1152
    %v1905 = vpack.c.b16 %v1157, %v1155
    %v1906 = vpack.c.b16 %v1158, %v1156
    %v1907 = vpack.c.b16 %v1161, %v1159
    %v1908 = vpack.c.b16 %v1162, %v1160
    %v1909 = vpack.c.b16 %v1165, %v1163
    %v1910 = vpack.c.b16 %v1166, %v1164
    %v1911 = vpack.c.b16 %v1169, %v1167
    %v1912 = vpack.c.b16 %v1170, %v1168
    %v1913 = vpack.c.b16 %v1173, %v1171
    %v1914 = vpack.c.b16 %v1174, %v1172
    %v1915 = vpack.c.b16 %v1177, %v1175
    %v1916 = vpack.c.b16 %v1178, %v1176
    %v1917 = vpack.c.b16 %v1181, %v1179
    %v1918 = vpack.c.b16 %v1182, %v1180
    %v1919 = vpack.c.b16 %v1185, %v1183
    %v1920 = vpack.c.b16 %v1186, %v1184
    %v1921 = vpack.c.b16 %v1189, %v1187
    %v1922 = vpack.c.b16 %v1190, %v1188
    %v1923 = vpack.c.b16 %v1193, %v1191
    %v1924 = vpack.c.b16 %v1194, %v1192
    %v1925 = vpack.c.b16 %v1197, %v1195
    %v1926 = vpack.c.b16 %v1198, %v1196
    %v1927 = vpack.c.b16 %v1201, %v1199
    %v1928 = vpack.c.b16 %v1202, %v1200
    %v1929 = vpack.c.b16 %v1205, %v1203
    %v1930 = vpack.c.b16 %v1206, %v1204
    %v1931 = vpack.c.b16 %v1209, %v1207
    %v1932 = vpack.c.b16 %v1210, %v1208
    %v1933 = vpack.c.b16 %v1213, %v1211
    %v1934 = vpack.c.b16 %v1214, %v1212
    %v1935 = vpack.c.b16 %v1217, %v1215
    %v1936 = vpack.c.b16 %v1218, %v1216
    %v1937 = vpack.c.b16 %v1221, %v1219
    %v1938 = vpack.c.b16 %v1222, %v1220
    %v1939 = vpack.c.b16 %v1225, %v1223
    %v1940 = vpack.c.b16 %v1226, %v1224
    %v1941 = vpack.c.b16 %v1229, %v1227
    %v1942 = vpack.c.b16 %v1230, %v1228
    %v1943 = vpack.c.b16 %v1233, %v1231
    %v1944 = vpack.c.b16 %v1234, %v1232
    %v1945 = vpack.c.b16 %v1237, %v1235
    %v1946 = vpack.c.b16 %v1238, %v1236
    %v1947 = vpack.c.b16 %v1241, %v1239
    %v1948 = vpack.c.b16 %v1242, %v1240
    %v1949 = vpack.c.b16 %v1245, %v1243
    %v1950 = vpack.c.b16 %v1246, %v1244
    %v1951 = vpack.c.b16 %v1249, %v1247
    %v1952 = vpack.c.b16 %v1250, %v1248
    %v1953 = vpack.c.b16 %v1253, %v1251
    %v1954 = vpack.c.b16 %v1254, %v1252
    %v1955 = vpack.c.b16 %v1257, %v1255
    %v1956 = vpack.c.b16 %v1258, %v1256
    %v1957 = vpack.c.b16 %v1261, %v1259
    %v1958 = vpack.c.b16 %v1262, %v1260
    %v1959 = vpack.c.b16 %v1265, %v1263
    %v1960 = vpack.c.b16 %v1266, %v1264
    %v1961 = vpack.c.b16 %v1269, %v1267
    %v1962 = vpack.c.b16 %v1270, %v1268
    %v1963 = vpack.c.b16 %v1273, %v1271
    %v1964 = vpack.c.b16 %v1274, %v1272
    %v1965 = vpack.c.b16 %v1277, %v1275
    %v1966 = vpack.c.b16 %v1278, %v1276
    %v1967 = vpack.c.b16 %v1281, %v1279
    %v1968 = vpack.c.b16 %v1282, %v1280
    %v1969 = vpack.c.b16 %v1285, %v1283
    %v1970 = vpack.c.b16 %v1286, %v1284
    %v1971 = vpack.c.b16 %v1289, %v1287
    %v1972 = vpack.c.b16 %v1290, %v1288
    %v1973 = vpack.c.b16 %v1293, %v1291
    %v1974 = vpack.c.b16 %v1294, %v1292
    %v1975 = vpack.c.b16 %v1297, %v1295
    %v1976 = vpack.c.b16 %v1298, %v1296
    %v1977 = vpack.c.b16 %v1301, %v1299
    %v1978 = vpack.c.b16 %v1302, %v1300
    %v1979 = vpack.c.b16 %v1305, %v1303
    %v1980 = vpack.c.b16 %v1306, %v1304
    %v1981 = vpack.c.b16 %v1309, %v1307
    %v1982 = vpack.c.b16 %v1310, %v1308
    %v1983 = vpack.c.b16 %v1313, %v1311
    %v1984 = vpack.c.b16 %v1314, %v1312
    %v1985 = vpack.c.b16 %v1317, %v1315
    %v1986 = vpack.c.b16 %v1318, %v1316
    %v1987 = vpack.c.b16 %v1321, %v1319
    %v1988 = vpack.c.b16 %v1322, %v1320
    %v1989 = vpack.c.b16 %v1325, %v1323
    %v1990 = vpack.c.b16 %v1326, %v1324
    %v1991 = vpack.c.b16 %v1329, %v1327
    %v1992 = vpack.c.b16 %v1330, %v1328
    %v1993 = vpack.c.b16 %v1333, %v1331
    %v1994 = vpack.c.b16 %v1334, %v1332
    %v1995 = vpack.c.b16 %v1337, %v1335
    %v1996 = vpack.c.b16 %v1338, %v1336
    %v1997 = vpack.c.b16 %v1341, %v1339
    %v1998 = vpack.c.b16 %v1342, %v1340
    %v1999 = vpack.c.b16 %v1345, %v1343
    %v2000 = vpack.c.b16 %v1346, %v1344
    %v2001 = vpack.c.b16 %v1349, %v1347
    %v2002 = vpack.c.b16 %v1350, %v1348
    %v2003 = vpack.c.b16 %v1353, %v1351
    %v2004 = vpack.c.b16 %v1354, %v1352
    %v2005 = vpack.c.b16 %v1357, %v1355
    %v2006 = vpack.c.b16 %v1358, %v1356
    %v2007 = vpack.c.b16 %v1361, %v1359
    %v2008 = vpack.c.b16 %v1362, %v1360
    %v2009 = vpack.c.b16 %v1365, %v1363
    %v2010 = vpack.c.b16 %v1366, %v1364
    %v2011 = vpack.c.b16 %v1369, %v1367
    %v2012 = vpack.c.b16 %v1370, %v1368
    %v2013 = vpack.c.b16 %v1373, %v1371
    %v2014 = vpack.c.b16 %v1374, %v1372
    %v2015 = vpack.c.b16 %v1377, %v1375
    %v2016 = vpack.c.b16 %v1378, %v1376
    %v2017 = vpack.c.b16 %v1381, %v1379
    %v2018 = vpack.c.b16 %v1382, %v1380
    %v2019 = vpack.c.b16 %v1385, %v1383
    %v2020 = vpack.c.b16 %v1386, %v1384
    %v2021 = vpack.c.b16 %v1389, %v1387
    %v2022 = vpack.c.b16 %v1390, %v1388
    %v2023 = vpack.c.b16 %v1393, %v1391
    %v2024 = vpack.c.b16 %v1394, %v1392
    %v2025 = vpack.c.b16 %v1397, %v1395
    %v2026 = vpack.c.b16 %v1398, %v1396
    %v2027 = vpack.c.b16 %v1401, %v1399
    %v2028 = vpack.c.b16 %v1402, %v1400
    %v2029 = vpack.c.b16 %v1405, %v1403
    %v2030 = vpack.c.b16 %v1406, %v1404
    %v2031 = vpack.c.b16 %v1409, %v1407
    %v2032 = vpack.c.b16 %v1410, %v1408
    %v2033 = vpack.c.b16 %v1413, %v1411
    %v2034 = vpack.c.b16 %v1414, %v1412
    %v2035 = vpack.c.b16 %v1417, %v1415
    %v2036 = vpack.c.b16 %v1418, %v1416
    %v2037 = vpack.c.b16 %v1421, %v1419
    %v2038 = vpack.c.b16 %v1422, %v1420
    %v2039 = vpack.c.b16 %v1425, %v1423
    %v2040 = vpack.c.b16 %v1426, %v1424
    %v2041 = vpack.c.b16 %v1429, %v1427
    %v2042 = vpack.c.b16 %v1430, %v1428
    %v2043 = vpack.c.b16 %v1433, %v1431
    %v2044 = vpack.c.b16 %v1434, %v1432
    %v2045 = vpack.c.b16 %v1437, %v1435
    %v2046 = vpack.c.b16 %v1438, %v1436
    %v2047 = vpack.c.b16 %v1441, %v1439
    %v2048 = vpack.c.b16 %v1442, %v1440
    %v2049 = vpack.c.b16 %v1445, %v1443
    %v2050 = vpack.c.b16 %v1446, %v1444
    %v2051 = vpack.c.b16 %v1449, %v1447
    %v2052 = vpack.c.b16 %v1450, %v1448
    %v2053 = vpack.c.b16 %v1453, %v1451
    %v2054 = vpack.c.b16 %v1454, %v1452
    %v2055 = vpack.c.b16 %v1457, %v1455
    %v2056 = vpack.c.b16 %v1458, %v1456
    %v2057 = vpack.c.b16 %v1461, %v1459
    %v2058 = vpack.c.b16 %v1462, %v1460
    %v2059 = vpack.c.b16 %v1465, %v1463
    %v2060 = vpack.c.b16 %v1466, %v1464
    %v2061 = vpack.c.b16 %v1469, %v1467
    %v2062 = vpack.c.b16 %v1470, %v1468
    %v2063 = vpack.c.b16 %v1473, %v1471
    %v2064 = vpack.c.b16 %v1474, %v1472
    %v2065 = vpack.c.b16 %v1477, %v1475
    %v2066 = vpack.c.b16 %v1478, %v1476
    %v2067 = vpack.c.b16 %v1481, %v1479
    %v2068 = vpack.c.b16 %v1482, %v1480
    %v2069 = vpack.c.b16 %v1485, %v1483
    %v2070 = vpack.c.b16 %v1486, %v1484
    %v2071 = vpack.c.b16 %v1489, %v1487
    %v2072 = vpack.c.b16 %v1490, %v1488
    %v2073 = vpack.c.b16 %v1493, %v1491
    %v2074 = vpack.c.b16 %v1494, %v1492
    %v2075 = vpack.c.b16 %v1497, %v1495
    %v2076 = vpack.c.b16 %v1498, %v1496
    %v2077 = vpack.c.b16 %v1501, %v1499
    %v2078 = vpack.c.b16 %v1502, %v1500
    %v2079 = vpack.c.b16 %v1505, %v1503
    %v2080 = vpack.c.b16 %v1506, %v1504
    %v2081 = vpack.c.b16 %v1509, %v1507
    %v2082 = vpack.c.b16 %v1510, %v1508
    %v2083 = vpack.c.b16 %v1513, %v1511
    %v2084 = vpack.c.b16 %v1514, %v1512
    %v2085 = vpack.c.b16 %v1517, %v1515
    %v2086 = vpack.c.b16 %v1518, %v1516
    %v2087 = vpack.c.b16 %v1521, %v1519
    %v2088 = vpack.c.b16 %v1522, %v1520
    %v2089 = vpack.c.b16 %v1525, %v1523
    %v2090 = vpack.c.b16 %v1526, %v1524
    %v2091 = vpack.c.b16 %v1529, %v1527
    %v2092 = vpack.c.b16 %v1530, %v1528
    %v2093 = vpack.c.b16 %v1533, %v1531
    %v2094 = vpack.c.b16 %v1534, %v1532
    %v2095 = vpack.c.b16 %v1537, %v1535
    %v2096 = vpack.c.b16 %v1538, %v1536
    %v2097 = vpack.c.b16 %v1541, %v1539
    %v2098 = vpack.c.b16 %v1542, %v1540
    %v2099 = vpack.c.b16 %v1545, %v1543
    %v2100 = vpack.c.b16 %v1546, %v1544
    %v2101 = vpack.c.b16 %v1549, %v1547
    %v2102 = vpack.c.b16 %v1550, %v1548
    %v2103 = vpack.c.b16 %v1553, %v1551
    %v2104 = vpack.c.b16 %v1554, %v1552
    %v2105 = vpack.c.b16 %v1557, %v1555
    %v2106 = vpack.c.b16 %v1558, %v1556
    %v2107 = vpack.c.b16 %v1561, %v1559
    %v2108 = vpack.c.b16 %v1562, %v1560
    %v2109 = vpack.c.b16 %v1565, %v1563
    %v2110 = vpack.c.b16 %v1566, %v1564
    %v2111 = vpack.c.b16 %v1569, %v1567
    %v2112 = vpack.c.b16 %v1570, %v1568
    %v2113 = vpack.c.b16 %v1573, %v1571
    %v2114 = vpack.c.b16 %v1574, %v1572
    %v2115 = vpack.c.b16 %v1577, %v1575
    %v2116 = vpack.c.b16 %v1578, %v1576
    %v2117 = vpack.c.b16 %v1581, %v1579
    %v2118 = vpack.c.b16 %v1582, %v1580
    %v2119 = vpack.c.b16 %v1585, %v1583
    %v2120 = vpack.c.b16 %v1586, %v1584
    %v2121 = vpack.c.b16 %v1589, %v1587
    %v2122 = vpack.c.b16 %v1590, %v1588
    %v2123 = vpack.c.b16 %v1593, %v1591
    %v2124 = vpack.c.b16 %v1594, %v1592
    %v2125 = vpack.c.b16 %v1597, %v1595
    %v2126 = vpack.c.b16 %v1598, %v1596
    %v2127 = vpack.c.b16 %v1601, %v1599
    %v2128 = vpack.c.b16 %v1602, %v1600
    %v2129 = vpack.c.b16 %v1605, %v1603
    %v2130 = vpack.c.b16 %v1606, %v1604
    %v2131 = vpack.c.b16 %v1609, %v1607
    %v2132 = vpack.c.b16 %v1610, %v1608
    %v2133 = vpack.c.b16 %v1613, %v1611
    %v2134 = vpack.c.b16 %v1614, %v1612
    %v2135 = vpack.c.b16 %v1617, %v1615
    %v2136 = vpack.c.b16 %v1618, %v1616
    %v2137 = vpack.c.b16 %v1621, %v1619
    %v2138 = vpack.c.b16 %v1622, %v1620
    %v2139 = vpack.c.b16 %v1625, %v1623
    %v2140 = vpack.c.b16 %v1626, %v1624
    %v2141 = vpack.c.b16 %v1629, %v1627
    %v2142 = vpack.c.b16 %v1630, %v1628
    %v2143 = vpack.c.b16 %v1633, %v1631
    %v2144 = vpack.c.b16 %v1634, %v1632
    %v2145 = vpack.c.b16 %v1637, %v1635
    %v2146 = vpack.c.b16 %v1638, %v1636
    %v2147 = vpack.c.b16 %v1641, %v1639
    %v2148 = vpack.c.b16 %v1642, %v1640
    %v2149 = vpack.c.b16 %v1645, %v1643
    %v2150 = vpack.c.b16 %v1646, %v1644
    %v2151 = vpack.c.b16 %v1649, %v1647
    %v2152 = vpack.c.b16 %v1650, %v1648
    %v2153 = vpack.c.b16 %v1653, %v1651
    %v2154 = vpack.c.b16 %v1654, %v1652
    %v2155 = vpack.c.b16 %v1657, %v1655
    %v2156 = vpack.c.b16 %v1658, %v1656
    %v2157 = vpack.c.b16 %v1661, %v1659
    %v2158 = vpack.c.b16 %v1662, %v1660
    %v2159 = vpack.c.b16 %v1665, %v1663
    %v2160 = vpack.c.b16 %v1666, %v1664
    %v2161 = vpack.c.b16 %v1669, %v1667
    %v2162 = vpack.c.b16 %v1670, %v1668
    %v2163 = vpack.c.b16 %v1673, %v1671
    %v2164 = vpack.c.b16 %v1674, %v1672
    %v2165 = vpack.c.b16 %v1677, %v1675
    %v2166 = vpack.c.b16 %v1678, %v1676
    %v2167 = vpack.c.b16 %v1681, %v1679
    %v2168 = vpack.c.b16 %v1682, %v1680
    %v2169 = vpack.c.b16 %v1685, %v1683
    %v2170 = vpack.c.b16 %v1686, %v1684
    %v2171 = vpack.c.b16 %v1689, %v1687
    %v2172 = vpack.c.b16 %v1690, %v1688
    %v2173 = vpack.c.b16 %v1693, %v1691
    %v2174 = vpack.c.b16 %v1694, %v1692
    %v2175 = vpack.c.b16 %v1697, %v1695
    %v2176 = vpack.c.b16 %v1698, %v1696
    %v2177 = vpack.c.b16 %v1701, %v1699
    %v2178 = vpack.c.b16 %v1702, %v1700
    %v2179 = vpack.c.b16 %v1705, %v1703
    %v2180 = vpack.c.b16 %v1706, %v1704
    %v2181 = vpack.c.b16 %v1709, %v1707
    %v2182 = vpack.c.b16 %v1710, %v1708
    %v2183 = vpack.c.b16 %v1713, %v1711
    %v2184 = vpack.c.b16 %v1714, %v1712
    %v2185 = vpack.c.b16 %v1717, %v1715
    %v2186 = vpack.c.b16 %v1718, %v1716
    %v2187 = vpack.c.b16 %v1721, %v1719
    %v2188 = vpack.c.b16 %v1722, %v1720
    %v2189 = vpack.c.b16 %v1725, %v1723
    %v2190 = vpack.c.b16 %v1726, %v1724
    %v2191 = vpack.c.b16 %v1729, %v1727
    %v2192 = vpack.c.b16 %v1730, %v1728
    %v2193 = vpack.c.b16 %v1733, %v1731
    %v2194 = vpack.c.b16 %v1734, %v1732
    %v2195 = vpack.c.b16 %v1737, %v1735
    %v2196 = vpack.c.b16 %v1738, %v1736
    %v2197 = vpack.c.b16 %v1741, %v1739
    %v2198 = vpack.c.b16 %v1742, %v1740
    %v2199 = vpack.c.b16 %v1745, %v1743
    %v2200 = vpack.c.b16 %v1746, %v1744
    %v2201 = vpack.c.b16 %v1749, %v1747
    %v2202 = vpack.c.b16 %v1750, %v1748
    %v2203 = vpack.c.b16 %v1753, %v1751
    %v2204 = vpack.c.b16 %v1754, %v1752
    %v2205 = vpack.c.b16 %v1757, %v1755
    %v2206 = vpack.c.b16 %v1758, %v1756
    %v2207 = vpack.c.b16 %v1761, %v1759
    %v2208 = vpack.c.b16 %v1762, %v1760
    %v2209 = vpack.c.b16 %v1765, %v1763
    %v2210 = vpack.c.b16 %v1766, %v1764
    %v2211 = vpack.c.b16 %v1769, %v1767
    %v2212 = vpack.c.b16 %v1770, %v1768
    %v2213 = vpack.c.b16 %v1773, %v1771
    %v2214 = vpack.c.b16 %v1774, %v1772
    %v2215 = vpack.c.b16 %v1777, %v1775
    %v2216 = vpack.c.b16 %v1778, %v1776
    %v2217 = vpack.c.b16 %v1781, %v1779
    %v2218 = vpack.c.b16 %v1782, %v1780
    %v2219 = vpack.c.b16 %v1785, %v1783
    %v2220 = vpack.c.b16 %v1786, %v1784
    %v2221 = vpack.c.b16 %v1789, %v1787
    %v2222 = vpack.c.b16 %v1790, %v1788
    %v2223 = vpack.c.b16 %v1793, %v1791
    %v2224 = vpack.c.b16 %v1794, %v1792
    %v2225 = vpack.c.b16 %v1797, %v1795
    %v2226 = vpack.c.b16 %v1798, %v1796
    %v2227 = vpack.c.b16 %v1801, %v1799
    %v2228 = vpack.c.b16 %v1802, %v1800
    %v2229 = vpack.c.b16 %v1805, %v1803
    %v2230 = vpack.c.b16 %v1806, %v1804
    %v2231 = vpack.c.b16 %v1809, %v1807
    %v2232 = vpack.c.b16 %v1810, %v1808
    %v2233 = vpack.c.b16 %v1813, %v1811
    %v2234 = vpack.c.b16 %v1814, %v1812
    %v2235 = vpack.c.b16 %v1817, %v1815
    %v2236 = vpack.c.b16 %v1818, %v1816
    %v2237 = vpack.c.b16 %v1821, %v1819
    %v2238 = vpack.c.b16 %v1822, %v1820
    %v2239 = vpack.c.b16 %v1825, %v1823
    %v2240 = vpack.c.b16 %v1826, %v1824
    %v2241 = vpack.c.b16 %v1829, %v1827
    %v2242 = vpack.c.b16 %v1830, %v1828
    %v2243 = vpack.c.b16 %v1833, %v1831
    %v2244 = vpack.c.b16 %v1834, %v1832
    %v2245 = vpack.c.b16 %v1837, %v1835
    %v2246 = vpack.c.b16 %v1838, %v1836
    %v2247 = vpack.c.b16 %v1841, %v1839
    %v2248 = vpack.c.b16 %v1842, %v1840
    %v2249 = vpack.c.b16 %v1845, %v1843
    %v2250 = vpack.c.b16 %v1846, %v1844
    %v2251 = vpack.c.b16 %v1849, %v1847
    %v2252 = vpack.c.b16 %v1850, %v1848
    %v2253 = vpack.c.b16 %v1853, %v1851
    %v2254 = vpack.c.b16 %v1854, %v1852
    %2655 = vmatprep.subr.bf16.mxu0 %v1870
    %2656 = vmatpush1.bf16.msra.mxu0 %v1869
    %2657 = vmatprep.subr.bf16.mxu0 %v1868
    %2658 = vmatpush1.bf16.msra.mxu0 %v1867
    %2659 = vmatprep.subr.bf16.mxu0 %v1866
    %2660 = vmatpush1.bf16.msra.mxu0 %v1865
    %2661 = vmatprep.subr.bf16.mxu0 %v1864
    %2662 = vmatpush1.bf16.msra.mxu0 %v1863
    %2663 = vmatprep.subr.bf16.mxu0 %v1862
    %2664 = vmatpush1.bf16.msra.mxu0 %v1861
    %2665 = vmatprep.subr.bf16.mxu0 %v1860
    %2666 = vmatpush1.bf16.msra.mxu0 %v1859
    %2667 = vmatprep.subr.bf16.mxu0 %v1858
    %2668 = vmatpush1.bf16.msra.mxu0 %v1857
    %2669 = vmatprep.subr.bf16.mxu0 %v1856
    %2670 = vmatpush1.bf16.msra.mxu0 %v1855
    %2671 = vmatprep.subr.bf16.mxu0 %v1886
    %2672 = vmatpush2.bf16.msra.mxu0 %v1885
    %2673 = vmatprep.subr.bf16.mxu0 %v1884
    %2674 = vmatpush2.bf16.msra.mxu0 %v1883
    %2675 = vmatprep.subr.bf16.mxu0 %v1882
    %2676 = vmatpush2.bf16.msra.mxu0 %v1881
    %2677 = vmatprep.subr.bf16.mxu0 %v1880
    %2678 = vmatpush2.bf16.msra.mxu0 %v1879
    %2679 = vmatprep.subr.bf16.mxu0 %v1878
    %2680 = vmatpush2.bf16.msra.mxu0 %v1877
    %2681 = vmatprep.subr.bf16.mxu0 %v1876
    %2682 = vmatpush2.bf16.msra.mxu0 %v1875
    %2683 = vmatprep.subr.bf16.mxu0 %v1874
    %2684 = vmatpush2.bf16.msra.mxu0 %v1873
    %2685 = vmatprep.subr.bf16.mxu0 %v1872
    %2686 = vmatpush2.bf16.msra.mxu0 %v1871
    %2687 = vmatprep.mubr.bf16.mxu0 %v606
    %2688 = vmatmul.mubr.bf16.gmra.mxu0 %v605
    %v2689 = vpop.f32.mrf.mxu0
    %v2690 = vadd.f32 0.0, %v2689
    %v2691 = vpop.f32.mrf.mxu0
    %v2692 = vadd.f32 0.0, %v2691
    %v2693 = vpop.f32.mrf.mxu0
    %v2694 = vpop.f32.mrf.mxu0
    %2695 = vdwg.mxu0
    %2696 = vmatprep.subr.bf16.mxu0 %v1902
    %2697 = vmatpush1.bf16.msra.mxu0 %v1901
    %2698 = vmatprep.subr.bf16.mxu0 %v1900
    %2699 = vmatpush1.bf16.msra.mxu0 %v1899
    %2700 = vmatprep.subr.bf16.mxu0 %v1898
    %2701 = vmatpush1.bf16.msra.mxu0 %v1897
    %2702 = vmatprep.subr.bf16.mxu0 %v1896
    %2703 = vmatpush1.bf16.msra.mxu0 %v1895
    %2704 = vmatprep.subr.bf16.mxu0 %v1894
    %2705 = vmatpush1.bf16.msra.mxu0 %v1893
    %2706 = vmatprep.subr.bf16.mxu0 %v1892
    %2707 = vmatpush1.bf16.msra.mxu0 %v1891
    %2708 = vmatprep.subr.bf16.mxu0 %v1890
    %2709 = vmatpush1.bf16.msra.mxu0 %v1889
    %2710 = vmatprep.subr.bf16.mxu0 %v1888
    %2711 = vmatpush1.bf16.msra.mxu0 %v1887
    %2712 = vmatprep.subr.bf16.mxu0 %v1918
    %2713 = vmatpush2.bf16.msra.mxu0 %v1917
    %2714 = vmatprep.subr.bf16.mxu0 %v1916
    %2715 = vmatpush2.bf16.msra.mxu0 %v1915
    %2716 = vmatprep.subr.bf16.mxu0 %v1914
    %2717 = vmatpush2.bf16.msra.mxu0 %v1913
    %2718 = vmatprep.subr.bf16.mxu0 %v1912
    %2719 = vmatpush2.bf16.msra.mxu0 %v1911
    %2720 = vmatprep.subr.bf16.mxu0 %v1910
    %2721 = vmatpush2.bf16.msra.mxu0 %v1909
    %2722 = vmatprep.subr.bf16.mxu0 %v1908
    %2723 = vmatpush2.bf16.msra.mxu0 %v1907
    %2724 = vmatprep.subr.bf16.mxu0 %v1906
    %2725 = vmatpush2.bf16.msra.mxu0 %v1905
    %2726 = vmatprep.subr.bf16.mxu0 %v1904
    %2727 = vmatpush2.bf16.msra.mxu0 %v1903
    %2728 = vmatprep.mubr.bf16.mxu0 %v608
    %2729 = vmatmul.mubr.bf16.gmra.mxu0 %v607
    %v2730 = vpop.f32.mrf.mxu0
    %v2731 = vadd.f32 %v2690, %v2730
    %v2732 = vpop.f32.mrf.mxu0
    %v2733 = vadd.f32 %v2692, %v2732
    %v2734 = vpop.f32.mrf.mxu0
    %v2735 = vpop.f32.mrf.mxu0
    %2736 = vdwg.mxu0
    %2737 = vmatprep.subr.bf16.mxu0 %v1934
    %2738 = vmatpush1.bf16.msra.mxu0 %v1933
    %2739 = vmatprep.subr.bf16.mxu0 %v1932
    %2740 = vmatpush1.bf16.msra.mxu0 %v1931
    %2741 = vmatprep.subr.bf16.mxu0 %v1930
    %2742 = vmatpush1.bf16.msra.mxu0 %v1929
    %2743 = vmatprep.subr.bf16.mxu0 %v1928
    %2744 = vmatpush1.bf16.msra.mxu0 %v1927
    %2745 = vmatprep.subr.bf16.mxu0 %v1926
    %2746 = vmatpush1.bf16.msra.mxu0 %v1925
    %2747 = vmatprep.subr.bf16.mxu0 %v1924
    %2748 = vmatpush1.bf16.msra.mxu0 %v1923
    %2749 = vmatprep.subr.bf16.mxu0 %v1922
    %2750 = vmatpush1.bf16.msra.mxu0 %v1921
    %2751 = vmatprep.subr.bf16.mxu0 %v1920
    %2752 = vmatpush1.bf16.msra.mxu0 %v1919
    %2753 = vmatprep.subr.bf16.mxu0 %v1950
    %2754 = vmatpush2.bf16.msra.mxu0 %v1949
    %2755 = vmatprep.subr.bf16.mxu0 %v1948
    %2756 = vmatpush2.bf16.msra.mxu0 %v1947
    %2757 = vmatprep.subr.bf16.mxu0 %v1946
    %2758 = vmatpush2.bf16.msra.mxu0 %v1945
    %2759 = vmatprep.subr.bf16.mxu0 %v1944
    %2760 = vmatpush2.bf16.msra.mxu0 %v1943
    %2761 = vmatprep.subr.bf16.mxu0 %v1942
    %2762 = vmatpush2.bf16.msra.mxu0 %v1941
    %2763 = vmatprep.subr.bf16.mxu0 %v1940
    %2764 = vmatpush2.bf16.msra.mxu0 %v1939
    %2765 = vmatprep.subr.bf16.mxu0 %v1938
    %2766 = vmatpush2.bf16.msra.mxu0 %v1937
    %2767 = vmatprep.subr.bf16.mxu0 %v1936
    %2768 = vmatpush2.bf16.msra.mxu0 %v1935
    %2769 = vmatprep.mubr.bf16.mxu0 %v610
    %2770 = vmatmul.mubr.bf16.gmra.mxu0 %v609
    %v2771 = vpop.f32.mrf.mxu0
    %v2772 = vadd.f32 %v2731, %v2771
    %v2773 = vpop.f32.mrf.mxu0
    %v2774 = vadd.f32 %v2733, %v2773
    %v2775 = vpop.f32.mrf.mxu0
    %v2776 = vpop.f32.mrf.mxu0
    %2777 = vdwg.mxu0
    %2778 = vmatprep.subr.bf16.mxu0 %v1966
    %2779 = vmatpush1.bf16.msra.mxu0 %v1965
    %2780 = vmatprep.subr.bf16.mxu0 %v1964
    %2781 = vmatpush1.bf16.msra.mxu0 %v1963
    %2782 = vmatprep.subr.bf16.mxu0 %v1962
    %2783 = vmatpush1.bf16.msra.mxu0 %v1961
    %2784 = vmatprep.subr.bf16.mxu0 %v1960
    %2785 = vmatpush1.bf16.msra.mxu0 %v1959
    %2786 = vmatprep.subr.bf16.mxu0 %v1958
    %2787 = vmatpush1.bf16.msra.mxu0 %v1957
    %2788 = vmatprep.subr.bf16.mxu0 %v1956
    %2789 = vmatpush1.bf16.msra.mxu0 %v1955
    %2790 = vmatprep.subr.bf16.mxu0 %v1954
    %2791 = vmatpush1.bf16.msra.mxu0 %v1953
    %2792 = vmatprep.subr.bf16.mxu0 %v1952
    %2793 = vmatpush1.bf16.msra.mxu0 %v1951
    %2794 = vmatprep.subr.bf16.mxu0 %v1982
    %2795 = vmatpush2.bf16.msra.mxu0 %v1981
    %2796 = vmatprep.subr.bf16.mxu0 %v1980
    %2797 = vmatpush2.bf16.msra.mxu0 %v1979
    %2798 = vmatprep.subr.bf16.mxu0 %v1978
    %2799 = vmatpush2.bf16.msra.mxu0 %v1977
    %2800 = vmatprep.subr.bf16.mxu0 %v1976
    %2801 = vmatpush2.bf16.msra.mxu0 %v1975
    %2802 = vmatprep.subr.bf16.mxu0 %v1974
    %2803 = vmatpush2.bf16.msra.mxu0 %v1973
    %2804 = vmatprep.subr.bf16.mxu0 %v1972
    %2805 = vmatpush2.bf16.msra.mxu0 %v1971
    %2806 = vmatprep.subr.bf16.mxu0 %v1970
    %2807 = vmatpush2.bf16.msra.mxu0 %v1969
    %2808 = vmatprep.subr.bf16.mxu0 %v1968
    %2809 = vmatpush2.bf16.msra.mxu0 %v1967
    %2810 = vmatprep.mubr.bf16.mxu0 %v612
    %2811 = vmatmul.mubr.bf16.gmra.mxu0 %v611
    %v2812 = vpop.f32.mrf.mxu0
    %v2813 = vadd.f32 %v2772, %v2812
    %v2814 = vpop.f32.mrf.mxu0
    %v2815 = vadd.f32 %v2774, %v2814
    %v2816 = vpop.f32.mrf.mxu0
    %v2817 = vpop.f32.mrf.mxu0
    %2818 = vdwg.mxu0
    %2819 = vmatprep.subr.bf16.mxu0 %v1998
    %2820 = vmatpush1.bf16.msra.mxu0 %v1997
    %2821 = vmatprep.subr.bf16.mxu0 %v1996
    %2822 = vmatpush1.bf16.msra.mxu0 %v1995
    %2823 = vmatprep.subr.bf16.mxu0 %v1994
    %2824 = vmatpush1.bf16.msra.mxu0 %v1993
    %2825 = vmatprep.subr.bf16.mxu0 %v1992
    %2826 = vmatpush1.bf16.msra.mxu0 %v1991
    %2827 = vmatprep.subr.bf16.mxu0 %v1990
    %2828 = vmatpush1.bf16.msra.mxu0 %v1989
    %2829 = vmatprep.subr.bf16.mxu0 %v1988
    %2830 = vmatpush1.bf16.msra.mxu0 %v1987
    %2831 = vmatprep.subr.bf16.mxu0 %v1986
    %2832 = vmatpush1.bf16.msra.mxu0 %v1985
    %2833 = vmatprep.subr.bf16.mxu0 %v1984
    %2834 = vmatpush1.bf16.msra.mxu0 %v1983
    %2835 = vmatprep.subr.bf16.mxu0 %v2014
    %2836 = vmatpush2.bf16.msra.mxu0 %v2013
    %2837 = vmatprep.subr.bf16.mxu0 %v2012
    %2838 = vmatpush2.bf16.msra.mxu0 %v2011
    %2839 = vmatprep.subr.bf16.mxu0 %v2010
    %2840 = vmatpush2.bf16.msra.mxu0 %v2009
    %2841 = vmatprep.subr.bf16.mxu0 %v2008
    %2842 = vmatpush2.bf16.msra.mxu0 %v2007
    %2843 = vmatprep.subr.bf16.mxu0 %v2006
    %2844 = vmatpush2.bf16.msra.mxu0 %v2005
    %2845 = vmatprep.subr.bf16.mxu0 %v2004
    %2846 = vmatpush2.bf16.msra.mxu0 %v2003
    %2847 = vmatprep.subr.bf16.mxu0 %v2002
    %2848 = vmatpush2.bf16.msra.mxu0 %v2001
    %2849 = vmatprep.subr.bf16.mxu0 %v2000
    %2850 = vmatpush2.bf16.msra.mxu0 %v1999
    %2851 = vmatprep.mubr.bf16.mxu0 %v614
    %2852 = vmatmul.mubr.bf16.gmra.mxu0 %v613
    %v2853 = vpop.f32.mrf.mxu0
    %v2854 = vadd.f32 %v2813, %v2853
    %v2855 = vpop.f32.mrf.mxu0
    %v2856 = vadd.f32 %v2815, %v2855
    %v2857 = vpop.f32.mrf.mxu0
    %v2858 = vpop.f32.mrf.mxu0
    %2859 = vdwg.mxu0
    %2860 = vmatprep.subr.bf16.mxu0 %v2030
    %2861 = vmatpush1.bf16.msra.mxu0 %v2029
    %2862 = vmatprep.subr.bf16.mxu0 %v2028
    %2863 = vmatpush1.bf16.msra.mxu0 %v2027
    %2864 = vmatprep.subr.bf16.mxu0 %v2026
    %2865 = vmatpush1.bf16.msra.mxu0 %v2025
    %2866 = vmatprep.subr.bf16.mxu0 %v2024
    %2867 = vmatpush1.bf16.msra.mxu0 %v2023
    %2868 = vmatprep.subr.bf16.mxu0 %v2022
    %2869 = vmatpush1.bf16.msra.mxu0 %v2021
    %2870 = vmatprep.subr.bf16.mxu0 %v2020
    %2871 = vmatpush1.bf16.msra.mxu0 %v2019
    %2872 = vmatprep.subr.bf16.mxu0 %v2018
    %2873 = vmatpush1.bf16.msra.mxu0 %v2017
    %2874 = vmatprep.subr.bf16.mxu0 %v2016
    %2875 = vmatpush1.bf16.msra.mxu0 %v2015
    %2876 = vmatprep.subr.bf16.mxu0 %v2046
    %2877 = vmatpush2.bf16.msra.mxu0 %v2045
    %2878 = vmatprep.subr.bf16.mxu0 %v2044
    %2879 = vmatpush2.bf16.msra.mxu0 %v2043
    %2880 = vmatprep.subr.bf16.mxu0 %v2042
    %2881 = vmatpush2.bf16.msra.mxu0 %v2041
    %2882 = vmatprep.subr.bf16.mxu0 %v2040
    %2883 = vmatpush2.bf16.msra.mxu0 %v2039
    %2884 = vmatprep.subr.bf16.mxu0 %v2038
    %2885 = vmatpush2.bf16.msra.mxu0 %v2037
    %2886 = vmatprep.subr.bf16.mxu0 %v2036
    %2887 = vmatpush2.bf16.msra.mxu0 %v2035
    %2888 = vmatprep.subr.bf16.mxu0 %v2034
    %2889 = vmatpush2.bf16.msra.mxu0 %v2033
    %2890 = vmatprep.subr.bf16.mxu0 %v2032
    %2891 = vmatpush2.bf16.msra.mxu0 %v2031
    %2892 = vmatprep.mubr.bf16.mxu0 %v616
    %2893 = vmatmul.mubr.bf16.gmra.mxu0 %v615
    %v2894 = vpop.f32.mrf.mxu0
    %v2895 = vadd.f32 %v2854, %v2894
    %v2896 = vpop.f32.mrf.mxu0
    %v2897 = vadd.f32 %v2856, %v2896
    %v2898 = vpop.f32.mrf.mxu0
    %v2899 = vpop.f32.mrf.mxu0
    %2900 = vdwg.mxu0
    %2901 = vmatprep.subr.bf16.mxu0 %v2062
    %2902 = vmatpush1.bf16.msra.mxu0 %v2061
    %2903 = vmatprep.subr.bf16.mxu0 %v2060
    %2904 = vmatpush1.bf16.msra.mxu0 %v2059
    %2905 = vmatprep.subr.bf16.mxu0 %v2058
    %2906 = vmatpush1.bf16.msra.mxu0 %v2057
    %2907 = vmatprep.subr.bf16.mxu0 %v2056
    %2908 = vmatpush1.bf16.msra.mxu0 %v2055
    %2909 = vmatprep.subr.bf16.mxu0 %v2054
    %2910 = vmatpush1.bf16.msra.mxu0 %v2053
    %2911 = vmatprep.subr.bf16.mxu0 %v2052
    %2912 = vmatpush1.bf16.msra.mxu0 %v2051
    %2913 = vmatprep.subr.bf16.mxu0 %v2050
    %2914 = vmatpush1.bf16.msra.mxu0 %v2049
    %2915 = vmatprep.subr.bf16.mxu0 %v2048
    %2916 = vmatpush1.bf16.msra.mxu0 %v2047
    %2917 = vmatprep.subr.bf16.mxu0 %v2078
    %2918 = vmatpush2.bf16.msra.mxu0 %v2077
    %2919 = vmatprep.subr.bf16.mxu0 %v2076
    %2920 = vmatpush2.bf16.msra.mxu0 %v2075
    %2921 = vmatprep.subr.bf16.mxu0 %v2074
    %2922 = vmatpush2.bf16.msra.mxu0 %v2073
    %2923 = vmatprep.subr.bf16.mxu0 %v2072
    %2924 = vmatpush2.bf16.msra.mxu0 %v2071
    %2925 = vmatprep.subr.bf16.mxu0 %v2070
    %2926 = vmatpush2.bf16.msra.mxu0 %v2069
    %2927 = vmatprep.subr.bf16.mxu0 %v2068
    %2928 = vmatpush2.bf16.msra.mxu0 %v2067
    %2929 = vmatprep.subr.bf16.mxu0 %v2066
    %2930 = vmatpush2.bf16.msra.mxu0 %v2065
    %2931 = vmatprep.subr.bf16.mxu0 %v2064
    %2932 = vmatpush2.bf16.msra.mxu0 %v2063
    %2933 = vmatprep.mubr.bf16.mxu0 %v618
    %2934 = vmatmul.mubr.bf16.gmra.mxu0 %v617
    %v2935 = vpop.f32.mrf.mxu0
    %v2936 = vadd.f32 %v2895, %v2935
    %v2937 = vpop.f32.mrf.mxu0
    %v2938 = vadd.f32 %v2897, %v2937
    %v2939 = vpop.f32.mrf.mxu0
    %v2940 = vpop.f32.mrf.mxu0
    %2941 = vdwg.mxu0
    %2942 = vmatprep.subr.bf16.mxu0 %v2094
    %2943 = vmatpush1.bf16.msra.mxu0 %v2093
    %2944 = vmatprep.subr.bf16.mxu0 %v2092
    %2945 = vmatpush1.bf16.msra.mxu0 %v2091
    %2946 = vmatprep.subr.bf16.mxu0 %v2090
    %2947 = vmatpush1.bf16.msra.mxu0 %v2089
    %2948 = vmatprep.subr.bf16.mxu0 %v2088
    %2949 = vmatpush1.bf16.msra.mxu0 %v2087
    %2950 = vmatprep.subr.bf16.mxu0 %v2086
    %2951 = vmatpush1.bf16.msra.mxu0 %v2085
    %2952 = vmatprep.subr.bf16.mxu0 %v2084
    %2953 = vmatpush1.bf16.msra.mxu0 %v2083
    %2954 = vmatprep.subr.bf16.mxu0 %v2082
    %2955 = vmatpush1.bf16.msra.mxu0 %v2081
    %2956 = vmatprep.subr.bf16.mxu0 %v2080
    %2957 = vmatpush1.bf16.msra.mxu0 %v2079
    %2958 = vmatprep.subr.bf16.mxu0 %v2110
    %2959 = vmatpush2.bf16.msra.mxu0 %v2109
    %2960 = vmatprep.subr.bf16.mxu0 %v2108
    %2961 = vmatpush2.bf16.msra.mxu0 %v2107
    %2962 = vmatprep.subr.bf16.mxu0 %v2106
    %2963 = vmatpush2.bf16.msra.mxu0 %v2105
    %2964 = vmatprep.subr.bf16.mxu0 %v2104
    %2965 = vmatpush2.bf16.msra.mxu0 %v2103
    %2966 = vmatprep.subr.bf16.mxu0 %v2102
    %2967 = vmatpush2.bf16.msra.mxu0 %v2101
    %2968 = vmatprep.subr.bf16.mxu0 %v2100
    %2969 = vmatpush2.bf16.msra.mxu0 %v2099
    %2970 = vmatprep.subr.bf16.mxu0 %v2098
    %2971 = vmatpush2.bf16.msra.mxu0 %v2097
    %2972 = vmatprep.subr.bf16.mxu0 %v2096
    %2973 = vmatpush2.bf16.msra.mxu0 %v2095
    %2974 = vmatprep.mubr.bf16.mxu0 %v620
    %2975 = vmatmul.mubr.bf16.gmra.mxu0 %v619
    %v2976 = vpop.f32.mrf.mxu0
    %v2977 = vadd.f32 %v2936, %v2976
    %v2978 = vpop.f32.mrf.mxu0
    %v2979 = vadd.f32 %v2938, %v2978
    %v2980 = vpop.f32.mrf.mxu0
    %v2981 = vpop.f32.mrf.mxu0
    %2982 = vdwg.mxu0
    %2983 = vmatprep.subr.bf16.mxu0 %v2126
    %2984 = vmatpush1.bf16.msra.mxu0 %v2125
    %2985 = vmatprep.subr.bf16.mxu0 %v2124
    %2986 = vmatpush1.bf16.msra.mxu0 %v2123
    %2987 = vmatprep.subr.bf16.mxu0 %v2122
    %2988 = vmatpush1.bf16.msra.mxu0 %v2121
    %2989 = vmatprep.subr.bf16.mxu0 %v2120
    %2990 = vmatpush1.bf16.msra.mxu0 %v2119
    %2991 = vmatprep.subr.bf16.mxu0 %v2118
    %2992 = vmatpush1.bf16.msra.mxu0 %v2117
    %2993 = vmatprep.subr.bf16.mxu0 %v2116
    %2994 = vmatpush1.bf16.msra.mxu0 %v2115
    %2995 = vmatprep.subr.bf16.mxu0 %v2114
    %2996 = vmatpush1.bf16.msra.mxu0 %v2113
    %2997 = vmatprep.subr.bf16.mxu0 %v2112
    %2998 = vmatpush1.bf16.msra.mxu0 %v2111
    %2999 = vmatprep.subr.bf16.mxu0 %v2142
    %3000 = vmatpush2.bf16.msra.mxu0 %v2141
    %3001 = vmatprep.subr.bf16.mxu0 %v2140
    %3002 = vmatpush2.bf16.msra.mxu0 %v2139
    %3003 = vmatprep.subr.bf16.mxu0 %v2138
    %3004 = vmatpush2.bf16.msra.mxu0 %v2137
    %3005 = vmatprep.subr.bf16.mxu0 %v2136
    %3006 = vmatpush2.bf16.msra.mxu0 %v2135
    %3007 = vmatprep.subr.bf16.mxu0 %v2134
    %3008 = vmatpush2.bf16.msra.mxu0 %v2133
    %3009 = vmatprep.subr.bf16.mxu0 %v2132
    %3010 = vmatpush2.bf16.msra.mxu0 %v2131
    %3011 = vmatprep.subr.bf16.mxu0 %v2130
    %3012 = vmatpush2.bf16.msra.mxu0 %v2129
    %3013 = vmatprep.subr.bf16.mxu0 %v2128
    %3014 = vmatpush2.bf16.msra.mxu0 %v2127
    %3015 = vmatprep.mubr.bf16.mxu0 %v622
    %3016 = vmatmul.mubr.bf16.gmra.mxu0 %v621
    %v3017 = vpop.f32.mrf.mxu0
    %v3018 = vadd.f32 %v2977, %v3017
    %v3019 = vpop.f32.mrf.mxu0
    %v3020 = vadd.f32 %v2979, %v3019
    %v3021 = vpop.f32.mrf.mxu0
    %v3022 = vpop.f32.mrf.mxu0
    %3023 = vdwg.mxu0
    %3024 = vmatprep.subr.bf16.mxu0 %v2158
    %3025 = vmatpush1.bf16.msra.mxu0 %v2157
    %3026 = vmatprep.subr.bf16.mxu0 %v2156
    %3027 = vmatpush1.bf16.msra.mxu0 %v2155
    %3028 = vmatprep.subr.bf16.mxu0 %v2154
    %3029 = vmatpush1.bf16.msra.mxu0 %v2153
    %3030 = vmatprep.subr.bf16.mxu0 %v2152
    %3031 = vmatpush1.bf16.msra.mxu0 %v2151
    %3032 = vmatprep.subr.bf16.mxu0 %v2150
    %3033 = vmatpush1.bf16.msra.mxu0 %v2149
    %3034 = vmatprep.subr.bf16.mxu0 %v2148
    %3035 = vmatpush1.bf16.msra.mxu0 %v2147
    %3036 = vmatprep.subr.bf16.mxu0 %v2146
    %3037 = vmatpush1.bf16.msra.mxu0 %v2145
    %3038 = vmatprep.subr.bf16.mxu0 %v2144
    %3039 = vmatpush1.bf16.msra.mxu0 %v2143
    %3040 = vmatprep.subr.bf16.mxu0 %v2174
    %3041 = vmatpush2.bf16.msra.mxu0 %v2173
    %3042 = vmatprep.subr.bf16.mxu0 %v2172
    %3043 = vmatpush2.bf16.msra.mxu0 %v2171
    %3044 = vmatprep.subr.bf16.mxu0 %v2170
    %3045 = vmatpush2.bf16.msra.mxu0 %v2169
    %3046 = vmatprep.subr.bf16.mxu0 %v2168
    %3047 = vmatpush2.bf16.msra.mxu0 %v2167
    %3048 = vmatprep.subr.bf16.mxu0 %v2166
    %3049 = vmatpush2.bf16.msra.mxu0 %v2165
    %3050 = vmatprep.subr.bf16.mxu0 %v2164
    %3051 = vmatpush2.bf16.msra.mxu0 %v2163
    %3052 = vmatprep.subr.bf16.mxu0 %v2162
    %3053 = vmatpush2.bf16.msra.mxu0 %v2161
    %3054 = vmatprep.subr.bf16.mxu0 %v2160
    %3055 = vmatpush2.bf16.msra.mxu0 %v2159
    %3056 = vmatprep.mubr.bf16.mxu0 %v624
    %3057 = vmatmul.mubr.bf16.gmra.mxu0 %v623
    %v3058 = vpop.f32.mrf.mxu0
    %v3059 = vadd.f32 %v3018, %v3058
    %v3060 = vpop.f32.mrf.mxu0
    %v3061 = vadd.f32 %v3020, %v3060
    %v3062 = vpop.f32.mrf.mxu0
    %v3063 = vpop.f32.mrf.mxu0
    %3064 = vdwg.mxu0
    %3065 = vmatprep.subr.bf16.mxu0 %v2190
    %3066 = vmatpush1.bf16.msra.mxu0 %v2189
    %3067 = vmatprep.subr.bf16.mxu0 %v2188
    %3068 = vmatpush1.bf16.msra.mxu0 %v2187
    %3069 = vmatprep.subr.bf16.mxu0 %v2186
    %3070 = vmatpush1.bf16.msra.mxu0 %v2185
    %3071 = vmatprep.subr.bf16.mxu0 %v2184
    %3072 = vmatpush1.bf16.msra.mxu0 %v2183
    %3073 = vmatprep.subr.bf16.mxu0 %v2182
    %3074 = vmatpush1.bf16.msra.mxu0 %v2181
    %3075 = vmatprep.subr.bf16.mxu0 %v2180
    %3076 = vmatpush1.bf16.msra.mxu0 %v2179
    %3077 = vmatprep.subr.bf16.mxu0 %v2178
    %3078 = vmatpush1.bf16.msra.mxu0 %v2177
    %3079 = vmatprep.subr.bf16.mxu0 %v2176
    %3080 = vmatpush1.bf16.msra.mxu0 %v2175
    %3081 = vmatprep.subr.bf16.mxu0 %v2206
    %3082 = vmatpush2.bf16.msra.mxu0 %v2205
    %3083 = vmatprep.subr.bf16.mxu0 %v2204
    %3084 = vmatpush2.bf16.msra.mxu0 %v2203
    %3085 = vmatprep.subr.bf16.mxu0 %v2202
    %3086 = vmatpush2.bf16.msra.mxu0 %v2201
    %3087 = vmatprep.subr.bf16.mxu0 %v2200
    %3088 = vmatpush2.bf16.msra.mxu0 %v2199
    %3089 = vmatprep.subr.bf16.mxu0 %v2198
    %3090 = vmatpush2.bf16.msra.mxu0 %v2197
    %3091 = vmatprep.subr.bf16.mxu0 %v2196
    %3092 = vmatpush2.bf16.msra.mxu0 %v2195
    %3093 = vmatprep.subr.bf16.mxu0 %v2194
    %3094 = vmatpush2.bf16.msra.mxu0 %v2193
    %3095 = vmatprep.subr.bf16.mxu0 %v2192
    %3096 = vmatpush2.bf16.msra.mxu0 %v2191
    %3097 = vmatprep.mubr.bf16.mxu0 %v626
    %3098 = vmatmul.mubr.bf16.gmra.mxu0 %v625
    %v3099 = vpop.f32.mrf.mxu0
    %v3100 = vadd.f32 %v3059, %v3099
    %v3101 = vpop.f32.mrf.mxu0
    %v3102 = vadd.f32 %v3061, %v3101
    %v3103 = vpop.f32.mrf.mxu0
    %v3104 = vpop.f32.mrf.mxu0
    %3105 = vdwg.mxu0
    %3106 = vmatprep.subr.bf16.mxu0 %v2222
    %3107 = vmatpush1.bf16.msra.mxu0 %v2221
    %3108 = vmatprep.subr.bf16.mxu0 %v2220
    %3109 = vmatpush1.bf16.msra.mxu0 %v2219
    %3110 = vmatprep.subr.bf16.mxu0 %v2218
    %3111 = vmatpush1.bf16.msra.mxu0 %v2217
    %3112 = vmatprep.subr.bf16.mxu0 %v2216
    %3113 = vmatpush1.bf16.msra.mxu0 %v2215
    %3114 = vmatprep.subr.bf16.mxu0 %v2214
    %3115 = vmatpush1.bf16.msra.mxu0 %v2213
    %3116 = vmatprep.subr.bf16.mxu0 %v2212
    %3117 = vmatpush1.bf16.msra.mxu0 %v2211
    %3118 = vmatprep.subr.bf16.mxu0 %v2210
    %3119 = vmatpush1.bf16.msra.mxu0 %v2209
    %3120 = vmatprep.subr.bf16.mxu0 %v2208
    %3121 = vmatpush1.bf16.msra.mxu0 %v2207
    %3122 = vmatprep.subr.bf16.mxu0 %v2238
    %3123 = vmatpush2.bf16.msra.mxu0 %v2237
    %3124 = vmatprep.subr.bf16.mxu0 %v2236
    %3125 = vmatpush2.bf16.msra.mxu0 %v2235
    %3126 = vmatprep.subr.bf16.mxu0 %v2234
    %3127 = vmatpush2.bf16.msra.mxu0 %v2233
    %3128 = vmatprep.subr.bf16.mxu0 %v2232
    %3129 = vmatpush2.bf16.msra.mxu0 %v2231
    %3130 = vmatprep.subr.bf16.mxu0 %v2230
    %3131 = vmatpush2.bf16.msra.mxu0 %v2229
    %3132 = vmatprep.subr.bf16.mxu0 %v2228
    %3133 = vmatpush2.bf16.msra.mxu0 %v2227
    %3134 = vmatprep.subr.bf16.mxu0 %v2226
    %3135 = vmatpush2.bf16.msra.mxu0 %v2225
    %3136 = vmatprep.subr.bf16.mxu0 %v2224
    %3137 = vmatpush2.bf16.msra.mxu0 %v2223
    %3138 = vmatprep.mubr.bf16.mxu0 %v628
    %3139 = vmatmul.mubr.bf16.gmra.mxu0 %v627
    %v3140 = vpop.f32.mrf.mxu0
    %v3141 = vadd.f32 %v3100, %v3140
    %v3142 = vpop.f32.mrf.mxu0
    %v3143 = vadd.f32 %v3102, %v3142
    %v3144 = vpop.f32.mrf.mxu0
    %v3145 = vpop.f32.mrf.mxu0
    %3146 = vdwg.mxu0
    %3147 = vmatprep.subr.bf16.mxu0 %v2254
    %3148 = vmatpush1.bf16.msra.mxu0 %v2253
    %3149 = vmatprep.subr.bf16.mxu0 %v2252
    %3150 = vmatpush1.bf16.msra.mxu0 %v2251
    %3151 = vmatprep.subr.bf16.mxu0 %v2250
    %3152 = vmatpush1.bf16.msra.mxu0 %v2249
    %3153 = vmatprep.subr.bf16.mxu0 %v2248
    %3154 = vmatpush1.bf16.msra.mxu0 %v2247
    %3155 = vmatprep.subr.bf16.mxu0 %v2246
    %3156 = vmatpush1.bf16.msra.mxu0 %v2245
    %3157 = vmatprep.subr.bf16.mxu0 %v2244
    %3158 = vmatpush1.bf16.msra.mxu0 %v2243
    %3159 = vmatprep.subr.bf16.mxu0 %v2242
    %3160 = vmatpush1.bf16.msra.mxu0 %v2241
    %3161 = vmatprep.subr.bf16.mxu0 %v2240
    %3162 = vmatpush1.bf16.msra.mxu0 %v2239
    %3163 = vmatprep.subr.bf16.mxu0 0
    %3164 = vmatpush2.bf16.msra.mxu0 0
    %3165 = vmatprep.subr.bf16.mxu0 0
    %3166 = vmatpush2.bf16.msra.mxu0 0
    %3167 = vmatprep.subr.bf16.mxu0 0
    %3168 = vmatpush2.bf16.msra.mxu0 0
    %3169 = vmatprep.subr.bf16.mxu0 0
    %3170 = vmatpush2.bf16.msra.mxu0 0
    %3171 = vmatprep.subr.bf16.mxu0 0
    %3172 = vmatpush2.bf16.msra.mxu0 0
    %3173 = vmatprep.subr.bf16.mxu0 0
    %3174 = vmatpush2.bf16.msra.mxu0 0
    %3175 = vmatprep.subr.bf16.mxu0 0
    %3176 = vmatpush2.bf16.msra.mxu0 0
    %3177 = vmatprep.subr.bf16.mxu0 0
    %3178 = vmatpush2.bf16.msra.mxu0 0
    %3179 = vmatprep.mubr.bf16.mxu0 0
    %3180 = vmatmul.mubr.bf16.gmra.mxu0 %v629
    %v3181 = vpop.f32.mrf.mxu0
    %v3182 = vadd.f32 %v3141, %v3181
    %v3183 = vpop.f32.mrf.mxu0
    %v3184 = vadd.f32 %v3143, %v3183
    %v3185 = vpop.f32.mrf.mxu0
    %v3186 = vpop.f32.mrf.mxu0
    %3187 = vdwg.mxu0
    %v3188 = vld [vmem:[#allocation3] sm:$0x3]
    %v3189 = vrot.slane %v3182, 4
    %v3190 = vadd.f32 %v3182, %v3189
    %v3191 = vrot.slane %v3190, 2
    %v3192 = vadd.f32 %v3190, %v3191
    %v3193 = vrot.slane %v3192, 1
    %v3194 = vadd.f32 %v3192, %v3193
    %v3195 = vrot.slane %v3184, 4
    %v3196 = vadd.f32 %v3184, %v3195
    %v3197 = vrot.slane %v3196, 2
    %v3198 = vadd.f32 %v3196, %v3197
    %v3199 = vrot.slane %v3198, 1
    %v3200 = vadd.f32 %v3198, %v3199
    %v3203 = vcombine.low %v3194, %v3200
    %v3205 = vunpack.c.l.s4 1966171168
    %v3206 = vunpack.c.0.s8 %v3205
    %v3207 = vlaneseq
    %v3208 = vshrl.u32 %v3207, 7
    %v3209 = vsub.s32 %v3206, %v3208
    %v3210 = vrot.slane %v3203, %v3209
    %v3212 = vunpack.c.l.s4 1966171168
    %v3213 = vunpack.c.0.s8 %v3212
    %v3214 = vlaneseq
    %v3215 = vshrl.u32 %v3214, 7
    %v3216 = vsub.s32 %v3213, %v3215
    %v3217 = vrot.slane %v3210, %v3216
    %v3219 = vadd.f32 %v3188, %v3217
    %v3220 = vlaneseq
    %vm3221 = vcmp.ge.s32.totalorder %v3220, 0
    %vm3222 = vcmp.lt.s32.totalorder %v3220, 256
    %vm3223 = vmand %vm3221, %vm3222
    %3224 = vst.msk [vmem:[#allocation3] sm:$0x3] %vm3223, %v3219
    %v3225 = vld [vmem:[#allocation4] sm:$0x3]
    %v3226 = vmul.f32 %v3182, %v3182
    %v3227 = vmul.f32 %v3184, %v3184
    %v3228 = vrot.slane %v3226, 4
    %v3229 = vadd.f32 %v3226, %v3228
    %v3230 = vrot.slane %v3229, 2
    %v3231 = vadd.f32 %v3229, %v3230
    %v3232 = vrot.slane %v3231, 1
    %v3233 = vadd.f32 %v3231, %v3232
    %v3234 = vrot.slane %v3227, 4
    %v3235 = vadd.f32 %v3227, %v3234
    %v3236 = vrot.slane %v3235, 2
    %v3237 = vadd.f32 %v3235, %v3236
    %v3238 = vrot.slane %v3237, 1
    %v3239 = vadd.f32 %v3237, %v3238
    %v3242 = vcombine.low %v3233, %v3239
    %v3244 = vunpack.c.l.s4 1966171168
    %v3245 = vunpack.c.0.s8 %v3244
    %v3246 = vlaneseq
    %v3247 = vshrl.u32 %v3246, 7
    %v3248 = vsub.s32 %v3245, %v3247
    %v3249 = vrot.slane %v3242, %v3248
    %v3251 = vunpack.c.l.s4 1966171168
    %v3252 = vunpack.c.0.s8 %v3251
    %v3253 = vlaneseq
    %v3254 = vshrl.u32 %v3253, 7
    %v3255 = vsub.s32 %v3252, %v3254
    %v3256 = vrot.slane %v3249, %v3255
    %v3258 = vadd.f32 %v3225, %v3256
    %3259 = vst.msk [vmem:[#allocation4] sm:$0x3] %vm3223, %v3258
    %v3260 = vpack.c.bf16 %v3182, %v3182
    %v3261 = vpack.c.bf16 %v3184, %v3184
    %v3264 = vunpack.c.l.b16 %v3260
    %v3265 = vunpack.c.l.b16 %v3261
    %v3266 = vpack.c.b16 %v3265, %v3264
    %3268 = vst [vmem:[#allocation2] sm:$0xff] %v3266
    // Predicated region
    $region78: #{tpu_custom_call.1} parent=1 // pred_check
      %p3269 = pneg %p144
    $region79: #{tpu_custom_call.1} parent=1 // pred_check_branch
      %3271 = sbr.rel (%p3269) target = $region81
    $region80: #{tpu_custom_call.1} parent=1 // pred_region
      %v3272 = vld [vmem:[#allocation3] sm:$0x3]
      %v3273 = vmul.f32 %v3272, 0.125
      %v3274 = vld [vmem:[#allocation4] sm:$0x3]
      %v3275 = vmul.f32 %v3274, 0.125
      %v3276 = vmul.f32 %v3273, %v3273
      %v3277 = vsub.f32 %v3275, %v3276
      %v3278 = vmax.f32 %v3277, 0.0
      %v3279 = vld [vmem:[#allocation10] sm:$0x3]
      %v3280 = vadd.f32 %v3278, 1e-05
      %v3281 = vrsqrt.pop %v3280
      %v3282 = vmul.f32 %v3279, %v3281
      %v3283 = vld [vmem:[#allocation11] sm:$0x3]
      %v3284 = vmul.f32 %v3273, %v3282
      %v3285 = vsub.f32 %v3283, %v3284
      %v3286 = vld [vmem:[#allocation2] sm:$0xff]
      %v3287 = vunpack.c.l.bf16 %v3286
      %v3288 = vunpack.c.h.bf16 %v3286
      %v3290 = vlaneseq
      %v3291 = vshrl.u32 %v3290, 7
      %v3292 = vsub.s32 0, %v3291
      %v3293 = vrot.slane %v3282, %v3292
      %v3294 = vlaneseq
      %v3295 = vshrl.u32 %v3294, 7
      %v3296 = vsub.s32 1, %v3295
      %v3297 = vrot.slane %v3282, %v3296
      %v3300 = vmul.f32 %v3287, %v3293
      %v3301 = vmul.f32 %v3288, %v3297
      %v3303 = vlaneseq
      %v3304 = vshrl.u32 %v3303, 7
      %v3305 = vsub.s32 0, %v3304
      %v3306 = vrot.slane %v3285, %v3305
      %v3307 = vlaneseq
      %v3308 = vshrl.u32 %v3307, 7
      %v3309 = vsub.s32 1, %v3308
      %v3310 = vrot.slane %v3285, %v3309
      %v3313 = vadd.f32 %v3300, %v3306
      %v3314 = vadd.f32 %v3301, %v3310
      %v3315 = vmax.f32 %v3313, 0.0
      %v3316 = vmax.f32 %v3314, 0.0
      %v3317 = vpack.c.bf16 %v3315, %v3315
      %v3318 = vpack.c.bf16 %v3316, %v3316
      %v3319 = vld [vmem:[#allocation13] sm:$0xf]
      %v3320 = vld [vmem:[#allocation13 + $0x4] sm:$0xf]
      %v3321 = vld [vmem:[#allocation13 + $0x8] sm:$0xf]
      %v3322 = vld [vmem:[#allocation13 + $0xc] sm:$0xf]
      %v3323 = vld [vmem:[#allocation13 + $0x10] sm:$0xf]
      %v3324 = vld [vmem:[#allocation13 + $0x14] sm:$0xf]
      %v3325 = vld [vmem:[#allocation13 + $0x18] sm:$0xf]
      %v3326 = vld [vmem:[#allocation13 + $0x1c] sm:$0xf]
      %v3327 = vld [vmem:[#allocation13 + $0x20] sm:$0xf]
      %v3328 = vld [vmem:[#allocation13 + $0x24] sm:$0xf]
      %v3329 = vld [vmem:[#allocation13 + $0x28] sm:$0xf]
      %v3330 = vld [vmem:[#allocation13 + $0x2c] sm:$0xf]
      %v3331 = vld [vmem:[#allocation13 + $0x30] sm:$0xf]
      %v3332 = vld [vmem:[#allocation13 + $0x34] sm:$0xf]
      %v3333 = vld [vmem:[#allocation13 + $0x38] sm:$0xf]
      %v3334 = vld [vmem:[#allocation13 + $0x3c] sm:$0xf]
      %v3335 = vld [vmem:[#allocation13 + $0x40] sm:$0xf]
      %v3336 = vld [vmem:[#allocation13 + $0x44] sm:$0xf]
      %v3337 = vld [vmem:[#allocation13 + $0x48] sm:$0xf]
      %v3338 = vld [vmem:[#allocation13 + $0x4c] sm:$0xf]
      %v3339 = vld [vmem:[#allocation13 + $0x50] sm:$0xf]
      %v3340 = vld [vmem:[#allocation13 + $0x54] sm:$0xf]
      %v3341 = vld [vmem:[#allocation13 + $0x58] sm:$0xf]
      %v3342 = vld [vmem:[#allocation13 + $0x5c] sm:$0xf]
      %v3343 = vld [vmem:[#allocation13 + $0x60] sm:$0xf]
      %v3344 = vld [vmem:[#allocation13 + $0x64] sm:$0xf]
      %v3345 = vld [vmem:[#allocation13 + $0x68] sm:$0xf]
      %v3346 = vld [vmem:[#allocation13 + $0x6c] sm:$0xf]
      %v3347 = vld [vmem:[#allocation13 + $0x70] sm:$0xf]
      %v3348 = vld [vmem:[#allocation13 + $0x74] sm:$0xf]
      %v3349 = vld [vmem:[#allocation13 + $0x78] sm:$0xf]
      %v3350 = vld [vmem:[#allocation13 + $0x7c] sm:$0xf]
      %v3383 = vunpack.c.l.b16 %v3319
      %v3384 = vunpack.c.l.b16 %v3320
      %v3385 = vunpack.c.l.b16 %v3321
      %v3386 = vunpack.c.l.b16 %v3322
      %v3387 = vunpack.c.l.b16 %v3323
      %v3388 = vunpack.c.l.b16 %v3324
      %v3389 = vunpack.c.l.b16 %v3325
      %v3390 = vunpack.c.l.b16 %v3326
      %v3391 = vunpack.c.l.b16 %v3327
      %v3392 = vunpack.c.l.b16 %v3328
      %v3393 = vunpack.c.l.b16 %v3329
      %v3394 = vunpack.c.l.b16 %v3330
      %v3395 = vunpack.c.l.b16 %v3331
      %v3396 = vunpack.c.l.b16 %v3332
      %v3397 = vunpack.c.l.b16 %v3333
      %v3398 = vunpack.c.l.b16 %v3334
      %v3399 = vunpack.c.l.b16 %v3335
      %v3400 = vunpack.c.l.b16 %v3336
      %v3401 = vunpack.c.l.b16 %v3337
      %v3402 = vunpack.c.l.b16 %v3338
      %v3403 = vunpack.c.l.b16 %v3339
      %v3404 = vunpack.c.l.b16 %v3340
      %v3405 = vunpack.c.l.b16 %v3341
      %v3406 = vunpack.c.l.b16 %v3342
      %v3407 = vunpack.c.l.b16 %v3343
      %v3408 = vunpack.c.l.b16 %v3344
      %v3409 = vunpack.c.l.b16 %v3345
      %v3410 = vunpack.c.l.b16 %v3346
      %v3411 = vunpack.c.l.b16 %v3347
      %v3412 = vunpack.c.l.b16 %v3348
      %v3413 = vunpack.c.l.b16 %v3349
      %v3414 = vunpack.c.l.b16 %v3350
      %v3415 = vpack.c.b16 %v3384, %v3383
      %v3416 = vpack.c.b16 %v3386, %v3385
      %v3417 = vpack.c.b16 %v3388, %v3387
      %v3418 = vpack.c.b16 %v3390, %v3389
      %v3419 = vpack.c.b16 %v3392, %v3391
      %v3420 = vpack.c.b16 %v3394, %v3393
      %v3421 = vpack.c.b16 %v3396, %v3395
      %v3422 = vpack.c.b16 %v3398, %v3397
      %v3423 = vpack.c.b16 %v3400, %v3399
      %v3424 = vpack.c.b16 %v3402, %v3401
      %v3425 = vpack.c.b16 %v3404, %v3403
      %v3426 = vpack.c.b16 %v3406, %v3405
      %v3427 = vpack.c.b16 %v3408, %v3407
      %v3428 = vpack.c.b16 %v3410, %v3409
      %v3429 = vpack.c.b16 %v3412, %v3411
      %v3430 = vpack.c.b16 %v3414, %v3413
      %3447 = vmatprep.subr.bf16.mxu0 0
      %3448 = vmatpush1.bf16.msra.mxu0 %v3422
      %3449 = vmatprep.subr.bf16.mxu0 0
      %3450 = vmatpush1.bf16.msra.mxu0 %v3421
      %3451 = vmatprep.subr.bf16.mxu0 0
      %3452 = vmatpush1.bf16.msra.mxu0 %v3420
      %3453 = vmatprep.subr.bf16.mxu0 0
      %3454 = vmatpush1.bf16.msra.mxu0 %v3419
      %3455 = vmatprep.subr.bf16.mxu0 0
      %3456 = vmatpush1.bf16.msra.mxu0 %v3418
      %3457 = vmatprep.subr.bf16.mxu0 0
      %3458 = vmatpush1.bf16.msra.mxu0 %v3417
      %3459 = vmatprep.subr.bf16.mxu0 0
      %3460 = vmatpush1.bf16.msra.mxu0 %v3416
      %3461 = vmatprep.subr.bf16.mxu0 0
      %3462 = vmatpush1.bf16.msra.mxu0 %v3415
      %3463 = vmatprep.subr.bf16.mxu0 0
      %3464 = vmatpush2.bf16.msra.mxu0 %v3430
      %3465 = vmatprep.subr.bf16.mxu0 0
      %3466 = vmatpush2.bf16.msra.mxu0 %v3429
      %3467 = vmatprep.subr.bf16.mxu0 0
      %3468 = vmatpush2.bf16.msra.mxu0 %v3428
      %3469 = vmatprep.subr.bf16.mxu0 0
      %3470 = vmatpush2.bf16.msra.mxu0 %v3427
      %3471 = vmatprep.subr.bf16.mxu0 0
      %3472 = vmatpush2.bf16.msra.mxu0 %v3426
      %3473 = vmatprep.subr.bf16.mxu0 0
      %3474 = vmatpush2.bf16.msra.mxu0 %v3425
      %3475 = vmatprep.subr.bf16.mxu0 0
      %3476 = vmatpush2.bf16.msra.mxu0 %v3424
      %3477 = vmatprep.subr.bf16.mxu0 0
      %3478 = vmatpush2.bf16.msra.mxu0 %v3423
      %3479 = vmatprep.mubr.bf16.mxu0 %v3318
      %3480 = vmatmul.mubr.bf16.gmra.mxu0 %v3317
      %v3481 = vpop.f32.mrf.mxu0
      %v3482 = vadd.f32 0.0, %v3481
      %v3483 = vpop.f32.mrf.mxu0
      %v3484 = vpop.f32.mrf.mxu0
      %v3485 = vpop.f32.mrf.mxu0
      %3486 = vdwg.mxu0
      %v3487 = vrot.slane %v3482, 4
      %v3488 = vadd.f32 %v3482, %v3487
      %v3489 = vrot.slane %v3488, 2
      %v3490 = vadd.f32 %v3488, %v3489
      %v3491 = vrot.slane %v3490, 1
      %v3492 = vadd.f32 %v3490, %v3491
      %v3493 = vrcp.pop 8.0
      %v3494 = vmul.f32 %v3492, %v3493
      %v3495 = vsub.f32 %v3482, %v3494
      %v3496 = vmul.f32 %v3495, %v3495
      %v3497 = vrot.slane %v3496, 4
      %v3498 = vadd.f32 %v3496, %v3497
      %v3499 = vrot.slane %v3498, 2
      %v3500 = vadd.f32 %v3498, %v3499
      %v3501 = vrot.slane %v3500, 1
      %v3502 = vadd.f32 %v3500, %v3501
      %v3503 = vmul.f32 %v3502, %v3493
      %v3504 = vld [vmem:[#allocation14] sm:$0x1]
      %v3505 = vadd.f32 %v3503, 1e-05
      %v3506 = vrsqrt.pop %v3505
      %v3507 = vmul.f32 %v3504, %v3506
      %v3509 = vlaneseq
      %v3510 = vshrl.u32 %v3509, 7
      %v3511 = vsub.s32 0, %v3510
      %v3512 = vrot.slane %v3507, %v3511
      %v3514 = vmul.f32 %v3495, %v3512
      %v3515 = vld [vmem:[#allocation16] sm:$0x1]
      %v3517 = vlaneseq
      %v3518 = vshrl.u32 %v3517, 7
      %v3519 = vsub.s32 0, %v3518
      %v3520 = vrot.slane %v3515, %v3519
      %v3522 = vadd.f32 %v3514, %v3520
      %v3523 = vmax.f32 %v3522, 0.0
      %v3524 = vpack.c.bf16 %v3523, %v3523
      %v3525 = vld [vmem:[#allocation17] sm:$0xf]
      %v3526 = vld [vmem:[#allocation17 + $0x4] sm:$0xf]
      %v3527 = vld [vmem:[#allocation17 + $0x8] sm:$0xf]
      %v3528 = vld [vmem:[#allocation17 + $0xc] sm:$0xf]
      %v3529 = vld [vmem:[#allocation17 + $0x10] sm:$0xf]
      %v3530 = vld [vmem:[#allocation17 + $0x14] sm:$0xf]
      %v3531 = vld [vmem:[#allocation17 + $0x18] sm:$0xf]
      %v3532 = vld [vmem:[#allocation17 + $0x1c] sm:$0xf]
      %v3533 = vld [vmem:[#allocation17 + $0x20] sm:$0xf]
      %v3534 = vld [vmem:[#allocation17 + $0x24] sm:$0xf]
      %v3535 = vld [vmem:[#allocation17 + $0x28] sm:$0xf]
      %v3536 = vld [vmem:[#allocation17 + $0x2c] sm:$0xf]
      %v3537 = vld [vmem:[#allocation17 + $0x30] sm:$0xf]
      %v3538 = vld [vmem:[#allocation17 + $0x34] sm:$0xf]
      %v3539 = vld [vmem:[#allocation17 + $0x38] sm:$0xf]
      %v3540 = vld [vmem:[#allocation17 + $0x3c] sm:$0xf]
      %v3541 = vld [vmem:[#allocation19] sm:$0x1]
      %v3543 = vlaneseq
      %v3544 = vshrl.u32 %v3543, 7
      %v3545 = vsub.s32 0, %v3544
      %v3546 = vrot.slane %v3541, %v3545
      %v3564 = vunpack.c.l.b16 %v3525
      %v3565 = vunpack.c.l.b16 %v3526
      %v3566 = vunpack.c.l.b16 %v3527
      %v3567 = vunpack.c.l.b16 %v3528
      %v3568 = vunpack.c.l.b16 %v3529
      %v3569 = vunpack.c.l.b16 %v3530
      %v3570 = vunpack.c.l.b16 %v3531
      %v3571 = vunpack.c.l.b16 %v3532
      %v3572 = vunpack.c.l.b16 %v3533
      %v3573 = vunpack.c.l.b16 %v3534
      %v3574 = vunpack.c.l.b16 %v3535
      %v3575 = vunpack.c.l.b16 %v3536
      %v3576 = vunpack.c.l.b16 %v3537
      %v3577 = vunpack.c.l.b16 %v3538
      %v3578 = vunpack.c.l.b16 %v3539
      %v3579 = vunpack.c.l.b16 %v3540
      %v3580 = vpack.c.b16 %v3565, %v3564
      %v3581 = vpack.c.b16 %v3567, %v3566
      %v3582 = vpack.c.b16 %v3569, %v3568
      %v3583 = vpack.c.b16 %v3571, %v3570
      %v3584 = vpack.c.b16 %v3573, %v3572
      %v3585 = vpack.c.b16 %v3575, %v3574
      %v3586 = vpack.c.b16 %v3577, %v3576
      %v3587 = vpack.c.b16 %v3579, %v3578
      %3596 = vmatprep.subr.bf16.mxu0 0
      %3597 = vmatpush1.bf16.msra.mxu0 %v3587
      %3598 = vmatprep.subr.bf16.mxu0 0
      %3599 = vmatpush1.bf16.msra.mxu0 %v3586
      %3600 = vmatprep.subr.bf16.mxu0 0
      %3601 = vmatpush1.bf16.msra.mxu0 %v3585
      %3602 = vmatprep.subr.bf16.mxu0 0
      %3603 = vmatpush1.bf16.msra.mxu0 %v3584
      %3604 = vmatprep.subr.bf16.mxu0 0
      %3605 = vmatpush1.bf16.msra.mxu0 %v3583
      %3606 = vmatprep.subr.bf16.mxu0 0
      %3607 = vmatpush1.bf16.msra.mxu0 %v3582
      %3608 = vmatprep.subr.bf16.mxu0 0
      %3609 = vmatpush1.bf16.msra.mxu0 %v3581
      %3610 = vmatprep.subr.bf16.mxu0 0
      %3611 = vmatpush1.bf16.msra.mxu0 %v3580
      %3612 = vmatprep.subr.bf16.mxu0 0
      %3613 = vmatpush2.bf16.msra.mxu0 0
      %3614 = vmatprep.subr.bf16.mxu0 0
      %3615 = vmatpush2.bf16.msra.mxu0 0
      %3616 = vmatprep.subr.bf16.mxu0 0
      %3617 = vmatpush2.bf16.msra.mxu0 0
      %3618 = vmatprep.subr.bf16.mxu0 0
      %3619 = vmatpush2.bf16.msra.mxu0 0
      %3620 = vmatprep.subr.bf16.mxu0 0
      %3621 = vmatpush2.bf16.msra.mxu0 0
      %3622 = vmatprep.subr.bf16.mxu0 0
      %3623 = vmatpush2.bf16.msra.mxu0 0
      %3624 = vmatprep.subr.bf16.mxu0 0
      %3625 = vmatpush2.bf16.msra.mxu0 0
      %3626 = vmatprep.subr.bf16.mxu0 0
      %3627 = vmatpush2.bf16.msra.mxu0 0
      %3628 = vmatprep.mubr.bf16.mxu0 0
      %3629 = vmatmul.mubr.bf16.gmra.mxu0 %v3524
      %v3630 = vpop.f32.mrf.mxu0
      %v3631 = vadd.f32 %v3546, %v3630
      %v3632 = vpop.f32.mrf.mxu0
      %v3633 = vpop.f32.mrf.mxu0
      %v3634 = vpop.f32.mrf.mxu0
      %3635 = vdwg.mxu0
      %3636 = vst [vmem:[#allocation20] sm:$0xff] %v3631
    $region81: #{tpu_custom_call.1} parent=1 // pred_fallthru
      _
    // Predicated region
    $region82: #{tpu_custom_call.1} parent=1 // pred_check
      _
    $region83: #{tpu_custom_call.1} parent=1 // pred_check_branch
      %3638 = sbr.rel (0) target = $region85
    $region84: #{tpu_custom_call.1} parent=1 // pred_region
      %s3640 = ssub.s32 128, 128
      %3641 = vsyncadd [#allocation7], %s3640
      %s3643 = sshll.u32 [#allocation20], 4
      %s3644 = int_to_ptr.vmem [resolvable:$true] %s3643
      %3646 = dma.vmem_to_hbm [thread:$0]  %s3644, 128, %s9, [#allocation7]
    $region85: #{tpu_custom_call.1} parent=1 // pred_fallthru
      _
    // Predicated region
    $region86: #{tpu_custom_call.1} parent=1 // pred_check
      _
    $region87: #{tpu_custom_call.1} parent=1 // pred_check_branch
      %3648 = sbr.rel (0) target = $region89
    $region88: #{tpu_custom_call.1} parent=1 // pred_region
      %3649 = dma.done [#allocation7], 128
    $region89: #{tpu_custom_call.1} parent=1 // pred_fallthru
      _
    %3650 = vsyncpa [#allocation6], 1
    %3651 = vsyncpa [#allocation9], 1
    %3652 = vsyncpa [#allocation12], 1
    %3653 = vsyncpa [#allocation15], 1
    %3654 = vsyncpa [#allocation18], 1
    %3655 = vsyncpa [#allocation7], 1

</llo_original>
